<compile_context>
chip_gen: v7x
topology: tpu7x:2x2x1
jax: 0.10.0
libtpu: 0.0.40
codegen_flags: <defaults>
</compile_context>

<pallas_src>
import functools

import numpy as np
import jax
import jax.numpy as jnp
from jax.experimental import pallas as pl
from jax.experimental.pallas import tpu as pltpu


def _attend_kernel(scale, q_ref, k_ref, v_ref, attn_ref, out_ref):
    # Blocks: q (G, TQ, Dh); k, v (G, N, Dh); attn (G, TQ, N); out (G, TQ, Dh).
    # Fold the softmax scale into q: O(G*TQ*Dh) multiplies instead of O(G*TQ*N).
    q = q_ref[...] * scale
    k = k_ref[...]
    v = v_ref[...]

    # Scaled dot-product scores on the MXU. The einsum contracts the last dims
    # of both operands (no explicit k.T -> no XLU transpose / tile copy);
    # operands keep their input dtype (bf16 feeds the MXU at native rate),
    # accumulation is f32.
    s = jnp.einsum("gqd,gkd->gqk", q, k, preferred_element_type=jnp.float32)

    # Numerically-stable softmax along keys, elementwise math in f32
    # (the '*attend' module output).
    m = jnp.max(s, axis=-1, keepdims=True)
    p = jnp.exp(s - m)
    denom = jnp.sum(p, axis=-1, keepdims=True)
    # Reciprocal on the EUP slot; the O(N^2) normalize becomes a plain vmul.
    attn = p * pl.reciprocal(denom, approx=True)

    attn_ref[...] = attn.astype(attn_ref.dtype)
    # attention-weighted values (keeps the host model running so the next
    # block sees realistic inputs, like the real hooked forward pass).
    out_ref[...] = jnp.einsum(
        "gqk,gkd->gqd", attn.astype(v.dtype), v,
        preferred_element_type=jnp.float32,
    ).astype(out_ref.dtype)


def _vmem_capacity_bytes():
    """Physical VMEM per core; falls back to the smallest generation (v7x)."""
    try:
        info = pltpu.get_tpu_info()
        cap = getattr(info, "vmem_capacity_bytes", None)
        if cap:
            return int(cap)
    except Exception:
        pass
    return 64 * 1024 * 1024  # v7x has 64 MiB; v5e/v6e have 128 MiB.


def _choose_query_tile(n):
    """Query tile: full N for small problems, else an MXU-friendly tile."""
    if n <= 256:
        return n
    for tq in (256, 128, 64, 32, 16, 8):
        if n % tq == 0:
            return tq
    return n


def _choose_head_group(bh, n, tq, dh, in_bytes, attn_bytes, vmem_budget_bytes):
    """Largest head batch G that fits the VMEM budget double-buffered, while
    keeping >= 2 grid steps so v7x's two TensorCores both get work."""
    def per_step_bytes(g):
        # double-buffered (x2) resident blocks: q, k, v, attn map, attn@v out
        return 2 * (g * tq * dh * in_bytes          # q tile
                    + 2 * g * n * dh * in_bytes     # k, v tiles
                    + g * tq * n * attn_bytes       # attention-map tile
                    + g * tq * dh * in_bytes)       # attn@v output tile

    divisors = [g for g in range(1, bh + 1) if bh % g == 0]
    fitting = [g for g in divisors if per_step_bytes(g) <= vmem_budget_bytes] or [1]
    q_tiles = max(1, n // tq)
    multi = [g for g in fitting if (bh // g) * q_tiles >= 2]
    return max(multi) if multi else max(fitting)


def attend_pallas(q, k, v, scale, attn_dtype=jnp.float32):
    """q, k, v: [BH, N, Dh] -> (attn [BH, N, N] attn_dtype, out [BH, N, Dh]).

    attn_dtype=jnp.bfloat16 halves the dominant O(N^2) attention-map writeback
    if the consumer tolerates it; default f32 matches the torch hook output.
    """
    BH, N, Dh = q.shape
    in_bytes = q.dtype.itemsize
    attn_bytes = np.dtype(attn_dtype).itemsize

    vmem_cap = _vmem_capacity_bytes()
    vmem_budget = vmem_cap // 4   # working-set target: 16 MiB v7x, 32 MiB v5e/v6e
    vmem_limit = vmem_cap // 2    # explicit scoped limit, >= default, big headroom

    TQ = _choose_query_tile(N)
    G = _choose_head_group(BH, N, TQ, Dh, in_bytes, attn_bytes, vmem_budget)

    kernel = functools.partial(_attend_kernel, float(scale))
    attn, out = pl.pallas_call(
        kernel,
        out_shape=(
            jax.ShapeDtypeStruct((BH, N, N), attn_dtype),
            jax.ShapeDtypeStruct((BH, N, Dh), q.dtype),
        ),
        grid=(BH // G, N // TQ),
        in_specs=[
            pl.BlockSpec((G, TQ, Dh), lambda g, qi: (g, qi, 0)),
            pl.BlockSpec((G, N, Dh), lambda g, qi: (g, 0, 0)),
            pl.BlockSpec((G, N, Dh), lambda g, qi: (g, 0, 0)),
        ],
        out_specs=(
            pl.BlockSpec((G, TQ, N), lambda g, qi: (g, qi, 0)),
            pl.BlockSpec((G, TQ, Dh), lambda g, qi: (g, qi, 0)),
        ),
        compiler_params=pltpu.CompilerParams(
            dimension_semantics=("parallel", "parallel"),
            vmem_limit_bytes=int(vmem_limit),
        ),
    )(q, k, v)
    return attn, out


def init_params(key, depth, dim, num_heads):
    """Deterministic synthetic weights for a tiny ViT/SiT-style stack."""
    params = []
    for _ in range(depth):
        k1, k2, k3, key = jax.random.split(key, 4)
        params.append(dict(
            qkv_w=jax.random.normal(k1, (dim, 3 * dim), jnp.float32) * 0.02,
            qkv_b=jax.random.normal(k2, (3 * dim,), jnp.float32) * 0.02,
            proj_w=jax.random.normal(k3, (dim, dim), jnp.float32) * 0.02,
        ))
    return params


def attention_extract_forward(x, params, num_heads):
    """Equivalent of AttentionExtract(model, names=['*attend']).forward(x).

    Runs the model forward and returns a dict of the '*attend' (softmax
    attention map) outputs of every block.
    """
    B, N, D = x.shape
    Dh = D // num_heads
    scale = Dh ** -0.5
    outputs = {}
    for i, p in enumerate(params):
        # qkv projection (glue, plain JAX)
        qkv = x @ p["qkv_w"] + p["qkv_b"]                      # [B, N, 3D]
        qkv = qkv.reshape(B, N, 3, num_heads, Dh)
        # TODO(synk): feed qkv [B, N, 3, H, Dh] straight into pallas_call with
        # per-head BlockSpec index_maps to avoid this HBM-round-trip transpose.
        qkv = jnp.transpose(qkv, (2, 0, 3, 1, 4))              # [3, B, H, N, Dh]
        q, k, v = qkv[0], qkv[1], qkv[2]                       # [B, H, N, Dh]

        # hot path in Pallas: softmax(q k^T * scale) and attn @ v
        attn, o = attend_pallas(
            q.reshape(B * num_heads, N, Dh),
            k.reshape(B * num_heads, N, Dh),
            v.reshape(B * num_heads, N, Dh),
            scale,
        )
        outputs[f"blocks.{i}.attn.attend"] = attn.reshape(B, num_heads, N, N)

        # finish block so next block's attend sees realistic activations
        o = jnp.transpose(o.reshape(B, num_heads, N, Dh), (0, 2, 1, 3)).reshape(B, N, D)
        x = x + o @ p["proj_w"]                                # residual
    return outputs


def _reference_attend(q, k, scale):
    s = jnp.einsum("bnd,bmd->bnm", q.astype(jnp.float32), k.astype(jnp.float32)) * scale
    return jax.nn.softmax(s, axis=-1)


if __name__ == "__main__":
    # Small demo shapes; N = 128 keeps the dominant attn-map store lane-dense.
    B, N, D, H, depth = 2, 128, 64, 4, 2
    key = jax.random.PRNGKey(0)
    kx, kp = jax.random.split(key)
    x = jax.random.normal(kx, (B, N, D), jnp.float32)
    params = init_params(kp, depth, D, H)

    out = jax.jit(functools.partial(attention_extract_forward, num_heads=H))(x, params)
    out = {name: jax.block_until_ready(a) for name, a in out.items()}

    # sanity check of the first block's attend output vs a pure-JAX reference
    # (tolerance is loose enough for the EUP approximate reciprocal).
    Dh = D // H
    qkv = (x @ params[0]["qkv_w"] + params[0]["qkv_b"]).reshape(B, N, 3, H, Dh)
    qkv = jnp.transpose(qkv, (2, 0, 3, 1, 4))
    q0 = qkv[0].reshape(B * H, N, Dh)
    k0 = qkv[1].reshape(B * H, N, Dh)
    ref = _reference_attend(q0, k0, Dh ** -0.5).reshape(B, H, N, N)
    assert out["blocks.0.attn.attend"].shape == (B, H, N, N)
    assert out["blocks.1.attn.attend"].shape == (B, H, N, N)
    assert jnp.allclose(out["blocks.0.attn.attend"], ref, atol=1e-2, rtol=1e-2)

    print("KERNEL_OK")
</pallas_src>

<mosaic_0001>
module attributes {stable_mosaic.version = 11 : i64} {
  func.func @_attend_kernel(%arg0: i32, %arg1: i32, %arg2: memref<4x128x16xf32, #tpu.memory_space<vmem>>, %arg3: memref<4x128x16xf32, #tpu.memory_space<vmem>>, %arg4: memref<4x128x16xf32, #tpu.memory_space<vmem>>, %arg5: memref<4x128x128xf32, #tpu.memory_space<vmem>>, %arg6: memref<4x128x16xf32, #tpu.memory_space<vmem>>) attributes {dimension_semantics = [#tpu.dimension_semantics<parallel>, #tpu.dimension_semantics<parallel>], iteration_bounds = array<i64: 2, 1>, scalar_prefetch = 0 : i64, scratch_operands = 0 : i64, tpu.core_type = #tpu.core_type<tc>, window_params = [{transform_indices = @transform_0, window_bounds = array<i64: 4, 128, 16>}, {transform_indices = @transform_1, window_bounds = array<i64: 4, 128, 16>}, {transform_indices = @transform_2, window_bounds = array<i64: 4, 128, 16>}, {transform_indices = @transform_3, window_bounds = array<i64: 4, 128, 128>}, {transform_indices = @transform_4, window_bounds = array<i64: 4, 128, 16>}]} {
    %c0 = arith.constant 0 : index
    %c0_0 = arith.constant 0 : index
    %c0_1 = arith.constant 0 : index
    %0 = vector.load %arg2[%c0, %c0_0, %c0_1] : memref<4x128x16xf32, #tpu.memory_space<vmem>>, vector<4x128x16xf32>
    %cst = arith.constant 2.500000e-01 : f32
    %1 = vector.broadcast %cst : f32 to vector<4x128x16xf32>
    %2 = arith.mulf %0, %1 : vector<4x128x16xf32>
    %c0_2 = arith.constant 0 : index
    %c0_3 = arith.constant 0 : index
    %c0_4 = arith.constant 0 : index
    %3 = vector.load %arg3[%c0_2, %c0_3, %c0_4] : memref<4x128x16xf32, #tpu.memory_space<vmem>>, vector<4x128x16xf32>
    %c0_5 = arith.constant 0 : index
    %c0_6 = arith.constant 0 : index
    %c0_7 = arith.constant 0 : index
    %4 = vector.load %arg4[%c0_5, %c0_6, %c0_7] : memref<4x128x16xf32, #tpu.memory_space<vmem>>, vector<4x128x16xf32>
    "tpu.trace_start"() <{level = 10 : i32, message = "gqd,gkd->gqk"}> : () -> ()
    %cst_8 = arith.constant dense<0.000000e+00> : vector<4x128x128xf32>
    %5 = tpu.matmul %2, %3, %cst_8 {dimension_numbers = #tpu.dot_dimension_numbers<[2], [2], [1], [1], [0, 0, 0, 1, 1, 1], [0], [0]>} : vector<4x128x16xf32>, vector<4x128x16xf32>, vector<4x128x128xf32> -> vector<4x128x128xf32>
    "tpu.trace_stop"() : () -> ()
    %cst_9 = arith.constant dense<0xFF800000> : vector<4x128xf32>
    %6 = vector.multi_reduction <maximumf>, %5, %cst_9 [2] : vector<4x128x128xf32> to vector<4x128xf32>
    %7 = vector.shape_cast %6 : vector<4x128xf32> to vector<4x128x1xf32>
    %8 = vector.broadcast %7 : vector<4x128x1xf32> to vector<4x128x128xf32>
    %9 = arith.subf %5, %8 : vector<4x128x128xf32>
    %10 = math.exp %9 : vector<4x128x128xf32>
    %cst_10 = arith.constant dense<0.000000e+00> : vector<4x128xf32>
    %11 = vector.multi_reduction <add>, %10, %cst_10 [2] : vector<4x128x128xf32> to vector<4x128xf32>
    %12 = vector.shape_cast %11 : vector<4x128xf32> to vector<4x128x1xf32>
    %13 = tpu.reciprocal %12 {approx = true} : vector<4x128x1xf32> -> vector<4x128x1xf32>
    %14 = vector.broadcast %13 : vector<4x128x1xf32> to vector<4x128x128xf32>
    %15 = arith.mulf %10, %14 : vector<4x128x128xf32>
    %c0_11 = arith.constant 0 : index
    %c0_12 = arith.constant 0 : index
    %c0_13 = arith.constant 0 : index
    %16 = vector.load %arg5[%c0_11, %c0_12, %c0_13] : memref<4x128x128xf32, #tpu.memory_space<vmem>>, vector<4x128x128xf32>
    tpu.vector_store %arg5[%c0_11, %c0_12, %c0_13], %15 {strides = array<i32>} : memref<4x128x128xf32, #tpu.memory_space<vmem>>, vector<4x128x128xf32>,
    "tpu.trace_start"() <{level = 10 : i32, message = "gqk,gkd->gqd"}> : () -> ()
    %cst_14 = arith.constant dense<0.000000e+00> : vector<4x128x16xf32>
    %17 = tpu.matmul %15, %4, %cst_14 {dimension_numbers = #tpu.dot_dimension_numbers<[2], [1], [1], [2], [0, 0, 0, 1, 1, 2], [0], [0]>} : vector<4x128x128xf32>, vector<4x128x16xf32>, vector<4x128x16xf32> -> vector<4x128x16xf32>
    "tpu.trace_stop"() : () -> ()
    %c0_15 = arith.constant 0 : index
    %c0_16 = arith.constant 0 : index
    %c0_17 = arith.constant 0 : index
    %18 = vector.load %arg6[%c0_15, %c0_16, %c0_17] : memref<4x128x16xf32, #tpu.memory_space<vmem>>, vector<4x128x16xf32>
    tpu.vector_store %arg6[%c0_15, %c0_16, %c0_17], %17 {strides = array<i32>} : memref<4x128x16xf32, #tpu.memory_space<vmem>>, vector<4x128x16xf32>,
    return
  }
  func.func @transform_0(%arg0: i32, %arg1: i32) -> (i32, i32, i32) {
    %c0_i32 = arith.constant 0 : i32
    %c0_i32_0 = arith.constant 0 : i32
    return %arg0, %arg1, %c0_i32 : i32, i32, i32
  }
  func.func @transform_1(%arg0: i32, %arg1: i32) -> (i32, i32, i32) {
    %c0_i32 = arith.constant 0 : i32
    %c0_i32_0 = arith.constant 0 : i32
    %c0_i32_1 = arith.constant 0 : i32
    return %arg0, %c0_i32, %c0_i32_0 : i32, i32, i32
  }
  func.func @transform_2(%arg0: i32, %arg1: i32) -> (i32, i32, i32) {
    %c0_i32 = arith.constant 0 : i32
    %c0_i32_0 = arith.constant 0 : i32
    %c0_i32_1 = arith.constant 0 : i32
    return %arg0, %c0_i32, %c0_i32_0 : i32, i32, i32
  }
  func.func @transform_3(%arg0: i32, %arg1: i32) -> (i32, i32, i32) {
    %c0_i32 = arith.constant 0 : i32
    %c0_i32_0 = arith.constant 0 : i32
    return %arg0, %arg1, %c0_i32 : i32, i32, i32
  }
  func.func @transform_4(%arg0: i32, %arg1: i32) -> (i32, i32, i32) {
    %c0_i32 = arith.constant 0 : i32
    %c0_i32_0 = arith.constant 0 : i32
    return %arg0, %arg1, %c0_i32 : i32, i32, i32
  }
}

module attributes {stable_mosaic.version = 11 : i64} {
  func.func @_attend_kernel(%arg0: i32, %arg1: i32, %arg2: memref<4x128x16xf32, #tpu.memory_space<vmem>>, %arg3: memref<4x128x16xf32, #tpu.memory_space<vmem>>, %arg4: memref<4x128x16xf32, #tpu.memory_space<vmem>>, %arg5: memref<4x128x128xf32, #tpu.memory_space<vmem>>, %arg6: memref<4x128x16xf32, #tpu.memory_space<vmem>>) attributes {dimension_semantics = [#tpu.dimension_semantics<parallel>, #tpu.dimension_semantics<parallel>], iteration_bounds = array<i64: 2, 1>, scalar_prefetch = 0 : i64, scratch_operands = 0 : i64, tpu.core_type = #tpu.core_type<tc>, window_params = [{transform_indices = @transform_0, window_bounds = array<i64: 4, 128, 16>}, {transform_indices = @transform_1, window_bounds = array<i64: 4, 128, 16>}, {transform_indices = @transform_2, window_bounds = array<i64: 4, 128, 16>}, {transform_indices = @transform_3, window_bounds = array<i64: 4, 128, 128>}, {transform_indices = @transform_4, window_bounds = array<i64: 4, 128, 16>}]} {
    %c0 = arith.constant 0 : index
    %c0_0 = arith.constant 0 : index
    %c0_1 = arith.constant 0 : index
    %0 = vector.load %arg2[%c0, %c0_0, %c0_1] : memref<4x128x16xf32, #tpu.memory_space<vmem>>, vector<4x128x16xf32>
    %cst = arith.constant 2.500000e-01 : f32
    %1 = vector.broadcast %cst : f32 to vector<4x128x16xf32>
    %2 = arith.mulf %0, %1 : vector<4x128x16xf32>
    %c0_2 = arith.constant 0 : index
    %c0_3 = arith.constant 0 : index
    %c0_4 = arith.constant 0 : index
    %3 = vector.load %arg3[%c0_2, %c0_3, %c0_4] : memref<4x128x16xf32, #tpu.memory_space<vmem>>, vector<4x128x16xf32>
    %c0_5 = arith.constant 0 : index
    %c0_6 = arith.constant 0 : index
    %c0_7 = arith.constant 0 : index
    %4 = vector.load %arg4[%c0_5, %c0_6, %c0_7] : memref<4x128x16xf32, #tpu.memory_space<vmem>>, vector<4x128x16xf32>
    "tpu.trace_start"() <{level = 10 : i32, message = "gqd,gkd->gqk"}> : () -> ()
    %cst_8 = arith.constant dense<0.000000e+00> : vector<4x128x128xf32>
    %5 = tpu.matmul %2, %3, %cst_8 {dimension_numbers = #tpu.dot_dimension_numbers<[2], [2], [1], [1], [0, 0, 0, 1, 1, 1], [0], [0]>} : vector<4x128x16xf32>, vector<4x128x16xf32>, vector<4x128x128xf32> -> vector<4x128x128xf32>
    "tpu.trace_stop"() : () -> ()
    %cst_9 = arith.constant dense<0xFF800000> : vector<4x128xf32>
    %6 = vector.multi_reduction <maximumf>, %5, %cst_9 [2] : vector<4x128x128xf32> to vector<4x128xf32>
    %7 = vector.shape_cast %6 : vector<4x128xf32> to vector<4x128x1xf32>
    %8 = vector.broadcast %7 : vector<4x128x1xf32> to vector<4x128x128xf32>
    %9 = arith.subf %5, %8 : vector<4x128x128xf32>
    %10 = math.exp %9 : vector<4x128x128xf32>
    %cst_10 = arith.constant dense<0.000000e+00> : vector<4x128xf32>
    %11 = vector.multi_reduction <add>, %10, %cst_10 [2] : vector<4x128x128xf32> to vector<4x128xf32>
    %12 = vector.shape_cast %11 : vector<4x128xf32> to vector<4x128x1xf32>
    %13 = tpu.reciprocal %12 {approx = true} : vector<4x128x1xf32> -> vector<4x128x1xf32>
    %14 = vector.broadcast %13 : vector<4x128x1xf32> to vector<4x128x128xf32>
    %15 = arith.mulf %10, %14 : vector<4x128x128xf32>
    %c0_11 = arith.constant 0 : index
    %c0_12 = arith.constant 0 : index
    %c0_13 = arith.constant 0 : index
    %16 = vector.load %arg5[%c0_11, %c0_12, %c0_13] : memref<4x128x128xf32, #tpu.memory_space<vmem>>, vector<4x128x128xf32>
    tpu.vector_store %arg5[%c0_11, %c0_12, %c0_13], %15 {strides = array<i32>} : memref<4x128x128xf32, #tpu.memory_space<vmem>>, vector<4x128x128xf32>,
    "tpu.trace_start"() <{level = 10 : i32, message = "gqk,gkd->gqd"}> : () -> ()
    %cst_14 = arith.constant dense<0.000000e+00> : vector<4x128x16xf32>
    %17 = tpu.matmul %15, %4, %cst_14 {dimension_numbers = #tpu.dot_dimension_numbers<[2], [1], [1], [2], [0, 0, 0, 1, 1, 2], [0], [0]>} : vector<4x128x128xf32>, vector<4x128x16xf32>, vector<4x128x16xf32> -> vector<4x128x16xf32>
    "tpu.trace_stop"() : () -> ()
    %c0_15 = arith.constant 0 : index
    %c0_16 = arith.constant 0 : index
    %c0_17 = arith.constant 0 : index
    %18 = vector.load %arg6[%c0_15, %c0_16, %c0_17] : memref<4x128x16xf32, #tpu.memory_space<vmem>>, vector<4x128x16xf32>
    tpu.vector_store %arg6[%c0_15, %c0_16, %c0_17], %17 {strides = array<i32>} : memref<4x128x16xf32, #tpu.memory_space<vmem>>, vector<4x128x16xf32>,
    return
  }
  func.func @transform_0(%arg0: i32, %arg1: i32) -> (i32, i32, i32) {
    %c0_i32 = arith.constant 0 : i32
    %c0_i32_0 = arith.constant 0 : i32
    return %arg0, %arg1, %c0_i32 : i32, i32, i32
  }
  func.func @transform_1(%arg0: i32, %arg1: i32) -> (i32, i32, i32) {
    %c0_i32 = arith.constant 0 : i32
    %c0_i32_0 = arith.constant 0 : i32
    %c0_i32_1 = arith.constant 0 : i32
    return %arg0, %c0_i32, %c0_i32_0 : i32, i32, i32
  }
  func.func @transform_2(%arg0: i32, %arg1: i32) -> (i32, i32, i32) {
    %c0_i32 = arith.constant 0 : i32
    %c0_i32_0 = arith.constant 0 : i32
    %c0_i32_1 = arith.constant 0 : i32
    return %arg0, %c0_i32, %c0_i32_0 : i32, i32, i32
  }
  func.func @transform_3(%arg0: i32, %arg1: i32) -> (i32, i32, i32) {
    %c0_i32 = arith.constant 0 : i32
    %c0_i32_0 = arith.constant 0 : i32
    return %arg0, %arg1, %c0_i32 : i32, i32, i32
  }
  func.func @transform_4(%arg0: i32, %arg1: i32) -> (i32, i32, i32) {
    %c0_i32 = arith.constant 0 : i32
    %c0_i32_0 = arith.constant 0 : i32
    return %arg0, %arg1, %c0_i32 : i32, i32, i32
  }
}

</mosaic_0001>

<llo_original>
// kernel: attention_extract_forward.2
$region0: #{attention_extract_forward.2}
  #allocation0 [shape = 'u32[]', space=smem, size = 0x4, offset = 0x4, fixed_abs, tag = 'smem constant byte address 0x4 - core index']
  #allocation1 [shape = 'u32[144,128]{1,0:T(1,128)}', space=vmem, size = 0x12000, scoped, tag = 'internal scratch']
  %s0 = inlined_call_operand.vmem [shape: f32[8,128,16], index: 0, kind: input, shape index: {}]
  %s1 = inlined_call_operand.vmem [shape: f32[8,128,16], index: 1, kind: input, shape index: {}]
  %s2 = inlined_call_operand.vmem [shape: f32[8,128,16], index: 2, kind: input, shape index: {}]
  %s3 = inlined_call_operand.hbm [shape: f32[8,128,128], index: 3, kind: output, shape index: {0}]
  %s4 = inlined_call_operand.vmem [shape: f32[8,128,16], index: 4, kind: output, shape index: {1}]
  %5 = xla_tuple %s3, %s4
  %s6 = sld [smem:[#allocation0]]
  $region53: #{attention_extract_forward.2} parent=0
    _
  %s8 = ssub.s32 1, %s6
  %s9 = scalar_select 0, %s8, %s6
  $region1: #{attention_extract_forward.2} parent=0
    #allocation2 [shape = 'u8[524288]{0}', space=vmem, size = 0x80000, scoped, tag = 'output window, operand 0']
    #allocation3 [shape = 's32[2]{0}', space=sflag, size = 0x8, scoped, tag = 'scoped memory for attention_extract_forward.2']
    %10 = vsyncpa [#allocation3], 0
    %s11 = scalar_lea.sflag [#allocation3], 1
    %12 = vsyncpa %s11, 0
    loop: start=0, step=1, limit=4
    $region2: #{attention_extract_forward.2} parent=1 // loop_pre_header
      _
    $region3: #{attention_extract_forward.2} parent=1 // loop_header
      %s14 = sphi 0, %s18
      %p15 = scmp.ge.s32.totalorder %s14, 4
      %s21 = sphi 0, %s33
      %s22 = sphi 0, %s29
      %s23 = sphi 0, %s21
      %s24 = sphi 0, %s22
      %s25 = sphi 0, %s23
      %s26 = sphi 0, %s24
      %s38 = sphi 0, %s40
      %s41 = sphi 0, %s38
      %s42 = sphi 0, %s41
      %s58 = sphi 0, %s42
      %s64 = sphi 0, %s66
      %s67 = sphi 0, %s64
      %s68 = sphi 0, %s67
      %s84 = sphi 0, %s68
      %s90 = sphi 0, %s92
      %s93 = sphi 0, %s90
      %s94 = sphi 0, %s93
      %s110 = sphi 0, %s94
      %s118 = sphi 0, %s120
      %s121 = sphi 0, %s118
      %s122 = sphi 0, %s121
      %s138 = sphi 0, %s122
      %s146 = sphi 0, %s148
      %s149 = sphi 0, %s146
      %s150 = sphi 0, %s149
      %s166 = sphi 0, %s150
    $region4: #{attention_extract_forward.2} parent=1 // loop_header_branch
      %17 = sbr.rel (%p15) target = $region8
    $region5: #{attention_extract_forward.2} parent=1 // loop_body
      %s19 = ssub.s32 %s14, 1
      %s20 = ssub.s32 %s14, 2
      %s27 = sadd.s32 1, %s22
      %p28 = scmp.ge.s32.totalorder %s27, 1
      %s29 = scalar_select %p28, 0, %s27
      %s30 = sadd.s32 1, %s21
      %s31 = scalar_select %p28, %s30, %s21
      %p32 = scmp.ge.s32.totalorder %s31, 2
      %s33 = scalar_select %p32, 0, %s31
      %s34 = ssub.s32 %s21, %s33
      %s35 = ssub.s32 %s22, %s29
      %s36 = sor.u32 %s34, %s35
      %p37 = scmp.eq.s32.totalorder %s36, 0
      %s39 = sadd.s32 %s38, 1
      %s40 = scalar_select %p37, %s38, %s39
      %p43 = pneg %p37
      %p44 = scmp.eq.s32.totalorder %s14, 1
      %p45 = por %p43, %p44
      %p46 = scmp.ne.s32.totalorder %s38, %s41
      %p47 = scmp.eq.s32.totalorder %s14, 0
      %p48 = por %p46, %p47
      %p49 = scmp.ne.s32.totalorder %s38, %s41
      %p50 = scmp.eq.s32.totalorder %s19, 1
      %p51 = por %p49, %p50
      %p52 = scmp.ne.s32.totalorder %s41, %s42
      %p53 = scmp.eq.s32.totalorder %s19, 0
      %p54 = por %p52, %p53
      %p55 = scmp.ne.s32.totalorder %s41, %s42
      %p56 = scmp.eq.s32.totalorder %s20, 1
      %p57 = por %p55, %p56
      %p59 = scmp.ne.s32.totalorder %s42, %s58
      %p60 = scmp.eq.s32.totalorder %s20, 0
      %p61 = por %p59, %p60
      %s62 = ssub.s32 %s21, %s33
      %p63 = scmp.eq.s32.totalorder %s62, 0
      %s65 = sadd.s32 %s64, 1
      %s66 = scalar_select %p63, %s64, %s65
      %p69 = pneg %p63
      %p70 = scmp.eq.s32.totalorder %s14, 1
      %p71 = por %p69, %p70
      %p72 = scmp.ne.s32.totalorder %s64, %s67
      %p73 = scmp.eq.s32.totalorder %s14, 0
      %p74 = por %p72, %p73
      %p75 = scmp.ne.s32.totalorder %s64, %s67
      %p76 = scmp.eq.s32.totalorder %s19, 1
      %p77 = por %p75, %p76
      %p78 = scmp.ne.s32.totalorder %s67, %s68
      %p79 = scmp.eq.s32.totalorder %s19, 0
      %p80 = por %p78, %p79
      %p81 = scmp.ne.s32.totalorder %s67, %s68
      %p82 = scmp.eq.s32.totalorder %s20, 1
      %p83 = por %p81, %p82
      %p85 = scmp.ne.s32.totalorder %s68, %s84
      %p86 = scmp.eq.s32.totalorder %s20, 0
      %p87 = por %p85, %p86
      %s88 = ssub.s32 %s21, %s33
      %p89 = scmp.eq.s32.totalorder %s88, 0
      %s91 = sadd.s32 %s90, 1
      %s92 = scalar_select %p89, %s90, %s91
      %p95 = pneg %p89
      %p96 = scmp.eq.s32.totalorder %s14, 1
      %p97 = por %p95, %p96
      %p98 = scmp.ne.s32.totalorder %s90, %s93
      %p99 = scmp.eq.s32.totalorder %s14, 0
      %p100 = por %p98, %p99
      %p101 = scmp.ne.s32.totalorder %s90, %s93
      %p102 = scmp.eq.s32.totalorder %s19, 1
      %p103 = por %p101, %p102
      %p104 = scmp.ne.s32.totalorder %s93, %s94
      %p105 = scmp.eq.s32.totalorder %s19, 0
      %p106 = por %p104, %p105
      %p107 = scmp.ne.s32.totalorder %s93, %s94
      %p108 = scmp.eq.s32.totalorder %s20, 1
      %p109 = por %p107, %p108
      %p111 = scmp.ne.s32.totalorder %s94, %s110
      %p112 = scmp.eq.s32.totalorder %s20, 0
      %p113 = por %p111, %p112
      %s114 = ssub.s32 %s21, %s33
      %s115 = ssub.s32 %s22, %s29
      %s116 = sor.u32 %s114, %s115
      %p117 = scmp.eq.s32.totalorder %s116, 0
      %s119 = sadd.s32 %s118, 1
      %s120 = scalar_select %p117, %s118, %s119
      %p123 = pneg %p117
      %p124 = scmp.eq.s32.totalorder %s14, 1
      %p125 = por %p123, %p124
      %p126 = scmp.ne.s32.totalorder %s118, %s121
      %p127 = scmp.eq.s32.totalorder %s14, 0
      %p128 = por %p126, %p127
      %p129 = scmp.ne.s32.totalorder %s118, %s121
      %p130 = scmp.eq.s32.totalorder %s19, 1
      %p131 = por %p129, %p130
      %p132 = scmp.ne.s32.totalorder %s121, %s122
      %p133 = scmp.eq.s32.totalorder %s19, 0
      %p134 = por %p132, %p133
      %p135 = scmp.ne.s32.totalorder %s121, %s122
      %p136 = scmp.eq.s32.totalorder %s20, 1
      %p137 = por %p135, %p136
      %p139 = scmp.ne.s32.totalorder %s122, %s138
      %p140 = scmp.eq.s32.totalorder %s20, 0
      %p141 = por %p139, %p140
      %s142 = ssub.s32 %s21, %s33
      %s143 = ssub.s32 %s22, %s29
      %s144 = sor.u32 %s142, %s143
      %p145 = scmp.eq.s32.totalorder %s144, 0
      %s147 = sadd.s32 %s146, 1
      %s148 = scalar_select %p145, %s146, %s147
      %p151 = pneg %p145
      %p152 = scmp.eq.s32.totalorder %s14, 1
      %p153 = por %p151, %p152
      %p154 = scmp.ne.s32.totalorder %s146, %s149
      %p155 = scmp.eq.s32.totalorder %s14, 0
      %p156 = por %p154, %p155
      %p157 = scmp.ne.s32.totalorder %s146, %s149
      %p158 = scmp.eq.s32.totalorder %s19, 1
      %p159 = por %p157, %p158
      %p160 = scmp.ne.s32.totalorder %s149, %s150
      %p161 = scmp.eq.s32.totalorder %s19, 0
      %p162 = por %p160, %p161
      %p163 = scmp.ne.s32.totalorder %s149, %s150
      %p164 = scmp.eq.s32.totalorder %s20, 1
      %p165 = por %p163, %p164
      %p167 = scmp.ne.s32.totalorder %s150, %s166
      %p168 = scmp.eq.s32.totalorder %s20, 0
      %p169 = por %p167, %p168
      %p170 = scmp.le.s32.totalorder 1, %s14
      %p171 = scmp.lt.s32.totalorder %s14, 3
      %p172 = pnand %p170, %p171
      %p173 = pneg %p172
      // Predicated region
      $region9: #{attention_extract_forward.2} parent=5 // pred_check
        _
      $region10: #{attention_extract_forward.2} parent=5 // pred_check_branch
        %175 = sbr.rel (%p172) target = $region12
      $region11: #{attention_extract_forward.2} parent=5 // pred_region
        %s176 = ssub.s32 %s14, 1
      $region12: #{attention_extract_forward.2} parent=5 // pred_fallthru
        _
      %p177 = scmp.lt.s32.totalorder %s14, 2
      // Predicated region
      $region13: #{attention_extract_forward.2} parent=5 // pred_check
        %p178 = pneg %p177
      $region14: #{attention_extract_forward.2} parent=5 // pred_check_branch
        %180 = sbr.rel (%p178) target = $region16
      $region15: #{attention_extract_forward.2} parent=5 // pred_region
        // Predicated region
        $region17: #{attention_extract_forward.2} parent=15 // pred_check
          %p181 = pneg %p48
        $region18: #{attention_extract_forward.2} parent=15 // pred_check_branch
          %183 = sbr.rel (%p181) target = $region20
        $region19: #{attention_extract_forward.2} parent=15 // pred_region
          %s184 = smul.u32 4, %s21
          %s185 = smul.u32 16, %s22
          %p186 = scmp.lt.s32.totalorder %s184, 7
          %s187 = scalar_select %p186, %s184, 7
          %p188 = scmp.lt.s32.totalorder %s185, 15
          %s189 = scalar_select %p188, %s185, 15
          %s190 = smul.addr %s187, 16
          %s191 = sadd.s32 %s189, %s190
          %s192 = smul.addr %s191, 8
          %s193 = scalar_lea.vmem %s0, %s192
          %s194 = smul.u32 4, %s21
          %s195 = smul.u32 16, %s22
        $region20: #{attention_extract_forward.2} parent=15 // pred_fallthru
          _
        // Predicated region
        $region21: #{attention_extract_forward.2} parent=15 // pred_check
          %p196 = pneg %p74
        $region22: #{attention_extract_forward.2} parent=15 // pred_check_branch
          %198 = sbr.rel (%p196) target = $region24
        $region23: #{attention_extract_forward.2} parent=15 // pred_region
          %s199 = smul.u32 4, %s21
          %p200 = scmp.lt.s32.totalorder %s199, 7
          %s201 = scalar_select %p200, %s199, 7
          %s202 = smul.addr %s201, 16
          %s203 = smul.addr %s202, 8
          %s204 = scalar_lea.vmem %s1, %s203
          %s205 = smul.u32 4, %s21
        $region24: #{attention_extract_forward.2} parent=15 // pred_fallthru
          _
        // Predicated region
        $region25: #{attention_extract_forward.2} parent=15 // pred_check
          %p206 = pneg %p100
        $region26: #{attention_extract_forward.2} parent=15 // pred_check_branch
          %208 = sbr.rel (%p206) target = $region28
        $region27: #{attention_extract_forward.2} parent=15 // pred_region
          %s209 = smul.u32 4, %s21
          %p210 = scmp.lt.s32.totalorder %s209, 7
          %s211 = scalar_select %p210, %s209, 7
          %s212 = smul.addr %s211, 16
          %s213 = smul.addr %s212, 8
          %s214 = scalar_lea.vmem %s2, %s213
          %s215 = smul.u32 4, %s21
        $region28: #{attention_extract_forward.2} parent=15 // pred_fallthru
          _
      $region16: #{attention_extract_forward.2} parent=5 // pred_fallthru
        _
      %p216 = scmp.le.s32.totalorder 1, %s14
      %p217 = scmp.lt.s32.totalorder %s14, 3
      %p218 = pnand %p216, %p217
      %p219 = pneg %p218
      // Predicated region
      $region29: #{attention_extract_forward.2} parent=5 // pred_check
        _
      $region30: #{attention_extract_forward.2} parent=5 // pred_check_branch
        %221 = sbr.rel (%p218) target = $region32
      $region31: #{attention_extract_forward.2} parent=5 // pred_region
        %s222 = ssub.s32 %s14, 1
        %s223 = smul.u32 4, %s23
        %s224 = smul.u32 16, %s24
        %p225 = scmp.lt.s32.totalorder %s223, 7
        %s226 = scalar_select %p225, %s223, 7
        %p227 = scmp.lt.s32.totalorder %s224, 15
        %s228 = scalar_select %p227, %s224, 15
        %s229 = smul.addr %s226, 16
        %s230 = sadd.s32 %s228, %s229
        %s231 = smul.addr %s230, 8
        %s232 = scalar_lea.vmem %s0, %s231
        %p233 = pneg %p54
        %p234 = pneg %p51
        %s235 = smul.u32 4, %s23
        %p236 = scmp.lt.s32.totalorder %s235, 7
        %s237 = scalar_select %p236, %s235, 7
        %s238 = smul.addr %s237, 16
        %s239 = smul.addr %s238, 8
        %s240 = scalar_lea.vmem %s1, %s239
        %p241 = pneg %p80
        %p242 = pneg %p77
        %s243 = smul.u32 4, %s23
        %p244 = scmp.lt.s32.totalorder %s243, 7
        %s245 = scalar_select %p244, %s243, 7
        %s246 = smul.addr %s245, 16
        %s247 = smul.addr %s246, 8
        %s248 = scalar_lea.vmem %s2, %s247
        %p249 = pneg %p106
        %p250 = pneg %p103
        %p251 = pneg %p134
        %p252 = pneg %p131
        %s253 = sand.u32 %s121, 1
        %s254 = scalar_lea.sflag [#allocation3], %s253
        %s255 = sand.u32 %s121, 1
        %s256 = smul.addr %s255, 512
        %s257 = scalar_lea.vmem [#allocation2], %s256
        %p258 = pneg %p162
        %p259 = pneg %p159
        %s260 = smul.u32 4, %s23
        %s261 = smul.u32 16, %s24
        %p262 = scmp.lt.s32.totalorder %s260, 7
        %s263 = scalar_select %p262, %s260, 7
        %p264 = scmp.lt.s32.totalorder %s261, 15
        %s265 = scalar_select %p264, %s261, 15
        %s266 = smul.addr %s263, 16
        %s267 = sadd.s32 %s265, %s266
        %s268 = smul.addr %s267, 8
        %s269 = scalar_lea.vmem %s4, %s268
        %s270 = smul.u32 4, %s23
        %s271 = smul.u32 16, %s24
        %p272 = scmp.lt.s32.totalorder %s270, 7
        %s273 = scalar_select %p272, %s270, 7
        %p274 = scmp.lt.s32.totalorder %s271, 15
        %s275 = scalar_select %p274, %s271, 15
        %s276 = smul.addr %s273, 16
        %s277 = sadd.s32 %s275, %s276
        %s278 = smul.addr %s277, 8
        %s279 = scalar_lea.vmem %s0, %s278
        %s280 = smul.u32 4, %s23
        %s281 = smul.u32 16, %s24
        %s282 = smul.u32 4, %s23
        %p283 = scmp.lt.s32.totalorder %s282, 7
        %s284 = scalar_select %p283, %s282, 7
        %s285 = smul.addr %s284, 16
        %s286 = smul.addr %s285, 8
        %s287 = scalar_lea.vmem %s1, %s286
        %s288 = smul.u32 4, %s23
        %s289 = smul.u32 4, %s23
        %p290 = scmp.lt.s32.totalorder %s289, 7
        %s291 = scalar_select %p290, %s289, 7
        %s292 = smul.addr %s291, 16
        %s293 = smul.addr %s292, 8
        %s294 = scalar_lea.vmem %s2, %s293
        %s295 = smul.u32 4, %s23
        %s296 = smul.u32 4, %s23
        %s297 = smul.u32 16, %s24
        %s298 = smul.u32 4, %s23
        %s299 = smul.u32 16, %s24
        %p300 = scmp.lt.s32.totalorder %s298, 7
        %s301 = scalar_select %p300, %s298, 7
        %p302 = scmp.lt.s32.totalorder %s299, 15
        %s303 = scalar_select %p302, %s299, 15
        %s304 = smul.addr %s301, 16
        %s305 = sadd.s32 %s303, %s304
        %s306 = smul.addr %s305, 8
        %s307 = scalar_lea.vmem %s4, %s306
        %s308 = smul.u32 4, %s23
        %s309 = smul.u32 16, %s24
        %v310 = vld [vmem:[%s279] sm:$0xff]
        %v311 = vld [vmem:[%s279 + $0x8] sm:$0xff]
        %v312 = vld [vmem:[%s279 + $0x10] sm:$0xff]
        %v313 = vld [vmem:[%s279 + $0x18] sm:$0xff]
        %v314 = vld [vmem:[%s279 + $0x20] sm:$0xff]
        %v315 = vld [vmem:[%s279 + $0x28] sm:$0xff]
        %v316 = vld [vmem:[%s279 + $0x30] sm:$0xff]
        %v317 = vld [vmem:[%s279 + $0x38] sm:$0xff]
        %v318 = vld [vmem:[%s279 + $0x40] sm:$0xff]
        %v319 = vld [vmem:[%s279 + $0x48] sm:$0xff]
        %v320 = vld [vmem:[%s279 + $0x50] sm:$0xff]
        %v321 = vld [vmem:[%s279 + $0x58] sm:$0xff]
        %v322 = vld [vmem:[%s279 + $0x60] sm:$0xff]
        %v323 = vld [vmem:[%s279 + $0x68] sm:$0xff]
        %v324 = vld [vmem:[%s279 + $0x70] sm:$0xff]
        %v325 = vld [vmem:[%s279 + $0x78] sm:$0xff]
        %v326 = vld [vmem:[%s279 + $0x80] sm:$0xff]
        %v327 = vld [vmem:[%s279 + $0x88] sm:$0xff]
        %v328 = vld [vmem:[%s279 + $0x90] sm:$0xff]
        %v329 = vld [vmem:[%s279 + $0x98] sm:$0xff]
        %v330 = vld [vmem:[%s279 + $0xa0] sm:$0xff]
        %v331 = vld [vmem:[%s279 + $0xa8] sm:$0xff]
        %v332 = vld [vmem:[%s279 + $0xb0] sm:$0xff]
        %v333 = vld [vmem:[%s279 + $0xb8] sm:$0xff]
        %v334 = vld [vmem:[%s279 + $0xc0] sm:$0xff]
        %v335 = vld [vmem:[%s279 + $0xc8] sm:$0xff]
        %v336 = vld [vmem:[%s279 + $0xd0] sm:$0xff]
        %v337 = vld [vmem:[%s279 + $0xd8] sm:$0xff]
        %v338 = vld [vmem:[%s279 + $0xe0] sm:$0xff]
        %v339 = vld [vmem:[%s279 + $0xe8] sm:$0xff]
        %v340 = vld [vmem:[%s279 + $0xf0] sm:$0xff]
        %v341 = vld [vmem:[%s279 + $0xf8] sm:$0xff]
        %v342 = vld [vmem:[%s279 + $0x100] sm:$0xff]
        %v343 = vld [vmem:[%s279 + $0x108] sm:$0xff]
        %v344 = vld [vmem:[%s279 + $0x110] sm:$0xff]
        %v345 = vld [vmem:[%s279 + $0x118] sm:$0xff]
        %v346 = vld [vmem:[%s279 + $0x120] sm:$0xff]
        %v347 = vld [vmem:[%s279 + $0x128] sm:$0xff]
        %v348 = vld [vmem:[%s279 + $0x130] sm:$0xff]
        %v349 = vld [vmem:[%s279 + $0x138] sm:$0xff]
        %v350 = vld [vmem:[%s279 + $0x140] sm:$0xff]
        %v351 = vld [vmem:[%s279 + $0x148] sm:$0xff]
        %v352 = vld [vmem:[%s279 + $0x150] sm:$0xff]
        %v353 = vld [vmem:[%s279 + $0x158] sm:$0xff]
        %v354 = vld [vmem:[%s279 + $0x160] sm:$0xff]
        %v355 = vld [vmem:[%s279 + $0x168] sm:$0xff]
        %v356 = vld [vmem:[%s279 + $0x170] sm:$0xff]
        %v357 = vld [vmem:[%s279 + $0x178] sm:$0xff]
        %v358 = vld [vmem:[%s279 + $0x180] sm:$0xff]
        %v359 = vld [vmem:[%s279 + $0x188] sm:$0xff]
        %v360 = vld [vmem:[%s279 + $0x190] sm:$0xff]
        %v361 = vld [vmem:[%s279 + $0x198] sm:$0xff]
        %v362 = vld [vmem:[%s279 + $0x1a0] sm:$0xff]
        %v363 = vld [vmem:[%s279 + $0x1a8] sm:$0xff]
        %v364 = vld [vmem:[%s279 + $0x1b0] sm:$0xff]
        %v365 = vld [vmem:[%s279 + $0x1b8] sm:$0xff]
        %v366 = vld [vmem:[%s279 + $0x1c0] sm:$0xff]
        %v367 = vld [vmem:[%s279 + $0x1c8] sm:$0xff]
        %v368 = vld [vmem:[%s279 + $0x1d0] sm:$0xff]
        %v369 = vld [vmem:[%s279 + $0x1d8] sm:$0xff]
        %v370 = vld [vmem:[%s279 + $0x1e0] sm:$0xff]
        %v371 = vld [vmem:[%s279 + $0x1e8] sm:$0xff]
        %v372 = vld [vmem:[%s279 + $0x1f0] sm:$0xff]
        %v373 = vld [vmem:[%s279 + $0x1f8] sm:$0xff]
        %v374 = vmul.f32 %v310, 0.25
        %v375 = vmul.f32 %v311, 0.25
        %v376 = vmul.f32 %v312, 0.25
        %v377 = vmul.f32 %v313, 0.25
        %v378 = vmul.f32 %v314, 0.25
        %v379 = vmul.f32 %v315, 0.25
        %v380 = vmul.f32 %v316, 0.25
        %v381 = vmul.f32 %v317, 0.25
        %v382 = vmul.f32 %v318, 0.25
        %v383 = vmul.f32 %v319, 0.25
        %v384 = vmul.f32 %v320, 0.25
        %v385 = vmul.f32 %v321, 0.25
        %v386 = vmul.f32 %v322, 0.25
        %v387 = vmul.f32 %v323, 0.25
        %v388 = vmul.f32 %v324, 0.25
        %v389 = vmul.f32 %v325, 0.25
        %v390 = vmul.f32 %v326, 0.25
        %v391 = vmul.f32 %v327, 0.25
        %v392 = vmul.f32 %v328, 0.25
        %v393 = vmul.f32 %v329, 0.25
        %v394 = vmul.f32 %v330, 0.25
        %v395 = vmul.f32 %v331, 0.25
        %v396 = vmul.f32 %v332, 0.25
        %v397 = vmul.f32 %v333, 0.25
        %v398 = vmul.f32 %v334, 0.25
        %v399 = vmul.f32 %v335, 0.25
        %v400 = vmul.f32 %v336, 0.25
        %v401 = vmul.f32 %v337, 0.25
        %v402 = vmul.f32 %v338, 0.25
        %v403 = vmul.f32 %v339, 0.25
        %v404 = vmul.f32 %v340, 0.25
        %v405 = vmul.f32 %v341, 0.25
        %v406 = vmul.f32 %v342, 0.25
        %v407 = vmul.f32 %v343, 0.25
        %v408 = vmul.f32 %v344, 0.25
        %v409 = vmul.f32 %v345, 0.25
        %v410 = vmul.f32 %v346, 0.25
        %v411 = vmul.f32 %v347, 0.25
        %v412 = vmul.f32 %v348, 0.25
        %v413 = vmul.f32 %v349, 0.25
        %v414 = vmul.f32 %v350, 0.25
        %v415 = vmul.f32 %v351, 0.25
        %v416 = vmul.f32 %v352, 0.25
        %v417 = vmul.f32 %v353, 0.25
        %v418 = vmul.f32 %v354, 0.25
        %v419 = vmul.f32 %v355, 0.25
        %v420 = vmul.f32 %v356, 0.25
        %v421 = vmul.f32 %v357, 0.25
        %v422 = vmul.f32 %v358, 0.25
        %v423 = vmul.f32 %v359, 0.25
        %v424 = vmul.f32 %v360, 0.25
        %v425 = vmul.f32 %v361, 0.25
        %v426 = vmul.f32 %v362, 0.25
        %v427 = vmul.f32 %v363, 0.25
        %v428 = vmul.f32 %v364, 0.25
        %v429 = vmul.f32 %v365, 0.25
        %v430 = vmul.f32 %v366, 0.25
        %v431 = vmul.f32 %v367, 0.25
        %v432 = vmul.f32 %v368, 0.25
        %v433 = vmul.f32 %v369, 0.25
        %v434 = vmul.f32 %v370, 0.25
        %v435 = vmul.f32 %v371, 0.25
        %v436 = vmul.f32 %v372, 0.25
        %v437 = vmul.f32 %v373, 0.25
        %v438 = vld [vmem:[%s287] sm:$0xff]
        %v439 = vld [vmem:[%s287 + $0x8] sm:$0xff]
        %v440 = vld [vmem:[%s287 + $0x10] sm:$0xff]
        %v441 = vld [vmem:[%s287 + $0x18] sm:$0xff]
        %v442 = vld [vmem:[%s287 + $0x20] sm:$0xff]
        %v443 = vld [vmem:[%s287 + $0x28] sm:$0xff]
        %v444 = vld [vmem:[%s287 + $0x30] sm:$0xff]
        %v445 = vld [vmem:[%s287 + $0x38] sm:$0xff]
        %v446 = vld [vmem:[%s287 + $0x40] sm:$0xff]
        %v447 = vld [vmem:[%s287 + $0x48] sm:$0xff]
        %v448 = vld [vmem:[%s287 + $0x50] sm:$0xff]
        %v449 = vld [vmem:[%s287 + $0x58] sm:$0xff]
        %v450 = vld [vmem:[%s287 + $0x60] sm:$0xff]
        %v451 = vld [vmem:[%s287 + $0x68] sm:$0xff]
        %v452 = vld [vmem:[%s287 + $0x70] sm:$0xff]
        %v453 = vld [vmem:[%s287 + $0x78] sm:$0xff]
        %v454 = vld [vmem:[%s287 + $0x80] sm:$0xff]
        %v455 = vld [vmem:[%s287 + $0x88] sm:$0xff]
        %v456 = vld [vmem:[%s287 + $0x90] sm:$0xff]
        %v457 = vld [vmem:[%s287 + $0x98] sm:$0xff]
        %v458 = vld [vmem:[%s287 + $0xa0] sm:$0xff]
        %v459 = vld [vmem:[%s287 + $0xa8] sm:$0xff]
        %v460 = vld [vmem:[%s287 + $0xb0] sm:$0xff]
        %v461 = vld [vmem:[%s287 + $0xb8] sm:$0xff]
        %v462 = vld [vmem:[%s287 + $0xc0] sm:$0xff]
        %v463 = vld [vmem:[%s287 + $0xc8] sm:$0xff]
        %v464 = vld [vmem:[%s287 + $0xd0] sm:$0xff]
        %v465 = vld [vmem:[%s287 + $0xd8] sm:$0xff]
        %v466 = vld [vmem:[%s287 + $0xe0] sm:$0xff]
        %v467 = vld [vmem:[%s287 + $0xe8] sm:$0xff]
        %v468 = vld [vmem:[%s287 + $0xf0] sm:$0xff]
        %v469 = vld [vmem:[%s287 + $0xf8] sm:$0xff]
        %v470 = vld [vmem:[%s287 + $0x100] sm:$0xff]
        %v471 = vld [vmem:[%s287 + $0x108] sm:$0xff]
        %v472 = vld [vmem:[%s287 + $0x110] sm:$0xff]
        %v473 = vld [vmem:[%s287 + $0x118] sm:$0xff]
        %v474 = vld [vmem:[%s287 + $0x120] sm:$0xff]
        %v475 = vld [vmem:[%s287 + $0x128] sm:$0xff]
        %v476 = vld [vmem:[%s287 + $0x130] sm:$0xff]
        %v477 = vld [vmem:[%s287 + $0x138] sm:$0xff]
        %v478 = vld [vmem:[%s287 + $0x140] sm:$0xff]
        %v479 = vld [vmem:[%s287 + $0x148] sm:$0xff]
        %v480 = vld [vmem:[%s287 + $0x150] sm:$0xff]
        %v481 = vld [vmem:[%s287 + $0x158] sm:$0xff]
        %v482 = vld [vmem:[%s287 + $0x160] sm:$0xff]
        %v483 = vld [vmem:[%s287 + $0x168] sm:$0xff]
        %v484 = vld [vmem:[%s287 + $0x170] sm:$0xff]
        %v485 = vld [vmem:[%s287 + $0x178] sm:$0xff]
        %v486 = vld [vmem:[%s287 + $0x180] sm:$0xff]
        %v487 = vld [vmem:[%s287 + $0x188] sm:$0xff]
        %v488 = vld [vmem:[%s287 + $0x190] sm:$0xff]
        %v489 = vld [vmem:[%s287 + $0x198] sm:$0xff]
        %v490 = vld [vmem:[%s287 + $0x1a0] sm:$0xff]
        %v491 = vld [vmem:[%s287 + $0x1a8] sm:$0xff]
        %v492 = vld [vmem:[%s287 + $0x1b0] sm:$0xff]
        %v493 = vld [vmem:[%s287 + $0x1b8] sm:$0xff]
        %v494 = vld [vmem:[%s287 + $0x1c0] sm:$0xff]
        %v495 = vld [vmem:[%s287 + $0x1c8] sm:$0xff]
        %v496 = vld [vmem:[%s287 + $0x1d0] sm:$0xff]
        %v497 = vld [vmem:[%s287 + $0x1d8] sm:$0xff]
        %v498 = vld [vmem:[%s287 + $0x1e0] sm:$0xff]
        %v499 = vld [vmem:[%s287 + $0x1e8] sm:$0xff]
        %v500 = vld [vmem:[%s287 + $0x1f0] sm:$0xff]
        %v501 = vld [vmem:[%s287 + $0x1f8] sm:$0xff]
        %v502 = vld [vmem:[%s294] sm:$0xff]
        %v503 = vld [vmem:[%s294 + $0x8] sm:$0xff]
        %v504 = vld [vmem:[%s294 + $0x10] sm:$0xff]
        %v505 = vld [vmem:[%s294 + $0x18] sm:$0xff]
        %v506 = vld [vmem:[%s294 + $0x20] sm:$0xff]
        %v507 = vld [vmem:[%s294 + $0x28] sm:$0xff]
        %v508 = vld [vmem:[%s294 + $0x30] sm:$0xff]
        %v509 = vld [vmem:[%s294 + $0x38] sm:$0xff]
        %v510 = vld [vmem:[%s294 + $0x40] sm:$0xff]
        %v511 = vld [vmem:[%s294 + $0x48] sm:$0xff]
        %v512 = vld [vmem:[%s294 + $0x50] sm:$0xff]
        %v513 = vld [vmem:[%s294 + $0x58] sm:$0xff]
        %v514 = vld [vmem:[%s294 + $0x60] sm:$0xff]
        %v515 = vld [vmem:[%s294 + $0x68] sm:$0xff]
        %v516 = vld [vmem:[%s294 + $0x70] sm:$0xff]
        %v517 = vld [vmem:[%s294 + $0x78] sm:$0xff]
        %v518 = vld [vmem:[%s294 + $0x80] sm:$0xff]
        %v519 = vld [vmem:[%s294 + $0x88] sm:$0xff]
        %v520 = vld [vmem:[%s294 + $0x90] sm:$0xff]
        %v521 = vld [vmem:[%s294 + $0x98] sm:$0xff]
        %v522 = vld [vmem:[%s294 + $0xa0] sm:$0xff]
        %v523 = vld [vmem:[%s294 + $0xa8] sm:$0xff]
        %v524 = vld [vmem:[%s294 + $0xb0] sm:$0xff]
        %v525 = vld [vmem:[%s294 + $0xb8] sm:$0xff]
        %v526 = vld [vmem:[%s294 + $0xc0] sm:$0xff]
        %v527 = vld [vmem:[%s294 + $0xc8] sm:$0xff]
        %v528 = vld [vmem:[%s294 + $0xd0] sm:$0xff]
        %v529 = vld [vmem:[%s294 + $0xd8] sm:$0xff]
        %v530 = vld [vmem:[%s294 + $0xe0] sm:$0xff]
        %v531 = vld [vmem:[%s294 + $0xe8] sm:$0xff]
        %v532 = vld [vmem:[%s294 + $0xf0] sm:$0xff]
        %v533 = vld [vmem:[%s294 + $0xf8] sm:$0xff]
        %v534 = vld [vmem:[%s294 + $0x100] sm:$0xff]
        %v535 = vld [vmem:[%s294 + $0x108] sm:$0xff]
        %v536 = vld [vmem:[%s294 + $0x110] sm:$0xff]
        %v537 = vld [vmem:[%s294 + $0x118] sm:$0xff]
        %v538 = vld [vmem:[%s294 + $0x120] sm:$0xff]
        %v539 = vld [vmem:[%s294 + $0x128] sm:$0xff]
        %v540 = vld [vmem:[%s294 + $0x130] sm:$0xff]
        %v541 = vld [vmem:[%s294 + $0x138] sm:$0xff]
        %v542 = vld [vmem:[%s294 + $0x140] sm:$0xff]
        %v543 = vld [vmem:[%s294 + $0x148] sm:$0xff]
        %v544 = vld [vmem:[%s294 + $0x150] sm:$0xff]
        %v545 = vld [vmem:[%s294 + $0x158] sm:$0xff]
        %v546 = vld [vmem:[%s294 + $0x160] sm:$0xff]
        %v547 = vld [vmem:[%s294 + $0x168] sm:$0xff]
        %v548 = vld [vmem:[%s294 + $0x170] sm:$0xff]
        %v549 = vld [vmem:[%s294 + $0x178] sm:$0xff]
        %v550 = vld [vmem:[%s294 + $0x180] sm:$0xff]
        %v551 = vld [vmem:[%s294 + $0x188] sm:$0xff]
        %v552 = vld [vmem:[%s294 + $0x190] sm:$0xff]
        %v553 = vld [vmem:[%s294 + $0x198] sm:$0xff]
        %v554 = vld [vmem:[%s294 + $0x1a0] sm:$0xff]
        %v555 = vld [vmem:[%s294 + $0x1a8] sm:$0xff]
        %v556 = vld [vmem:[%s294 + $0x1b0] sm:$0xff]
        %v557 = vld [vmem:[%s294 + $0x1b8] sm:$0xff]
        %v558 = vld [vmem:[%s294 + $0x1c0] sm:$0xff]
        %v559 = vld [vmem:[%s294 + $0x1c8] sm:$0xff]
        %v560 = vld [vmem:[%s294 + $0x1d0] sm:$0xff]
        %v561 = vld [vmem:[%s294 + $0x1d8] sm:$0xff]
        %v562 = vld [vmem:[%s294 + $0x1e0] sm:$0xff]
        %v563 = vld [vmem:[%s294 + $0x1e8] sm:$0xff]
        %v564 = vld [vmem:[%s294 + $0x1f0] sm:$0xff]
        %v565 = vld [vmem:[%s294 + $0x1f8] sm:$0xff]
        %vm566 = vcmask 130048
        %v568 = vsel %vm566, %v374, 0
        %v571 = vsel %vm566, %v375, 0
        %v574 = vsel %vm566, %v376, 0
        %v577 = vsel %vm566, %v377, 0
        %v580 = vsel %vm566, %v378, 0
        %v583 = vsel %vm566, %v379, 0
        %v586 = vsel %vm566, %v380, 0
        %v589 = vsel %vm566, %v381, 0
        %v592 = vsel %vm566, %v382, 0
        %v595 = vsel %vm566, %v383, 0
        %v598 = vsel %vm566, %v384, 0
        %v601 = vsel %vm566, %v385, 0
        %v604 = vsel %vm566, %v386, 0
        %v607 = vsel %vm566, %v387, 0
        %v610 = vsel %vm566, %v388, 0
        %v613 = vsel %vm566, %v389, 0
        %v616 = vsel %vm566, %v438, 0
        %v619 = vsel %vm566, %v439, 0
        %v622 = vsel %vm566, %v440, 0
        %v625 = vsel %vm566, %v441, 0
        %v628 = vsel %vm566, %v442, 0
        %v631 = vsel %vm566, %v443, 0
        %v634 = vsel %vm566, %v444, 0
        %v637 = vsel %vm566, %v445, 0
        %v640 = vsel %vm566, %v446, 0
        %v643 = vsel %vm566, %v447, 0
        %v646 = vsel %vm566, %v448, 0
        %v649 = vsel %vm566, %v449, 0
        %v652 = vsel %vm566, %v450, 0
        %v655 = vsel %vm566, %v451, 0
        %v658 = vsel %vm566, %v452, 0
        %v661 = vsel %vm566, %v453, 0
        %663 = vmatprep.subr.mxu0 0.0
        %664 = vmatpush1.xpose.msra.mxu0 %v616
        %665 = vmatprep.subr.mxu0 0.0
        %666 = vmatpush1.xpose.msra.mxu0 %v619
        %667 = vmatprep.subr.mxu0 0.0
        %668 = vmatpush1.xpose.msra.mxu0 %v622
        %669 = vmatprep.subr.mxu0 0.0
        %670 = vmatpush1.xpose.msra.mxu0 %v625
        %671 = vmatprep.subr.mxu0 0.0
        %672 = vmatpush1.xpose.msra.mxu0 %v628
        %673 = vmatprep.subr.mxu0 0.0
        %674 = vmatpush1.xpose.msra.mxu0 %v631
        %675 = vmatprep.subr.mxu0 0.0
        %676 = vmatpush1.xpose.msra.mxu0 %v634
        %677 = vmatprep.subr.mxu0 0.0
        %678 = vmatpush1.xpose.msra.mxu0 %v637
        %679 = vmatprep.subr.mxu0 0.0
        %680 = vmatpush1.xpose.msra.mxu0 %v640
        %681 = vmatprep.subr.mxu0 0.0
        %682 = vmatpush1.xpose.msra.mxu0 %v643
        %683 = vmatprep.subr.mxu0 0.0
        %684 = vmatpush1.xpose.msra.mxu0 %v646
        %685 = vmatprep.subr.mxu0 0.0
        %686 = vmatpush1.xpose.msra.mxu0 %v649
        %687 = vmatprep.subr.mxu0 0.0
        %688 = vmatpush1.xpose.msra.mxu0 %v652
        %689 = vmatprep.subr.mxu0 0.0
        %690 = vmatpush1.xpose.msra.mxu0 %v655
        %691 = vmatprep.subr.mxu0 0.0
        %692 = vmatpush1.xpose.msra.mxu0 %v658
        %693 = vmatprep.subr.mxu0 0.0
        %694 = vmatpush1.xpose.msra.mxu0 %v661
        %695 = vmatprep.subr.mxu0 0.0
        %696 = vmatpush1.xpose.msra.mxu0 0.0
        %697 = vmatprep.subr.mxu0 0.0
        %698 = vmatpush1.xpose.msra.mxu0 0.0
        %699 = vmatprep.subr.mxu0 0.0
        %700 = vmatpush1.xpose.msra.mxu0 0.0
        %701 = vmatprep.subr.mxu0 0.0
        %702 = vmatpush1.xpose.msra.mxu0 0.0
        %703 = vmatprep.subr.mxu0 0.0
        %704 = vmatpush1.xpose.msra.mxu0 0.0
        %705 = vmatprep.subr.mxu0 0.0
        %706 = vmatpush1.xpose.msra.mxu0 0.0
        %707 = vmatprep.subr.mxu0 0.0
        %708 = vmatpush1.xpose.msra.mxu0 0.0
        %709 = vmatprep.subr.mxu0 0.0
        %710 = vmatpush1.xpose.msra.mxu0 0.0
        %711 = vmatprep.subr.mxu0 0.0
        %712 = vmatpush1.xpose.msra.mxu0 0.0
        %713 = vmatprep.subr.mxu0 0.0
        %714 = vmatpush1.xpose.msra.mxu0 0.0
        %715 = vmatprep.subr.mxu0 0.0
        %716 = vmatpush1.xpose.msra.mxu0 0.0
        %717 = vmatprep.subr.mxu0 0.0
        %718 = vmatpush1.xpose.msra.mxu0 0.0
        %719 = vmatprep.subr.mxu0 0.0
        %720 = vmatpush1.xpose.msra.mxu0 0.0
        %721 = vmatprep.subr.mxu0 0.0
        %722 = vmatpush1.xpose.msra.mxu0 0.0
        %723 = vmatprep.subr.mxu0 0.0
        %724 = vmatpush1.xpose.msra.mxu0 0.0
        %725 = vmatprep.subr.mxu0 0.0
        %726 = vmatpush1.xpose.msra.mxu0 0.0
        %727 = vmatprep.mubr.f32.mxu0 0.0
        %728 = vmatmul.mubr.f32.gmra.mrb[0].mxu0 %v568
        %v729 = vpop.f32.mrb[0].mxu0
        %v730 = vadd.f32 0.0, %v729
        %v731 = vpop.f32.mrb[0].mxu0
        %732 = vmatprep.mubr.f32.mxu0 0.0
        %733 = vmatmul.mubr.f32.gmra.mrb[0].mxu0 %v571
        %v734 = vpop.f32.mrb[0].mxu0
        %v735 = vadd.f32 0.0, %v734
        %v736 = vpop.f32.mrb[0].mxu0
        %737 = vmatprep.mubr.f32.mxu0 0.0
        %738 = vmatmul.mubr.f32.gmra.mrb[0].mxu0 %v574
        %v739 = vpop.f32.mrb[0].mxu0
        %v740 = vadd.f32 0.0, %v739
        %v741 = vpop.f32.mrb[0].mxu0
        %742 = vmatprep.mubr.f32.mxu0 0.0
        %743 = vmatmul.mubr.f32.gmra.mrb[0].mxu0 %v577
        %v744 = vpop.f32.mrb[0].mxu0
        %v745 = vadd.f32 0.0, %v744
        %v746 = vpop.f32.mrb[0].mxu0
        %747 = vmatprep.mubr.f32.mxu0 0.0
        %748 = vmatmul.mubr.f32.gmra.mrb[0].mxu0 %v580
        %v749 = vpop.f32.mrb[0].mxu0
        %v750 = vadd.f32 0.0, %v749
        %v751 = vpop.f32.mrb[0].mxu0
        %752 = vmatprep.mubr.f32.mxu0 0.0
        %753 = vmatmul.mubr.f32.gmra.mrb[0].mxu0 %v583
        %v754 = vpop.f32.mrb[0].mxu0
        %v755 = vadd.f32 0.0, %v754
        %v756 = vpop.f32.mrb[0].mxu0
        %757 = vmatprep.mubr.f32.mxu0 0.0
        %758 = vmatmul.mubr.f32.gmra.mrb[0].mxu0 %v586
        %v759 = vpop.f32.mrb[0].mxu0
        %v760 = vadd.f32 0.0, %v759
        %v761 = vpop.f32.mrb[0].mxu0
        %762 = vmatprep.mubr.f32.mxu0 0.0
        %763 = vmatmul.mubr.f32.gmra.mrb[0].mxu0 %v589
        %v764 = vpop.f32.mrb[0].mxu0
        %v765 = vadd.f32 0.0, %v764
        %v766 = vpop.f32.mrb[0].mxu0
        %767 = vmatprep.mubr.f32.mxu0 0.0
        %768 = vmatmul.mubr.f32.gmra.mrb[0].mxu0 %v592
        %v769 = vpop.f32.mrb[0].mxu0
        %v770 = vadd.f32 0.0, %v769
        %v771 = vpop.f32.mrb[0].mxu0
        %772 = vmatprep.mubr.f32.mxu0 0.0
        %773 = vmatmul.mubr.f32.gmra.mrb[0].mxu0 %v595
        %v774 = vpop.f32.mrb[0].mxu0
        %v775 = vadd.f32 0.0, %v774
        %v776 = vpop.f32.mrb[0].mxu0
        %777 = vmatprep.mubr.f32.mxu0 0.0
        %778 = vmatmul.mubr.f32.gmra.mrb[0].mxu0 %v598
        %v779 = vpop.f32.mrb[0].mxu0
        %v780 = vadd.f32 0.0, %v779
        %v781 = vpop.f32.mrb[0].mxu0
        %782 = vmatprep.mubr.f32.mxu0 0.0
        %783 = vmatmul.mubr.f32.gmra.mrb[0].mxu0 %v601
        %v784 = vpop.f32.mrb[0].mxu0
        %v785 = vadd.f32 0.0, %v784
        %v786 = vpop.f32.mrb[0].mxu0
        %787 = vmatprep.mubr.f32.mxu0 0.0
        %788 = vmatmul.mubr.f32.gmra.mrb[0].mxu0 %v604
        %v789 = vpop.f32.mrb[0].mxu0
        %v790 = vadd.f32 0.0, %v789
        %v791 = vpop.f32.mrb[0].mxu0
        %792 = vmatprep.mubr.f32.mxu0 0.0
        %793 = vmatmul.mubr.f32.gmra.mrb[0].mxu0 %v607
        %v794 = vpop.f32.mrb[0].mxu0
        %v795 = vadd.f32 0.0, %v794
        %v796 = vpop.f32.mrb[0].mxu0
        %797 = vmatprep.mubr.f32.mxu0 0.0
        %798 = vmatmul.mubr.f32.gmra.mrb[0].mxu0 %v610
        %v799 = vpop.f32.mrb[0].mxu0
        %v800 = vadd.f32 0.0, %v799
        %v801 = vpop.f32.mrb[0].mxu0
        %802 = vmatprep.mubr.f32.mxu0 0.0
        %803 = vmatmul.mubr.f32.gmra.mrb[0].mxu0 %v613
        %v804 = vpop.f32.mrb[0].mxu0
        %v805 = vadd.f32 0.0, %v804
        %v806 = vpop.f32.mrb[0].mxu0
        %807 = vdwg.mxu0
        %v809 = vsel %vm566, %v390, 0
        %v812 = vsel %vm566, %v391, 0
        %v815 = vsel %vm566, %v392, 0
        %v818 = vsel %vm566, %v393, 0
        %v821 = vsel %vm566, %v394, 0
        %v824 = vsel %vm566, %v395, 0
        %v827 = vsel %vm566, %v396, 0
        %v830 = vsel %vm566, %v397, 0
        %v833 = vsel %vm566, %v398, 0
        %v836 = vsel %vm566, %v399, 0
        %v839 = vsel %vm566, %v400, 0
        %v842 = vsel %vm566, %v401, 0
        %v845 = vsel %vm566, %v402, 0
        %v848 = vsel %vm566, %v403, 0
        %v851 = vsel %vm566, %v404, 0
        %v854 = vsel %vm566, %v405, 0
        %v857 = vsel %vm566, %v454, 0
        %v860 = vsel %vm566, %v455, 0
        %v863 = vsel %vm566, %v456, 0
        %v866 = vsel %vm566, %v457, 0
        %v869 = vsel %vm566, %v458, 0
        %v872 = vsel %vm566, %v459, 0
        %v875 = vsel %vm566, %v460, 0
        %v878 = vsel %vm566, %v461, 0
        %v881 = vsel %vm566, %v462, 0
        %v884 = vsel %vm566, %v463, 0
        %v887 = vsel %vm566, %v464, 0
        %v890 = vsel %vm566, %v465, 0
        %v893 = vsel %vm566, %v466, 0
        %v896 = vsel %vm566, %v467, 0
        %v899 = vsel %vm566, %v468, 0
        %v902 = vsel %vm566, %v469, 0
        %904 = vmatprep.subr.mxu0 0.0
        %905 = vmatpush1.xpose.msra.mxu0 %v857
        %906 = vmatprep.subr.mxu0 0.0
        %907 = vmatpush1.xpose.msra.mxu0 %v860
        %908 = vmatprep.subr.mxu0 0.0
        %909 = vmatpush1.xpose.msra.mxu0 %v863
        %910 = vmatprep.subr.mxu0 0.0
        %911 = vmatpush1.xpose.msra.mxu0 %v866
        %912 = vmatprep.subr.mxu0 0.0
        %913 = vmatpush1.xpose.msra.mxu0 %v869
        %914 = vmatprep.subr.mxu0 0.0
        %915 = vmatpush1.xpose.msra.mxu0 %v872
        %916 = vmatprep.subr.mxu0 0.0
        %917 = vmatpush1.xpose.msra.mxu0 %v875
        %918 = vmatprep.subr.mxu0 0.0
        %919 = vmatpush1.xpose.msra.mxu0 %v878
        %920 = vmatprep.subr.mxu0 0.0
        %921 = vmatpush1.xpose.msra.mxu0 %v881
        %922 = vmatprep.subr.mxu0 0.0
        %923 = vmatpush1.xpose.msra.mxu0 %v884
        %924 = vmatprep.subr.mxu0 0.0
        %925 = vmatpush1.xpose.msra.mxu0 %v887
        %926 = vmatprep.subr.mxu0 0.0
        %927 = vmatpush1.xpose.msra.mxu0 %v890
        %928 = vmatprep.subr.mxu0 0.0
        %929 = vmatpush1.xpose.msra.mxu0 %v893
        %930 = vmatprep.subr.mxu0 0.0
        %931 = vmatpush1.xpose.msra.mxu0 %v896
        %932 = vmatprep.subr.mxu0 0.0
        %933 = vmatpush1.xpose.msra.mxu0 %v899
        %934 = vmatprep.subr.mxu0 0.0
        %935 = vmatpush1.xpose.msra.mxu0 %v902
        %936 = vmatprep.subr.mxu0 0.0
        %937 = vmatpush1.xpose.msra.mxu0 0.0
        %938 = vmatprep.subr.mxu0 0.0
        %939 = vmatpush1.xpose.msra.mxu0 0.0
        %940 = vmatprep.subr.mxu0 0.0
        %941 = vmatpush1.xpose.msra.mxu0 0.0
        %942 = vmatprep.subr.mxu0 0.0
        %943 = vmatpush1.xpose.msra.mxu0 0.0
        %944 = vmatprep.subr.mxu0 0.0
        %945 = vmatpush1.xpose.msra.mxu0 0.0
        %946 = vmatprep.subr.mxu0 0.0
        %947 = vmatpush1.xpose.msra.mxu0 0.0
        %948 = vmatprep.subr.mxu0 0.0
        %949 = vmatpush1.xpose.msra.mxu0 0.0
        %950 = vmatprep.subr.mxu0 0.0
        %951 = vmatpush1.xpose.msra.mxu0 0.0
        %952 = vmatprep.subr.mxu0 0.0
        %953 = vmatpush1.xpose.msra.mxu0 0.0
        %954 = vmatprep.subr.mxu0 0.0
        %955 = vmatpush1.xpose.msra.mxu0 0.0
        %956 = vmatprep.subr.mxu0 0.0
        %957 = vmatpush1.xpose.msra.mxu0 0.0
        %958 = vmatprep.subr.mxu0 0.0
        %959 = vmatpush1.xpose.msra.mxu0 0.0
        %960 = vmatprep.subr.mxu0 0.0
        %961 = vmatpush1.xpose.msra.mxu0 0.0
        %962 = vmatprep.subr.mxu0 0.0
        %963 = vmatpush1.xpose.msra.mxu0 0.0
        %964 = vmatprep.subr.mxu0 0.0
        %965 = vmatpush1.xpose.msra.mxu0 0.0
        %966 = vmatprep.subr.mxu0 0.0
        %967 = vmatpush1.xpose.msra.mxu0 0.0
        %968 = vmatprep.mubr.f32.mxu0 0.0
        %969 = vmatmul.mubr.f32.gmra.mrb[0].mxu0 %v809
        %v970 = vpop.f32.mrb[0].mxu0
        %v971 = vadd.f32 0.0, %v970
        %v972 = vpop.f32.mrb[0].mxu0
        %973 = vmatprep.mubr.f32.mxu0 0.0
        %974 = vmatmul.mubr.f32.gmra.mrb[0].mxu0 %v812
        %v975 = vpop.f32.mrb[0].mxu0
        %v976 = vadd.f32 0.0, %v975
        %v977 = vpop.f32.mrb[0].mxu0
        %978 = vmatprep.mubr.f32.mxu0 0.0
        %979 = vmatmul.mubr.f32.gmra.mrb[0].mxu0 %v815
        %v980 = vpop.f32.mrb[0].mxu0
        %v981 = vadd.f32 0.0, %v980
        %v982 = vpop.f32.mrb[0].mxu0
        %983 = vmatprep.mubr.f32.mxu0 0.0
        %984 = vmatmul.mubr.f32.gmra.mrb[0].mxu0 %v818
        %v985 = vpop.f32.mrb[0].mxu0
        %v986 = vadd.f32 0.0, %v985
        %v987 = vpop.f32.mrb[0].mxu0
        %988 = vmatprep.mubr.f32.mxu0 0.0
        %989 = vmatmul.mubr.f32.gmra.mrb[0].mxu0 %v821
        %v990 = vpop.f32.mrb[0].mxu0
        %v991 = vadd.f32 0.0, %v990
        %v992 = vpop.f32.mrb[0].mxu0
        %993 = vmatprep.mubr.f32.mxu0 0.0
        %994 = vmatmul.mubr.f32.gmra.mrb[0].mxu0 %v824
        %v995 = vpop.f32.mrb[0].mxu0
        %v996 = vadd.f32 0.0, %v995
        %v997 = vpop.f32.mrb[0].mxu0
        %998 = vmatprep.mubr.f32.mxu0 0.0
        %999 = vmatmul.mubr.f32.gmra.mrb[0].mxu0 %v827
        %v1000 = vpop.f32.mrb[0].mxu0
        %v1001 = vadd.f32 0.0, %v1000
        %v1002 = vpop.f32.mrb[0].mxu0
        %1003 = vmatprep.mubr.f32.mxu0 0.0
        %1004 = vmatmul.mubr.f32.gmra.mrb[0].mxu0 %v830
        %v1005 = vpop.f32.mrb[0].mxu0
        %v1006 = vadd.f32 0.0, %v1005
        %v1007 = vpop.f32.mrb[0].mxu0
        %1008 = vmatprep.mubr.f32.mxu0 0.0
        %1009 = vmatmul.mubr.f32.gmra.mrb[0].mxu0 %v833
        %v1010 = vpop.f32.mrb[0].mxu0
        %v1011 = vadd.f32 0.0, %v1010
        %v1012 = vpop.f32.mrb[0].mxu0
        %1013 = vmatprep.mubr.f32.mxu0 0.0
        %1014 = vmatmul.mubr.f32.gmra.mrb[0].mxu0 %v836
        %v1015 = vpop.f32.mrb[0].mxu0
        %v1016 = vadd.f32 0.0, %v1015
        %v1017 = vpop.f32.mrb[0].mxu0
        %1018 = vmatprep.mubr.f32.mxu0 0.0
        %1019 = vmatmul.mubr.f32.gmra.mrb[0].mxu0 %v839
        %v1020 = vpop.f32.mrb[0].mxu0
        %v1021 = vadd.f32 0.0, %v1020
        %v1022 = vpop.f32.mrb[0].mxu0
        %1023 = vmatprep.mubr.f32.mxu0 0.0
        %1024 = vmatmul.mubr.f32.gmra.mrb[0].mxu0 %v842
        %v1025 = vpop.f32.mrb[0].mxu0
        %v1026 = vadd.f32 0.0, %v1025
        %v1027 = vpop.f32.mrb[0].mxu0
        %1028 = vmatprep.mubr.f32.mxu0 0.0
        %1029 = vmatmul.mubr.f32.gmra.mrb[0].mxu0 %v845
        %v1030 = vpop.f32.mrb[0].mxu0
        %v1031 = vadd.f32 0.0, %v1030
        %v1032 = vpop.f32.mrb[0].mxu0
        %1033 = vmatprep.mubr.f32.mxu0 0.0
        %1034 = vmatmul.mubr.f32.gmra.mrb[0].mxu0 %v848
        %v1035 = vpop.f32.mrb[0].mxu0
        %v1036 = vadd.f32 0.0, %v1035
        %v1037 = vpop.f32.mrb[0].mxu0
        %1038 = vmatprep.mubr.f32.mxu0 0.0
        %1039 = vmatmul.mubr.f32.gmra.mrb[0].mxu0 %v851
        %v1040 = vpop.f32.mrb[0].mxu0
        %v1041 = vadd.f32 0.0, %v1040
        %v1042 = vpop.f32.mrb[0].mxu0
        %1043 = vmatprep.mubr.f32.mxu0 0.0
        %1044 = vmatmul.mubr.f32.gmra.mrb[0].mxu0 %v854
        %v1045 = vpop.f32.mrb[0].mxu0
        %v1046 = vadd.f32 0.0, %v1045
        %v1047 = vpop.f32.mrb[0].mxu0
        %1048 = vdwg.mxu0
        %v1050 = vsel %vm566, %v406, 0
        %v1053 = vsel %vm566, %v407, 0
        %v1056 = vsel %vm566, %v408, 0
        %v1059 = vsel %vm566, %v409, 0
        %v1062 = vsel %vm566, %v410, 0
        %v1065 = vsel %vm566, %v411, 0
        %v1068 = vsel %vm566, %v412, 0
        %v1071 = vsel %vm566, %v413, 0
        %v1074 = vsel %vm566, %v414, 0
        %v1077 = vsel %vm566, %v415, 0
        %v1080 = vsel %vm566, %v416, 0
        %v1083 = vsel %vm566, %v417, 0
        %v1086 = vsel %vm566, %v418, 0
        %v1089 = vsel %vm566, %v419, 0
        %v1092 = vsel %vm566, %v420, 0
        %v1095 = vsel %vm566, %v421, 0
        %v1098 = vsel %vm566, %v470, 0
        %v1101 = vsel %vm566, %v471, 0
        %v1104 = vsel %vm566, %v472, 0
        %v1107 = vsel %vm566, %v473, 0
        %v1110 = vsel %vm566, %v474, 0
        %v1113 = vsel %vm566, %v475, 0
        %v1116 = vsel %vm566, %v476, 0
        %v1119 = vsel %vm566, %v477, 0
        %v1122 = vsel %vm566, %v478, 0
        %v1125 = vsel %vm566, %v479, 0
        %v1128 = vsel %vm566, %v480, 0
        %v1131 = vsel %vm566, %v481, 0
        %v1134 = vsel %vm566, %v482, 0
        %v1137 = vsel %vm566, %v483, 0
        %v1140 = vsel %vm566, %v484, 0
        %v1143 = vsel %vm566, %v485, 0
        %1145 = vmatprep.subr.mxu0 0.0
        %1146 = vmatpush1.xpose.msra.mxu0 %v1098
        %1147 = vmatprep.subr.mxu0 0.0
        %1148 = vmatpush1.xpose.msra.mxu0 %v1101
        %1149 = vmatprep.subr.mxu0 0.0
        %1150 = vmatpush1.xpose.msra.mxu0 %v1104
        %1151 = vmatprep.subr.mxu0 0.0
        %1152 = vmatpush1.xpose.msra.mxu0 %v1107
        %1153 = vmatprep.subr.mxu0 0.0
        %1154 = vmatpush1.xpose.msra.mxu0 %v1110
        %1155 = vmatprep.subr.mxu0 0.0
        %1156 = vmatpush1.xpose.msra.mxu0 %v1113
        %1157 = vmatprep.subr.mxu0 0.0
        %1158 = vmatpush1.xpose.msra.mxu0 %v1116
        %1159 = vmatprep.subr.mxu0 0.0
        %1160 = vmatpush1.xpose.msra.mxu0 %v1119
        %1161 = vmatprep.subr.mxu0 0.0
        %1162 = vmatpush1.xpose.msra.mxu0 %v1122
        %1163 = vmatprep.subr.mxu0 0.0
        %1164 = vmatpush1.xpose.msra.mxu0 %v1125
        %1165 = vmatprep.subr.mxu0 0.0
        %1166 = vmatpush1.xpose.msra.mxu0 %v1128
        %1167 = vmatprep.subr.mxu0 0.0
        %1168 = vmatpush1.xpose.msra.mxu0 %v1131
        %1169 = vmatprep.subr.mxu0 0.0
        %1170 = vmatpush1.xpose.msra.mxu0 %v1134
        %1171 = vmatprep.subr.mxu0 0.0
        %1172 = vmatpush1.xpose.msra.mxu0 %v1137
        %1173 = vmatprep.subr.mxu0 0.0
        %1174 = vmatpush1.xpose.msra.mxu0 %v1140
        %1175 = vmatprep.subr.mxu0 0.0
        %1176 = vmatpush1.xpose.msra.mxu0 %v1143
        %1177 = vmatprep.subr.mxu0 0.0
        %1178 = vmatpush1.xpose.msra.mxu0 0.0
        %1179 = vmatprep.subr.mxu0 0.0
        %1180 = vmatpush1.xpose.msra.mxu0 0.0
        %1181 = vmatprep.subr.mxu0 0.0
        %1182 = vmatpush1.xpose.msra.mxu0 0.0
        %1183 = vmatprep.subr.mxu0 0.0
        %1184 = vmatpush1.xpose.msra.mxu0 0.0
        %1185 = vmatprep.subr.mxu0 0.0
        %1186 = vmatpush1.xpose.msra.mxu0 0.0
        %1187 = vmatprep.subr.mxu0 0.0
        %1188 = vmatpush1.xpose.msra.mxu0 0.0
        %1189 = vmatprep.subr.mxu0 0.0
        %1190 = vmatpush1.xpose.msra.mxu0 0.0
        %1191 = vmatprep.subr.mxu0 0.0
        %1192 = vmatpush1.xpose.msra.mxu0 0.0
        %1193 = vmatprep.subr.mxu0 0.0
        %1194 = vmatpush1.xpose.msra.mxu0 0.0
        %1195 = vmatprep.subr.mxu0 0.0
        %1196 = vmatpush1.xpose.msra.mxu0 0.0
        %1197 = vmatprep.subr.mxu0 0.0
        %1198 = vmatpush1.xpose.msra.mxu0 0.0
        %1199 = vmatprep.subr.mxu0 0.0
        %1200 = vmatpush1.xpose.msra.mxu0 0.0
        %1201 = vmatprep.subr.mxu0 0.0
        %1202 = vmatpush1.xpose.msra.mxu0 0.0
        %1203 = vmatprep.subr.mxu0 0.0
        %1204 = vmatpush1.xpose.msra.mxu0 0.0
        %1205 = vmatprep.subr.mxu0 0.0
        %1206 = vmatpush1.xpose.msra.mxu0 0.0
        %1207 = vmatprep.subr.mxu0 0.0
        %1208 = vmatpush1.xpose.msra.mxu0 0.0
        %1209 = vmatprep.mubr.f32.mxu0 0.0
        %1210 = vmatmul.mubr.f32.gmra.mrb[0].mxu0 %v1050
        %v1211 = vpop.f32.mrb[0].mxu0
        %v1212 = vadd.f32 0.0, %v1211
        %v1213 = vpop.f32.mrb[0].mxu0
        %1214 = vmatprep.mubr.f32.mxu0 0.0
        %1215 = vmatmul.mubr.f32.gmra.mrb[0].mxu0 %v1053
        %v1216 = vpop.f32.mrb[0].mxu0
        %v1217 = vadd.f32 0.0, %v1216
        %v1218 = vpop.f32.mrb[0].mxu0
        %1219 = vmatprep.mubr.f32.mxu0 0.0
        %1220 = vmatmul.mubr.f32.gmra.mrb[0].mxu0 %v1056
        %v1221 = vpop.f32.mrb[0].mxu0
        %v1222 = vadd.f32 0.0, %v1221
        %v1223 = vpop.f32.mrb[0].mxu0
        %1224 = vmatprep.mubr.f32.mxu0 0.0
        %1225 = vmatmul.mubr.f32.gmra.mrb[0].mxu0 %v1059
        %v1226 = vpop.f32.mrb[0].mxu0
        %v1227 = vadd.f32 0.0, %v1226
        %v1228 = vpop.f32.mrb[0].mxu0
        %1229 = vmatprep.mubr.f32.mxu0 0.0
        %1230 = vmatmul.mubr.f32.gmra.mrb[0].mxu0 %v1062
        %v1231 = vpop.f32.mrb[0].mxu0
        %v1232 = vadd.f32 0.0, %v1231
        %v1233 = vpop.f32.mrb[0].mxu0
        %1234 = vmatprep.mubr.f32.mxu0 0.0
        %1235 = vmatmul.mubr.f32.gmra.mrb[0].mxu0 %v1065
        %v1236 = vpop.f32.mrb[0].mxu0
        %v1237 = vadd.f32 0.0, %v1236
        %v1238 = vpop.f32.mrb[0].mxu0
        %1239 = vmatprep.mubr.f32.mxu0 0.0
        %1240 = vmatmul.mubr.f32.gmra.mrb[0].mxu0 %v1068
        %v1241 = vpop.f32.mrb[0].mxu0
        %v1242 = vadd.f32 0.0, %v1241
        %v1243 = vpop.f32.mrb[0].mxu0
        %1244 = vmatprep.mubr.f32.mxu0 0.0
        %1245 = vmatmul.mubr.f32.gmra.mrb[0].mxu0 %v1071
        %v1246 = vpop.f32.mrb[0].mxu0
        %v1247 = vadd.f32 0.0, %v1246
        %v1248 = vpop.f32.mrb[0].mxu0
        %1249 = vmatprep.mubr.f32.mxu0 0.0
        %1250 = vmatmul.mubr.f32.gmra.mrb[0].mxu0 %v1074
        %v1251 = vpop.f32.mrb[0].mxu0
        %v1252 = vadd.f32 0.0, %v1251
        %v1253 = vpop.f32.mrb[0].mxu0
        %1254 = vmatprep.mubr.f32.mxu0 0.0
        %1255 = vmatmul.mubr.f32.gmra.mrb[0].mxu0 %v1077
        %v1256 = vpop.f32.mrb[0].mxu0
        %v1257 = vadd.f32 0.0, %v1256
        %v1258 = vpop.f32.mrb[0].mxu0
        %1259 = vmatprep.mubr.f32.mxu0 0.0
        %1260 = vmatmul.mubr.f32.gmra.mrb[0].mxu0 %v1080
        %v1261 = vpop.f32.mrb[0].mxu0
        %v1262 = vadd.f32 0.0, %v1261
        %v1263 = vpop.f32.mrb[0].mxu0
        %1264 = vmatprep.mubr.f32.mxu0 0.0
        %1265 = vmatmul.mubr.f32.gmra.mrb[0].mxu0 %v1083
        %v1266 = vpop.f32.mrb[0].mxu0
        %v1267 = vadd.f32 0.0, %v1266
        %v1268 = vpop.f32.mrb[0].mxu0
        %1269 = vmatprep.mubr.f32.mxu0 0.0
        %1270 = vmatmul.mubr.f32.gmra.mrb[0].mxu0 %v1086
        %v1271 = vpop.f32.mrb[0].mxu0
        %v1272 = vadd.f32 0.0, %v1271
        %v1273 = vpop.f32.mrb[0].mxu0
        %1274 = vmatprep.mubr.f32.mxu0 0.0
        %1275 = vmatmul.mubr.f32.gmra.mrb[0].mxu0 %v1089
        %v1276 = vpop.f32.mrb[0].mxu0
        %v1277 = vadd.f32 0.0, %v1276
        %v1278 = vpop.f32.mrb[0].mxu0
        %1279 = vmatprep.mubr.f32.mxu0 0.0
        %1280 = vmatmul.mubr.f32.gmra.mrb[0].mxu0 %v1092
        %v1281 = vpop.f32.mrb[0].mxu0
        %v1282 = vadd.f32 0.0, %v1281
        %v1283 = vpop.f32.mrb[0].mxu0
        %1284 = vmatprep.mubr.f32.mxu0 0.0
        %1285 = vmatmul.mubr.f32.gmra.mrb[0].mxu0 %v1095
        %v1286 = vpop.f32.mrb[0].mxu0
        %v1287 = vadd.f32 0.0, %v1286
        %v1288 = vpop.f32.mrb[0].mxu0
        %1289 = vdwg.mxu0
        %v1291 = vsel %vm566, %v422, 0
        %v1294 = vsel %vm566, %v423, 0
        %v1297 = vsel %vm566, %v424, 0
        %v1300 = vsel %vm566, %v425, 0
        %v1303 = vsel %vm566, %v426, 0
        %v1306 = vsel %vm566, %v427, 0
        %v1309 = vsel %vm566, %v428, 0
        %v1312 = vsel %vm566, %v429, 0
        %v1315 = vsel %vm566, %v430, 0
        %v1318 = vsel %vm566, %v431, 0
        %v1321 = vsel %vm566, %v432, 0
        %v1324 = vsel %vm566, %v433, 0
        %v1327 = vsel %vm566, %v434, 0
        %v1330 = vsel %vm566, %v435, 0
        %v1333 = vsel %vm566, %v436, 0
        %v1336 = vsel %vm566, %v437, 0
        %v1339 = vsel %vm566, %v486, 0
        %v1342 = vsel %vm566, %v487, 0
        %v1345 = vsel %vm566, %v488, 0
        %v1348 = vsel %vm566, %v489, 0
        %v1351 = vsel %vm566, %v490, 0
        %v1354 = vsel %vm566, %v491, 0
        %v1357 = vsel %vm566, %v492, 0
        %v1360 = vsel %vm566, %v493, 0
        %v1363 = vsel %vm566, %v494, 0
        %v1366 = vsel %vm566, %v495, 0
        %v1369 = vsel %vm566, %v496, 0
        %v1372 = vsel %vm566, %v497, 0
        %v1375 = vsel %vm566, %v498, 0
        %v1378 = vsel %vm566, %v499, 0
        %v1381 = vsel %vm566, %v500, 0
        %v1384 = vsel %vm566, %v501, 0
        %1386 = vmatprep.subr.mxu0 0.0
        %1387 = vmatpush1.xpose.msra.mxu0 %v1339
        %1388 = vmatprep.subr.mxu0 0.0
        %1389 = vmatpush1.xpose.msra.mxu0 %v1342
        %1390 = vmatprep.subr.mxu0 0.0
        %1391 = vmatpush1.xpose.msra.mxu0 %v1345
        %1392 = vmatprep.subr.mxu0 0.0
        %1393 = vmatpush1.xpose.msra.mxu0 %v1348
        %1394 = vmatprep.subr.mxu0 0.0
        %1395 = vmatpush1.xpose.msra.mxu0 %v1351
        %1396 = vmatprep.subr.mxu0 0.0
        %1397 = vmatpush1.xpose.msra.mxu0 %v1354
        %1398 = vmatprep.subr.mxu0 0.0
        %1399 = vmatpush1.xpose.msra.mxu0 %v1357
        %1400 = vmatprep.subr.mxu0 0.0
        %1401 = vmatpush1.xpose.msra.mxu0 %v1360
        %1402 = vmatprep.subr.mxu0 0.0
        %1403 = vmatpush1.xpose.msra.mxu0 %v1363
        %1404 = vmatprep.subr.mxu0 0.0
        %1405 = vmatpush1.xpose.msra.mxu0 %v1366
        %1406 = vmatprep.subr.mxu0 0.0
        %1407 = vmatpush1.xpose.msra.mxu0 %v1369
        %1408 = vmatprep.subr.mxu0 0.0
        %1409 = vmatpush1.xpose.msra.mxu0 %v1372
        %1410 = vmatprep.subr.mxu0 0.0
        %1411 = vmatpush1.xpose.msra.mxu0 %v1375
        %1412 = vmatprep.subr.mxu0 0.0
        %1413 = vmatpush1.xpose.msra.mxu0 %v1378
        %1414 = vmatprep.subr.mxu0 0.0
        %1415 = vmatpush1.xpose.msra.mxu0 %v1381
        %1416 = vmatprep.subr.mxu0 0.0
        %1417 = vmatpush1.xpose.msra.mxu0 %v1384
        %1418 = vmatprep.subr.mxu0 0.0
        %1419 = vmatpush1.xpose.msra.mxu0 0.0
        %1420 = vmatprep.subr.mxu0 0.0
        %1421 = vmatpush1.xpose.msra.mxu0 0.0
        %1422 = vmatprep.subr.mxu0 0.0
        %1423 = vmatpush1.xpose.msra.mxu0 0.0
        %1424 = vmatprep.subr.mxu0 0.0
        %1425 = vmatpush1.xpose.msra.mxu0 0.0
        %1426 = vmatprep.subr.mxu0 0.0
        %1427 = vmatpush1.xpose.msra.mxu0 0.0
        %1428 = vmatprep.subr.mxu0 0.0
        %1429 = vmatpush1.xpose.msra.mxu0 0.0
        %1430 = vmatprep.subr.mxu0 0.0
        %1431 = vmatpush1.xpose.msra.mxu0 0.0
        %1432 = vmatprep.subr.mxu0 0.0
        %1433 = vmatpush1.xpose.msra.mxu0 0.0
        %1434 = vmatprep.subr.mxu0 0.0
        %1435 = vmatpush1.xpose.msra.mxu0 0.0
        %1436 = vmatprep.subr.mxu0 0.0
        %1437 = vmatpush1.xpose.msra.mxu0 0.0
        %1438 = vmatprep.subr.mxu0 0.0
        %1439 = vmatpush1.xpose.msra.mxu0 0.0
        %1440 = vmatprep.subr.mxu0 0.0
        %1441 = vmatpush1.xpose.msra.mxu0 0.0
        %1442 = vmatprep.subr.mxu0 0.0
        %1443 = vmatpush1.xpose.msra.mxu0 0.0
        %1444 = vmatprep.subr.mxu0 0.0
        %1445 = vmatpush1.xpose.msra.mxu0 0.0
        %1446 = vmatprep.subr.mxu0 0.0
        %1447 = vmatpush1.xpose.msra.mxu0 0.0
        %1448 = vmatprep.subr.mxu0 0.0
        %1449 = vmatpush1.xpose.msra.mxu0 0.0
        %1450 = vmatprep.mubr.f32.mxu0 0.0
        %1451 = vmatmul.mubr.f32.gmra.mrb[0].mxu0 %v1291
        %v1452 = vpop.f32.mrb[0].mxu0
        %v1453 = vadd.f32 0.0, %v1452
        %v1454 = vpop.f32.mrb[0].mxu0
        %1455 = vmatprep.mubr.f32.mxu0 0.0
        %1456 = vmatmul.mubr.f32.gmra.mrb[0].mxu0 %v1294
        %v1457 = vpop.f32.mrb[0].mxu0
        %v1458 = vadd.f32 0.0, %v1457
        %v1459 = vpop.f32.mrb[0].mxu0
        %1460 = vmatprep.mubr.f32.mxu0 0.0
        %1461 = vmatmul.mubr.f32.gmra.mrb[0].mxu0 %v1297
        %v1462 = vpop.f32.mrb[0].mxu0
        %v1463 = vadd.f32 0.0, %v1462
        %v1464 = vpop.f32.mrb[0].mxu0
        %1465 = vmatprep.mubr.f32.mxu0 0.0
        %1466 = vmatmul.mubr.f32.gmra.mrb[0].mxu0 %v1300
        %v1467 = vpop.f32.mrb[0].mxu0
        %v1468 = vadd.f32 0.0, %v1467
        %v1469 = vpop.f32.mrb[0].mxu0
        %1470 = vmatprep.mubr.f32.mxu0 0.0
        %1471 = vmatmul.mubr.f32.gmra.mrb[0].mxu0 %v1303
        %v1472 = vpop.f32.mrb[0].mxu0
        %v1473 = vadd.f32 0.0, %v1472
        %v1474 = vpop.f32.mrb[0].mxu0
        %1475 = vmatprep.mubr.f32.mxu0 0.0
        %1476 = vmatmul.mubr.f32.gmra.mrb[0].mxu0 %v1306
        %v1477 = vpop.f32.mrb[0].mxu0
        %v1478 = vadd.f32 0.0, %v1477
        %v1479 = vpop.f32.mrb[0].mxu0
        %1480 = vmatprep.mubr.f32.mxu0 0.0
        %1481 = vmatmul.mubr.f32.gmra.mrb[0].mxu0 %v1309
        %v1482 = vpop.f32.mrb[0].mxu0
        %v1483 = vadd.f32 0.0, %v1482
        %v1484 = vpop.f32.mrb[0].mxu0
        %1485 = vmatprep.mubr.f32.mxu0 0.0
        %1486 = vmatmul.mubr.f32.gmra.mrb[0].mxu0 %v1312
        %v1487 = vpop.f32.mrb[0].mxu0
        %v1488 = vadd.f32 0.0, %v1487
        %v1489 = vpop.f32.mrb[0].mxu0
        %1490 = vmatprep.mubr.f32.mxu0 0.0
        %1491 = vmatmul.mubr.f32.gmra.mrb[0].mxu0 %v1315
        %v1492 = vpop.f32.mrb[0].mxu0
        %v1493 = vadd.f32 0.0, %v1492
        %v1494 = vpop.f32.mrb[0].mxu0
        %1495 = vmatprep.mubr.f32.mxu0 0.0
        %1496 = vmatmul.mubr.f32.gmra.mrb[0].mxu0 %v1318
        %v1497 = vpop.f32.mrb[0].mxu0
        %v1498 = vadd.f32 0.0, %v1497
        %v1499 = vpop.f32.mrb[0].mxu0
        %1500 = vmatprep.mubr.f32.mxu0 0.0
        %1501 = vmatmul.mubr.f32.gmra.mrb[0].mxu0 %v1321
        %v1502 = vpop.f32.mrb[0].mxu0
        %v1503 = vadd.f32 0.0, %v1502
        %v1504 = vpop.f32.mrb[0].mxu0
        %1505 = vmatprep.mubr.f32.mxu0 0.0
        %1506 = vmatmul.mubr.f32.gmra.mrb[0].mxu0 %v1324
        %v1507 = vpop.f32.mrb[0].mxu0
        %v1508 = vadd.f32 0.0, %v1507
        %v1509 = vpop.f32.mrb[0].mxu0
        %1510 = vmatprep.mubr.f32.mxu0 0.0
        %1511 = vmatmul.mubr.f32.gmra.mrb[0].mxu0 %v1327
        %v1512 = vpop.f32.mrb[0].mxu0
        %v1513 = vadd.f32 0.0, %v1512
        %v1514 = vpop.f32.mrb[0].mxu0
        %1515 = vmatprep.mubr.f32.mxu0 0.0
        %1516 = vmatmul.mubr.f32.gmra.mrb[0].mxu0 %v1330
        %v1517 = vpop.f32.mrb[0].mxu0
        %v1518 = vadd.f32 0.0, %v1517
        %v1519 = vpop.f32.mrb[0].mxu0
        %1520 = vmatprep.mubr.f32.mxu0 0.0
        %1521 = vmatmul.mubr.f32.gmra.mrb[0].mxu0 %v1333
        %v1522 = vpop.f32.mrb[0].mxu0
        %v1523 = vadd.f32 0.0, %v1522
        %v1524 = vpop.f32.mrb[0].mxu0
        %1525 = vmatprep.mubr.f32.mxu0 0.0
        %1526 = vmatmul.mubr.f32.gmra.mrb[0].mxu0 %v1336
        %v1527 = vpop.f32.mrb[0].mxu0
        %v1528 = vadd.f32 0.0, %v1527
        %v1529 = vpop.f32.mrb[0].mxu0
        %1530 = vdwg.mxu0
        %1531 = vmax.xlane.f32.xlu0 %v730
        %v1532 = vpop.xlane.xlu0 %1531
        %1533 = vmax.xlane.f32.xlu0 %v735
        %v1534 = vpop.xlane.xlu0 %1533
        %1535 = vmax.xlane.f32.xlu0 %v740
        %v1536 = vpop.xlane.xlu0 %1535
        %1537 = vmax.xlane.f32.xlu0 %v745
        %v1538 = vpop.xlane.xlu0 %1537
        %1539 = vmax.xlane.f32.xlu0 %v750
        %v1540 = vpop.xlane.xlu0 %1539
        %1541 = vmax.xlane.f32.xlu0 %v755
        %v1542 = vpop.xlane.xlu0 %1541
        %1543 = vmax.xlane.f32.xlu0 %v760
        %v1544 = vpop.xlane.xlu0 %1543
        %1545 = vmax.xlane.f32.xlu0 %v765
        %v1546 = vpop.xlane.xlu0 %1545
        %1547 = vmax.xlane.f32.xlu0 %v770
        %v1548 = vpop.xlane.xlu0 %1547
        %1549 = vmax.xlane.f32.xlu0 %v775
        %v1550 = vpop.xlane.xlu0 %1549
        %1551 = vmax.xlane.f32.xlu0 %v780
        %v1552 = vpop.xlane.xlu0 %1551
        %1553 = vmax.xlane.f32.xlu0 %v785
        %v1554 = vpop.xlane.xlu0 %1553
        %1555 = vmax.xlane.f32.xlu0 %v790
        %v1556 = vpop.xlane.xlu0 %1555
        %1557 = vmax.xlane.f32.xlu0 %v795
        %v1558 = vpop.xlane.xlu0 %1557
        %1559 = vmax.xlane.f32.xlu0 %v800
        %v1560 = vpop.xlane.xlu0 %1559
        %1561 = vmax.xlane.f32.xlu0 %v805
        %v1562 = vpop.xlane.xlu0 %1561
        %1563 = vmax.xlane.f32.xlu0 %v971
        %v1564 = vpop.xlane.xlu0 %1563
        %1565 = vmax.xlane.f32.xlu0 %v976
        %v1566 = vpop.xlane.xlu0 %1565
        %1567 = vmax.xlane.f32.xlu0 %v981
        %v1568 = vpop.xlane.xlu0 %1567
        %1569 = vmax.xlane.f32.xlu0 %v986
        %v1570 = vpop.xlane.xlu0 %1569
        %1571 = vmax.xlane.f32.xlu0 %v991
        %v1572 = vpop.xlane.xlu0 %1571
        %1573 = vmax.xlane.f32.xlu0 %v996
        %v1574 = vpop.xlane.xlu0 %1573
        %1575 = vmax.xlane.f32.xlu0 %v1001
        %v1576 = vpop.xlane.xlu0 %1575
        %1577 = vmax.xlane.f32.xlu0 %v1006
        %v1578 = vpop.xlane.xlu0 %1577
        %1579 = vmax.xlane.f32.xlu0 %v1011
        %v1580 = vpop.xlane.xlu0 %1579
        %1581 = vmax.xlane.f32.xlu0 %v1016
        %v1582 = vpop.xlane.xlu0 %1581
        %1583 = vmax.xlane.f32.xlu0 %v1021
        %v1584 = vpop.xlane.xlu0 %1583
        %1585 = vmax.xlane.f32.xlu0 %v1026
        %v1586 = vpop.xlane.xlu0 %1585
        %1587 = vmax.xlane.f32.xlu0 %v1031
        %v1588 = vpop.xlane.xlu0 %1587
        %1589 = vmax.xlane.f32.xlu0 %v1036
        %v1590 = vpop.xlane.xlu0 %1589
        %1591 = vmax.xlane.f32.xlu0 %v1041
        %v1592 = vpop.xlane.xlu0 %1591
        %1593 = vmax.xlane.f32.xlu0 %v1046
        %v1594 = vpop.xlane.xlu0 %1593
        %1595 = vmax.xlane.f32.xlu0 %v1212
        %v1596 = vpop.xlane.xlu0 %1595
        %1597 = vmax.xlane.f32.xlu0 %v1217
        %v1598 = vpop.xlane.xlu0 %1597
        %1599 = vmax.xlane.f32.xlu0 %v1222
        %v1600 = vpop.xlane.xlu0 %1599
        %1601 = vmax.xlane.f32.xlu0 %v1227
        %v1602 = vpop.xlane.xlu0 %1601
        %1603 = vmax.xlane.f32.xlu0 %v1232
        %v1604 = vpop.xlane.xlu0 %1603
        %1605 = vmax.xlane.f32.xlu0 %v1237
        %v1606 = vpop.xlane.xlu0 %1605
        %1607 = vmax.xlane.f32.xlu0 %v1242
        %v1608 = vpop.xlane.xlu0 %1607
        %1609 = vmax.xlane.f32.xlu0 %v1247
        %v1610 = vpop.xlane.xlu0 %1609
        %1611 = vmax.xlane.f32.xlu0 %v1252
        %v1612 = vpop.xlane.xlu0 %1611
        %1613 = vmax.xlane.f32.xlu0 %v1257
        %v1614 = vpop.xlane.xlu0 %1613
        %1615 = vmax.xlane.f32.xlu0 %v1262
        %v1616 = vpop.xlane.xlu0 %1615
        %1617 = vmax.xlane.f32.xlu0 %v1267
        %v1618 = vpop.xlane.xlu0 %1617
        %1619 = vmax.xlane.f32.xlu0 %v1272
        %v1620 = vpop.xlane.xlu0 %1619
        %1621 = vmax.xlane.f32.xlu0 %v1277
        %v1622 = vpop.xlane.xlu0 %1621
        %1623 = vmax.xlane.f32.xlu0 %v1282
        %v1624 = vpop.xlane.xlu0 %1623
        %1625 = vmax.xlane.f32.xlu0 %v1287
        %v1626 = vpop.xlane.xlu0 %1625
        %1627 = vmax.xlane.f32.xlu0 %v1453
        %v1628 = vpop.xlane.xlu0 %1627
        %1629 = vmax.xlane.f32.xlu0 %v1458
        %v1630 = vpop.xlane.xlu0 %1629
        %1631 = vmax.xlane.f32.xlu0 %v1463
        %v1632 = vpop.xlane.xlu0 %1631
        %1633 = vmax.xlane.f32.xlu0 %v1468
        %v1634 = vpop.xlane.xlu0 %1633
        %1635 = vmax.xlane.f32.xlu0 %v1473
        %v1636 = vpop.xlane.xlu0 %1635
        %1637 = vmax.xlane.f32.xlu0 %v1478
        %v1638 = vpop.xlane.xlu0 %1637
        %1639 = vmax.xlane.f32.xlu0 %v1483
        %v1640 = vpop.xlane.xlu0 %1639
        %1641 = vmax.xlane.f32.xlu0 %v1488
        %v1642 = vpop.xlane.xlu0 %1641
        %1643 = vmax.xlane.f32.xlu0 %v1493
        %v1644 = vpop.xlane.xlu0 %1643
        %1645 = vmax.xlane.f32.xlu0 %v1498
        %v1646 = vpop.xlane.xlu0 %1645
        %1647 = vmax.xlane.f32.xlu0 %v1503
        %v1648 = vpop.xlane.xlu0 %1647
        %1649 = vmax.xlane.f32.xlu0 %v1508
        %v1650 = vpop.xlane.xlu0 %1649
        %1651 = vmax.xlane.f32.xlu0 %v1513
        %v1652 = vpop.xlane.xlu0 %1651
        %1653 = vmax.xlane.f32.xlu0 %v1518
        %v1654 = vpop.xlane.xlu0 %1653
        %1655 = vmax.xlane.f32.xlu0 %v1523
        %v1656 = vpop.xlane.xlu0 %1655
        %1657 = vmax.xlane.f32.xlu0 %v1528
        %v1658 = vpop.xlane.xlu0 %1657
        %v1659 = vsub.f32 %v730, %v1532
        %v1660 = vsub.f32 %v735, %v1534
        %v1661 = vsub.f32 %v740, %v1536
        %v1662 = vsub.f32 %v745, %v1538
        %v1663 = vsub.f32 %v750, %v1540
        %v1664 = vsub.f32 %v755, %v1542
        %v1665 = vsub.f32 %v760, %v1544
        %v1666 = vsub.f32 %v765, %v1546
        %v1667 = vsub.f32 %v770, %v1548
        %v1668 = vsub.f32 %v775, %v1550
        %v1669 = vsub.f32 %v780, %v1552
        %v1670 = vsub.f32 %v785, %v1554
        %v1671 = vsub.f32 %v790, %v1556
        %v1672 = vsub.f32 %v795, %v1558
        %v1673 = vsub.f32 %v800, %v1560
        %v1674 = vsub.f32 %v805, %v1562
        %v1675 = vsub.f32 %v971, %v1564
        %v1676 = vsub.f32 %v976, %v1566
        %v1677 = vsub.f32 %v981, %v1568
        %v1678 = vsub.f32 %v986, %v1570
        %v1679 = vsub.f32 %v991, %v1572
        %v1680 = vsub.f32 %v996, %v1574
        %v1681 = vsub.f32 %v1001, %v1576
        %v1682 = vsub.f32 %v1006, %v1578
        %v1683 = vsub.f32 %v1011, %v1580
        %v1684 = vsub.f32 %v1016, %v1582
        %v1685 = vsub.f32 %v1021, %v1584
        %v1686 = vsub.f32 %v1026, %v1586
        %v1687 = vsub.f32 %v1031, %v1588
        %v1688 = vsub.f32 %v1036, %v1590
        %v1689 = vsub.f32 %v1041, %v1592
        %v1690 = vsub.f32 %v1046, %v1594
        %v1691 = vsub.f32 %v1212, %v1596
        %v1692 = vsub.f32 %v1217, %v1598
        %v1693 = vsub.f32 %v1222, %v1600
        %v1694 = vsub.f32 %v1227, %v1602
        %v1695 = vsub.f32 %v1232, %v1604
        %v1696 = vsub.f32 %v1237, %v1606
        %v1697 = vsub.f32 %v1242, %v1608
        %v1698 = vsub.f32 %v1247, %v1610
        %v1699 = vsub.f32 %v1252, %v1612
        %v1700 = vsub.f32 %v1257, %v1614
        %v1701 = vsub.f32 %v1262, %v1616
        %v1702 = vsub.f32 %v1267, %v1618
        %v1703 = vsub.f32 %v1272, %v1620
        %v1704 = vsub.f32 %v1277, %v1622
        %v1705 = vsub.f32 %v1282, %v1624
        %v1706 = vsub.f32 %v1287, %v1626
        %v1707 = vsub.f32 %v1453, %v1628
        %v1708 = vsub.f32 %v1458, %v1630
        %v1709 = vsub.f32 %v1463, %v1632
        %v1710 = vsub.f32 %v1468, %v1634
        %v1711 = vsub.f32 %v1473, %v1636
        %v1712 = vsub.f32 %v1478, %v1638
        %v1713 = vsub.f32 %v1483, %v1640
        %v1714 = vsub.f32 %v1488, %v1642
        %v1715 = vsub.f32 %v1493, %v1644
        %v1716 = vsub.f32 %v1498, %v1646
        %v1717 = vsub.f32 %v1503, %v1648
        %v1718 = vsub.f32 %v1508, %v1650
        %v1719 = vsub.f32 %v1513, %v1652
        %v1720 = vsub.f32 %v1518, %v1654
        %v1721 = vsub.f32 %v1523, %v1656
        %v1722 = vsub.f32 %v1528, %v1658
        %v1723 = vmul.f32 %v1659, 1.442695
        %v1724 = vpow.pop %v1723
        %v1725 = vmul.f32 %v1660, 1.442695
        %v1726 = vpow.pop %v1725
        %v1727 = vmul.f32 %v1661, 1.442695
        %v1728 = vpow.pop %v1727
        %v1729 = vmul.f32 %v1662, 1.442695
        %v1730 = vpow.pop %v1729
        %v1731 = vmul.f32 %v1663, 1.442695
        %v1732 = vpow.pop %v1731
        %v1733 = vmul.f32 %v1664, 1.442695
        %v1734 = vpow.pop %v1733
        %v1735 = vmul.f32 %v1665, 1.442695
        %v1736 = vpow.pop %v1735
        %v1737 = vmul.f32 %v1666, 1.442695
        %v1738 = vpow.pop %v1737
        %v1739 = vmul.f32 %v1667, 1.442695
        %v1740 = vpow.pop %v1739
        %v1741 = vmul.f32 %v1668, 1.442695
        %v1742 = vpow.pop %v1741
        %v1743 = vmul.f32 %v1669, 1.442695
        %v1744 = vpow.pop %v1743
        %v1745 = vmul.f32 %v1670, 1.442695
        %v1746 = vpow.pop %v1745
        %v1747 = vmul.f32 %v1671, 1.442695
        %v1748 = vpow.pop %v1747
        %v1749 = vmul.f32 %v1672, 1.442695
        %v1750 = vpow.pop %v1749
        %v1751 = vmul.f32 %v1673, 1.442695
        %v1752 = vpow.pop %v1751
        %v1753 = vmul.f32 %v1674, 1.442695
        %v1754 = vpow.pop %v1753
        %v1755 = vmul.f32 %v1675, 1.442695
        %v1756 = vpow.pop %v1755
        %v1757 = vmul.f32 %v1676, 1.442695
        %v1758 = vpow.pop %v1757
        %v1759 = vmul.f32 %v1677, 1.442695
        %v1760 = vpow.pop %v1759
        %v1761 = vmul.f32 %v1678, 1.442695
        %v1762 = vpow.pop %v1761
        %v1763 = vmul.f32 %v1679, 1.442695
        %v1764 = vpow.pop %v1763
        %v1765 = vmul.f32 %v1680, 1.442695
        %v1766 = vpow.pop %v1765
        %v1767 = vmul.f32 %v1681, 1.442695
        %v1768 = vpow.pop %v1767
        %v1769 = vmul.f32 %v1682, 1.442695
        %v1770 = vpow.pop %v1769
        %v1771 = vmul.f32 %v1683, 1.442695
        %v1772 = vpow.pop %v1771
        %v1773 = vmul.f32 %v1684, 1.442695
        %v1774 = vpow.pop %v1773
        %v1775 = vmul.f32 %v1685, 1.442695
        %v1776 = vpow.pop %v1775
        %v1777 = vmul.f32 %v1686, 1.442695
        %v1778 = vpow.pop %v1777
        %v1779 = vmul.f32 %v1687, 1.442695
        %v1780 = vpow.pop %v1779
        %v1781 = vmul.f32 %v1688, 1.442695
        %v1782 = vpow.pop %v1781
        %v1783 = vmul.f32 %v1689, 1.442695
        %v1784 = vpow.pop %v1783
        %v1785 = vmul.f32 %v1690, 1.442695
        %v1786 = vpow.pop %v1785
        %v1787 = vmul.f32 %v1691, 1.442695
        %v1788 = vpow.pop %v1787
        %v1789 = vmul.f32 %v1692, 1.442695
        %v1790 = vpow.pop %v1789
        %v1791 = vmul.f32 %v1693, 1.442695
        %v1792 = vpow.pop %v1791
        %v1793 = vmul.f32 %v1694, 1.442695
        %v1794 = vpow.pop %v1793
        %v1795 = vmul.f32 %v1695, 1.442695
        %v1796 = vpow.pop %v1795
        %v1797 = vmul.f32 %v1696, 1.442695
        %v1798 = vpow.pop %v1797
        %v1799 = vmul.f32 %v1697, 1.442695
        %v1800 = vpow.pop %v1799
        %v1801 = vmul.f32 %v1698, 1.442695
        %v1802 = vpow.pop %v1801
        %v1803 = vmul.f32 %v1699, 1.442695
        %v1804 = vpow.pop %v1803
        %v1805 = vmul.f32 %v1700, 1.442695
        %v1806 = vpow.pop %v1805
        %v1807 = vmul.f32 %v1701, 1.442695
        %v1808 = vpow.pop %v1807
        %v1809 = vmul.f32 %v1702, 1.442695
        %v1810 = vpow.pop %v1809
        %v1811 = vmul.f32 %v1703, 1.442695
        %v1812 = vpow.pop %v1811
        %v1813 = vmul.f32 %v1704, 1.442695
        %v1814 = vpow.pop %v1813
        %v1815 = vmul.f32 %v1705, 1.442695
        %v1816 = vpow.pop %v1815
        %v1817 = vmul.f32 %v1706, 1.442695
        %v1818 = vpow.pop %v1817
        %v1819 = vmul.f32 %v1707, 1.442695
        %v1820 = vpow.pop %v1819
        %v1821 = vmul.f32 %v1708, 1.442695
        %v1822 = vpow.pop %v1821
        %v1823 = vmul.f32 %v1709, 1.442695
        %v1824 = vpow.pop %v1823
        %v1825 = vmul.f32 %v1710, 1.442695
        %v1826 = vpow.pop %v1825
        %v1827 = vmul.f32 %v1711, 1.442695
        %v1828 = vpow.pop %v1827
        %v1829 = vmul.f32 %v1712, 1.442695
        %v1830 = vpow.pop %v1829
        %v1831 = vmul.f32 %v1713, 1.442695
        %v1832 = vpow.pop %v1831
        %v1833 = vmul.f32 %v1714, 1.442695
        %v1834 = vpow.pop %v1833
        %v1835 = vmul.f32 %v1715, 1.442695
        %v1836 = vpow.pop %v1835
        %v1837 = vmul.f32 %v1716, 1.442695
        %v1838 = vpow.pop %v1837
        %v1839 = vmul.f32 %v1717, 1.442695
        %v1840 = vpow.pop %v1839
        %v1841 = vmul.f32 %v1718, 1.442695
        %v1842 = vpow.pop %v1841
        %v1843 = vmul.f32 %v1719, 1.442695
        %v1844 = vpow.pop %v1843
        %v1845 = vmul.f32 %v1720, 1.442695
        %v1846 = vpow.pop %v1845
        %v1847 = vmul.f32 %v1721, 1.442695
        %v1848 = vpow.pop %v1847
        %v1849 = vmul.f32 %v1722, 1.442695
        %v1850 = vpow.pop %v1849
        %1851 = vadd.xlane.f32.xlu0 %v1724
        %v1852 = vpop.xlane.xlu0 %1851
        %1853 = vadd.xlane.f32.xlu0 %v1726
        %v1854 = vpop.xlane.xlu0 %1853
        %1855 = vadd.xlane.f32.xlu0 %v1728
        %v1856 = vpop.xlane.xlu0 %1855
        %1857 = vadd.xlane.f32.xlu0 %v1730
        %v1858 = vpop.xlane.xlu0 %1857
        %1859 = vadd.xlane.f32.xlu0 %v1732
        %v1860 = vpop.xlane.xlu0 %1859
        %1861 = vadd.xlane.f32.xlu0 %v1734
        %v1862 = vpop.xlane.xlu0 %1861
        %1863 = vadd.xlane.f32.xlu0 %v1736
        %v1864 = vpop.xlane.xlu0 %1863
        %1865 = vadd.xlane.f32.xlu0 %v1738
        %v1866 = vpop.xlane.xlu0 %1865
        %1867 = vadd.xlane.f32.xlu0 %v1740
        %v1868 = vpop.xlane.xlu0 %1867
        %1869 = vadd.xlane.f32.xlu0 %v1742
        %v1870 = vpop.xlane.xlu0 %1869
        %1871 = vadd.xlane.f32.xlu0 %v1744
        %v1872 = vpop.xlane.xlu0 %1871
        %1873 = vadd.xlane.f32.xlu0 %v1746
        %v1874 = vpop.xlane.xlu0 %1873
        %1875 = vadd.xlane.f32.xlu0 %v1748
        %v1876 = vpop.xlane.xlu0 %1875
        %1877 = vadd.xlane.f32.xlu0 %v1750
        %v1878 = vpop.xlane.xlu0 %1877
        %1879 = vadd.xlane.f32.xlu0 %v1752
        %v1880 = vpop.xlane.xlu0 %1879
        %1881 = vadd.xlane.f32.xlu0 %v1754
        %v1882 = vpop.xlane.xlu0 %1881
        %1883 = vadd.xlane.f32.xlu0 %v1756
        %v1884 = vpop.xlane.xlu0 %1883
        %1885 = vadd.xlane.f32.xlu0 %v1758
        %v1886 = vpop.xlane.xlu0 %1885
        %1887 = vadd.xlane.f32.xlu0 %v1760
        %v1888 = vpop.xlane.xlu0 %1887
        %1889 = vadd.xlane.f32.xlu0 %v1762
        %v1890 = vpop.xlane.xlu0 %1889
        %1891 = vadd.xlane.f32.xlu0 %v1764
        %v1892 = vpop.xlane.xlu0 %1891
        %1893 = vadd.xlane.f32.xlu0 %v1766
        %v1894 = vpop.xlane.xlu0 %1893
        %1895 = vadd.xlane.f32.xlu0 %v1768
        %v1896 = vpop.xlane.xlu0 %1895
        %1897 = vadd.xlane.f32.xlu0 %v1770
        %v1898 = vpop.xlane.xlu0 %1897
        %1899 = vadd.xlane.f32.xlu0 %v1772
        %v1900 = vpop.xlane.xlu0 %1899
        %1901 = vadd.xlane.f32.xlu0 %v1774
        %v1902 = vpop.xlane.xlu0 %1901
        %1903 = vadd.xlane.f32.xlu0 %v1776
        %v1904 = vpop.xlane.xlu0 %1903
        %1905 = vadd.xlane.f32.xlu0 %v1778
        %v1906 = vpop.xlane.xlu0 %1905
        %1907 = vadd.xlane.f32.xlu0 %v1780
        %v1908 = vpop.xlane.xlu0 %1907
        %1909 = vadd.xlane.f32.xlu0 %v1782
        %v1910 = vpop.xlane.xlu0 %1909
        %1911 = vadd.xlane.f32.xlu0 %v1784
        %v1912 = vpop.xlane.xlu0 %1911
        %1913 = vadd.xlane.f32.xlu0 %v1786
        %v1914 = vpop.xlane.xlu0 %1913
        %1915 = vadd.xlane.f32.xlu0 %v1788
        %v1916 = vpop.xlane.xlu0 %1915
        %1917 = vadd.xlane.f32.xlu0 %v1790
        %v1918 = vpop.xlane.xlu0 %1917
        %1919 = vadd.xlane.f32.xlu0 %v1792
        %v1920 = vpop.xlane.xlu0 %1919
        %1921 = vadd.xlane.f32.xlu0 %v1794
        %v1922 = vpop.xlane.xlu0 %1921
        %1923 = vadd.xlane.f32.xlu0 %v1796
        %v1924 = vpop.xlane.xlu0 %1923
        %1925 = vadd.xlane.f32.xlu0 %v1798
        %v1926 = vpop.xlane.xlu0 %1925
        %1927 = vadd.xlane.f32.xlu0 %v1800
        %v1928 = vpop.xlane.xlu0 %1927
        %1929 = vadd.xlane.f32.xlu0 %v1802
        %v1930 = vpop.xlane.xlu0 %1929
        %1931 = vadd.xlane.f32.xlu0 %v1804
        %v1932 = vpop.xlane.xlu0 %1931
        %1933 = vadd.xlane.f32.xlu0 %v1806
        %v1934 = vpop.xlane.xlu0 %1933
        %1935 = vadd.xlane.f32.xlu0 %v1808
        %v1936 = vpop.xlane.xlu0 %1935
        %1937 = vadd.xlane.f32.xlu0 %v1810
        %v1938 = vpop.xlane.xlu0 %1937
        %1939 = vadd.xlane.f32.xlu0 %v1812
        %v1940 = vpop.xlane.xlu0 %1939
        %1941 = vadd.xlane.f32.xlu0 %v1814
        %v1942 = vpop.xlane.xlu0 %1941
        %1943 = vadd.xlane.f32.xlu0 %v1816
        %v1944 = vpop.xlane.xlu0 %1943
        %1945 = vadd.xlane.f32.xlu0 %v1818
        %v1946 = vpop.xlane.xlu0 %1945
        %1947 = vadd.xlane.f32.xlu0 %v1820
        %v1948 = vpop.xlane.xlu0 %1947
        %1949 = vadd.xlane.f32.xlu0 %v1822
        %v1950 = vpop.xlane.xlu0 %1949
        %1951 = vadd.xlane.f32.xlu0 %v1824
        %v1952 = vpop.xlane.xlu0 %1951
        %1953 = vadd.xlane.f32.xlu0 %v1826
        %v1954 = vpop.xlane.xlu0 %1953
        %1955 = vadd.xlane.f32.xlu0 %v1828
        %v1956 = vpop.xlane.xlu0 %1955
        %1957 = vadd.xlane.f32.xlu0 %v1830
        %v1958 = vpop.xlane.xlu0 %1957
        %1959 = vadd.xlane.f32.xlu0 %v1832
        %v1960 = vpop.xlane.xlu0 %1959
        %1961 = vadd.xlane.f32.xlu0 %v1834
        %v1962 = vpop.xlane.xlu0 %1961
        %1963 = vadd.xlane.f32.xlu0 %v1836
        %v1964 = vpop.xlane.xlu0 %1963
        %1965 = vadd.xlane.f32.xlu0 %v1838
        %v1966 = vpop.xlane.xlu0 %1965
        %1967 = vadd.xlane.f32.xlu0 %v1840
        %v1968 = vpop.xlane.xlu0 %1967
        %1969 = vadd.xlane.f32.xlu0 %v1842
        %v1970 = vpop.xlane.xlu0 %1969
        %1971 = vadd.xlane.f32.xlu0 %v1844
        %v1972 = vpop.xlane.xlu0 %1971
        %1973 = vadd.xlane.f32.xlu0 %v1846
        %v1974 = vpop.xlane.xlu0 %1973
        %1975 = vadd.xlane.f32.xlu0 %v1848
        %v1976 = vpop.xlane.xlu0 %1975
        %1977 = vadd.xlane.f32.xlu0 %v1850
        %v1978 = vpop.xlane.xlu0 %1977
        %v1979 = vrcp.pop %v1852
        %v1980 = vrcp.pop %v1854
        %v1981 = vrcp.pop %v1856
        %v1982 = vrcp.pop %v1858
        %v1983 = vrcp.pop %v1860
        %v1984 = vrcp.pop %v1862
        %v1985 = vrcp.pop %v1864
        %v1986 = vrcp.pop %v1866
        %v1987 = vrcp.pop %v1868
        %v1988 = vrcp.pop %v1870
        %v1989 = vrcp.pop %v1872
        %v1990 = vrcp.pop %v1874
        %v1991 = vrcp.pop %v1876
        %v1992 = vrcp.pop %v1878
        %v1993 = vrcp.pop %v1880
        %v1994 = vrcp.pop %v1882
        %v1995 = vrcp.pop %v1884
        %v1996 = vrcp.pop %v1886
        %v1997 = vrcp.pop %v1888
        %v1998 = vrcp.pop %v1890
        %v1999 = vrcp.pop %v1892
        %v2000 = vrcp.pop %v1894
        %v2001 = vrcp.pop %v1896
        %v2002 = vrcp.pop %v1898
        %v2003 = vrcp.pop %v1900
        %v2004 = vrcp.pop %v1902
        %v2005 = vrcp.pop %v1904
        %v2006 = vrcp.pop %v1906
        %v2007 = vrcp.pop %v1908
        %v2008 = vrcp.pop %v1910
        %v2009 = vrcp.pop %v1912
        %v2010 = vrcp.pop %v1914
        %v2011 = vrcp.pop %v1916
        %v2012 = vrcp.pop %v1918
        %v2013 = vrcp.pop %v1920
        %v2014 = vrcp.pop %v1922
        %v2015 = vrcp.pop %v1924
        %v2016 = vrcp.pop %v1926
        %v2017 = vrcp.pop %v1928
        %v2018 = vrcp.pop %v1930
        %v2019 = vrcp.pop %v1932
        %v2020 = vrcp.pop %v1934
        %v2021 = vrcp.pop %v1936
        %v2022 = vrcp.pop %v1938
        %v2023 = vrcp.pop %v1940
        %v2024 = vrcp.pop %v1942
        %v2025 = vrcp.pop %v1944
        %v2026 = vrcp.pop %v1946
        %v2027 = vrcp.pop %v1948
        %v2028 = vrcp.pop %v1950
        %v2029 = vrcp.pop %v1952
        %v2030 = vrcp.pop %v1954
        %v2031 = vrcp.pop %v1956
        %v2032 = vrcp.pop %v1958
        %v2033 = vrcp.pop %v1960
        %v2034 = vrcp.pop %v1962
        %v2035 = vrcp.pop %v1964
        %v2036 = vrcp.pop %v1966
        %v2037 = vrcp.pop %v1968
        %v2038 = vrcp.pop %v1970
        %v2039 = vrcp.pop %v1972
        %v2040 = vrcp.pop %v1974
        %v2041 = vrcp.pop %v1976
        %v2042 = vrcp.pop %v1978
        %v2043 = vmul.f32 %v1724, %v1979
        %v2044 = vmul.f32 %v1726, %v1980
        %v2045 = vmul.f32 %v1728, %v1981
        %v2046 = vmul.f32 %v1730, %v1982
        %v2047 = vmul.f32 %v1732, %v1983
        %v2048 = vmul.f32 %v1734, %v1984
        %v2049 = vmul.f32 %v1736, %v1985
        %v2050 = vmul.f32 %v1738, %v1986
        %v2051 = vmul.f32 %v1740, %v1987
        %v2052 = vmul.f32 %v1742, %v1988
        %v2053 = vmul.f32 %v1744, %v1989
        %v2054 = vmul.f32 %v1746, %v1990
        %v2055 = vmul.f32 %v1748, %v1991
        %v2056 = vmul.f32 %v1750, %v1992
        %v2057 = vmul.f32 %v1752, %v1993
        %v2058 = vmul.f32 %v1754, %v1994
        %v2059 = vmul.f32 %v1756, %v1995
        %v2060 = vmul.f32 %v1758, %v1996
        %v2061 = vmul.f32 %v1760, %v1997
        %v2062 = vmul.f32 %v1762, %v1998
        %v2063 = vmul.f32 %v1764, %v1999
        %v2064 = vmul.f32 %v1766, %v2000
        %v2065 = vmul.f32 %v1768, %v2001
        %v2066 = vmul.f32 %v1770, %v2002
        %v2067 = vmul.f32 %v1772, %v2003
        %v2068 = vmul.f32 %v1774, %v2004
        %v2069 = vmul.f32 %v1776, %v2005
        %v2070 = vmul.f32 %v1778, %v2006
        %v2071 = vmul.f32 %v1780, %v2007
        %v2072 = vmul.f32 %v1782, %v2008
        %v2073 = vmul.f32 %v1784, %v2009
        %v2074 = vmul.f32 %v1786, %v2010
        %v2075 = vmul.f32 %v1788, %v2011
        %v2076 = vmul.f32 %v1790, %v2012
        %v2077 = vmul.f32 %v1792, %v2013
        %v2078 = vmul.f32 %v1794, %v2014
        %v2079 = vmul.f32 %v1796, %v2015
        %v2080 = vmul.f32 %v1798, %v2016
        %v2081 = vmul.f32 %v1800, %v2017
        %v2082 = vmul.f32 %v1802, %v2018
        %v2083 = vmul.f32 %v1804, %v2019
        %v2084 = vmul.f32 %v1806, %v2020
        %v2085 = vmul.f32 %v1808, %v2021
        %v2086 = vmul.f32 %v1810, %v2022
        %v2087 = vmul.f32 %v1812, %v2023
        %v2088 = vmul.f32 %v1814, %v2024
        %v2089 = vmul.f32 %v1816, %v2025
        %v2090 = vmul.f32 %v1818, %v2026
        %v2091 = vmul.f32 %v1820, %v2027
        %v2092 = vmul.f32 %v1822, %v2028
        %v2093 = vmul.f32 %v1824, %v2029
        %v2094 = vmul.f32 %v1826, %v2030
        %v2095 = vmul.f32 %v1828, %v2031
        %v2096 = vmul.f32 %v1830, %v2032
        %v2097 = vmul.f32 %v1832, %v2033
        %v2098 = vmul.f32 %v1834, %v2034
        %v2099 = vmul.f32 %v1836, %v2035
        %v2100 = vmul.f32 %v1838, %v2036
        %v2101 = vmul.f32 %v1840, %v2037
        %v2102 = vmul.f32 %v1842, %v2038
        %v2103 = vmul.f32 %v1844, %v2039
        %v2104 = vmul.f32 %v1846, %v2040
        %v2105 = vmul.f32 %v1848, %v2041
        %v2106 = vmul.f32 %v1850, %v2042
        %2107 = vst [vmem:[%s257] sm:$0xff] %v2043
        %2108 = vst [vmem:[%s257 + $0x8] sm:$0xff] %v2044
        %2109 = vst [vmem:[%s257 + $0x10] sm:$0xff] %v2045
        %2110 = vst [vmem:[%s257 + $0x18] sm:$0xff] %v2046
        %2111 = vst [vmem:[%s257 + $0x20] sm:$0xff] %v2047
        %2112 = vst [vmem:[%s257 + $0x28] sm:$0xff] %v2048
        %2113 = vst [vmem:[%s257 + $0x30] sm:$0xff] %v2049
        %2114 = vst [vmem:[%s257 + $0x38] sm:$0xff] %v2050
        %2115 = vst [vmem:[%s257 + $0x40] sm:$0xff] %v2051
        %2116 = vst [vmem:[%s257 + $0x48] sm:$0xff] %v2052
        %2117 = vst [vmem:[%s257 + $0x50] sm:$0xff] %v2053
        %2118 = vst [vmem:[%s257 + $0x58] sm:$0xff] %v2054
        %2119 = vst [vmem:[%s257 + $0x60] sm:$0xff] %v2055
        %2120 = vst [vmem:[%s257 + $0x68] sm:$0xff] %v2056
        %2121 = vst [vmem:[%s257 + $0x70] sm:$0xff] %v2057
        %2122 = vst [vmem:[%s257 + $0x78] sm:$0xff] %v2058
        %2123 = vst [vmem:[%s257 + $0x80] sm:$0xff] %v2059
        %2124 = vst [vmem:[%s257 + $0x88] sm:$0xff] %v2060
        %2125 = vst [vmem:[%s257 + $0x90] sm:$0xff] %v2061
        %2126 = vst [vmem:[%s257 + $0x98] sm:$0xff] %v2062
        %2127 = vst [vmem:[%s257 + $0xa0] sm:$0xff] %v2063
        %2128 = vst [vmem:[%s257 + $0xa8] sm:$0xff] %v2064
        %2129 = vst [vmem:[%s257 + $0xb0] sm:$0xff] %v2065
        %2130 = vst [vmem:[%s257 + $0xb8] sm:$0xff] %v2066
        %2131 = vst [vmem:[%s257 + $0xc0] sm:$0xff] %v2067
        %2132 = vst [vmem:[%s257 + $0xc8] sm:$0xff] %v2068
        %2133 = vst [vmem:[%s257 + $0xd0] sm:$0xff] %v2069
        %2134 = vst [vmem:[%s257 + $0xd8] sm:$0xff] %v2070
        %2135 = vst [vmem:[%s257 + $0xe0] sm:$0xff] %v2071
        %2136 = vst [vmem:[%s257 + $0xe8] sm:$0xff] %v2072
        %2137 = vst [vmem:[%s257 + $0xf0] sm:$0xff] %v2073
        %2138 = vst [vmem:[%s257 + $0xf8] sm:$0xff] %v2074
        %2139 = vst [vmem:[%s257 + $0x100] sm:$0xff] %v2075
        %2140 = vst [vmem:[%s257 + $0x108] sm:$0xff] %v2076
        %2141 = vst [vmem:[%s257 + $0x110] sm:$0xff] %v2077
        %2142 = vst [vmem:[%s257 + $0x118] sm:$0xff] %v2078
        %2143 = vst [vmem:[%s257 + $0x120] sm:$0xff] %v2079
        %2144 = vst [vmem:[%s257 + $0x128] sm:$0xff] %v2080
        %2145 = vst [vmem:[%s257 + $0x130] sm:$0xff] %v2081
        %2146 = vst [vmem:[%s257 + $0x138] sm:$0xff] %v2082
        %2147 = vst [vmem:[%s257 + $0x140] sm:$0xff] %v2083
        %2148 = vst [vmem:[%s257 + $0x148] sm:$0xff] %v2084
        %2149 = vst [vmem:[%s257 + $0x150] sm:$0xff] %v2085
        %2150 = vst [vmem:[%s257 + $0x158] sm:$0xff] %v2086
        %2151 = vst [vmem:[%s257 + $0x160] sm:$0xff] %v2087
        %2152 = vst [vmem:[%s257 + $0x168] sm:$0xff] %v2088
        %2153 = vst [vmem:[%s257 + $0x170] sm:$0xff] %v2089
        %2154 = vst [vmem:[%s257 + $0x178] sm:$0xff] %v2090
        %2155 = vst [vmem:[%s257 + $0x180] sm:$0xff] %v2091
        %2156 = vst [vmem:[%s257 + $0x188] sm:$0xff] %v2092
        %2157 = vst [vmem:[%s257 + $0x190] sm:$0xff] %v2093
        %2158 = vst [vmem:[%s257 + $0x198] sm:$0xff] %v2094
        %2159 = vst [vmem:[%s257 + $0x1a0] sm:$0xff] %v2095
        %2160 = vst [vmem:[%s257 + $0x1a8] sm:$0xff] %v2096
        %2161 = vst [vmem:[%s257 + $0x1b0] sm:$0xff] %v2097
        %2162 = vst [vmem:[%s257 + $0x1b8] sm:$0xff] %v2098
        %2163 = vst [vmem:[%s257 + $0x1c0] sm:$0xff] %v2099
        %2164 = vst [vmem:[%s257 + $0x1c8] sm:$0xff] %v2100
        %2165 = vst [vmem:[%s257 + $0x1d0] sm:$0xff] %v2101
        %2166 = vst [vmem:[%s257 + $0x1d8] sm:$0xff] %v2102
        %2167 = vst [vmem:[%s257 + $0x1e0] sm:$0xff] %v2103
        %2168 = vst [vmem:[%s257 + $0x1e8] sm:$0xff] %v2104
        %2169 = vst [vmem:[%s257 + $0x1f0] sm:$0xff] %v2105
        %2170 = vst [vmem:[%s257 + $0x1f8] sm:$0xff] %v2106
        %2171 = vmatprep.subr.mxu0 0.0
        %2172 = vmatpush1.msra.mxu0 %v502
        %2173 = vmatprep.subr.mxu0 0.0
        %2174 = vmatpush1.msra.mxu0 %v503
        %2175 = vmatprep.subr.mxu0 0.0
        %2176 = vmatpush1.msra.mxu0 %v504
        %2177 = vmatprep.subr.mxu0 0.0
        %2178 = vmatpush1.msra.mxu0 %v505
        %2179 = vmatprep.subr.mxu0 0.0
        %2180 = vmatpush1.msra.mxu0 %v506
        %2181 = vmatprep.subr.mxu0 0.0
        %2182 = vmatpush1.msra.mxu0 %v507
        %2183 = vmatprep.subr.mxu0 0.0
        %2184 = vmatpush1.msra.mxu0 %v508
        %2185 = vmatprep.subr.mxu0 0.0
        %2186 = vmatpush1.msra.mxu0 %v509
        %2187 = vmatprep.subr.mxu0 0.0
        %2188 = vmatpush1.msra.mxu0 %v510
        %2189 = vmatprep.subr.mxu0 0.0
        %2190 = vmatpush1.msra.mxu0 %v511
        %2191 = vmatprep.subr.mxu0 0.0
        %2192 = vmatpush1.msra.mxu0 %v512
        %2193 = vmatprep.subr.mxu0 0.0
        %2194 = vmatpush1.msra.mxu0 %v513
        %2195 = vmatprep.subr.mxu0 0.0
        %2196 = vmatpush1.msra.mxu0 %v514
        %2197 = vmatprep.subr.mxu0 0.0
        %2198 = vmatpush1.msra.mxu0 %v515
        %2199 = vmatprep.subr.mxu0 0.0
        %2200 = vmatpush1.msra.mxu0 %v516
        %2201 = vmatprep.subr.mxu0 0.0
        %2202 = vmatpush1.msra.mxu0 %v517
        %2203 = vmatprep.subr.mxu0 0.0
        %2204 = vmatpush1.msra.mxu0 0.0
        %2205 = vmatprep.subr.mxu0 0.0
        %2206 = vmatpush1.msra.mxu0 0.0
        %2207 = vmatprep.subr.mxu0 0.0
        %2208 = vmatpush1.msra.mxu0 0.0
        %2209 = vmatprep.subr.mxu0 0.0
        %2210 = vmatpush1.msra.mxu0 0.0
        %2211 = vmatprep.subr.mxu0 0.0
        %2212 = vmatpush1.msra.mxu0 0.0
        %2213 = vmatprep.subr.mxu0 0.0
        %2214 = vmatpush1.msra.mxu0 0.0
        %2215 = vmatprep.subr.mxu0 0.0
        %2216 = vmatpush1.msra.mxu0 0.0
        %2217 = vmatprep.subr.mxu0 0.0
        %2218 = vmatpush1.msra.mxu0 0.0
        %2219 = vmatprep.subr.mxu0 0.0
        %2220 = vmatpush1.msra.mxu0 0.0
        %2221 = vmatprep.subr.mxu0 0.0
        %2222 = vmatpush1.msra.mxu0 0.0
        %2223 = vmatprep.subr.mxu0 0.0
        %2224 = vmatpush1.msra.mxu0 0.0
        %2225 = vmatprep.subr.mxu0 0.0
        %2226 = vmatpush1.msra.mxu0 0.0
        %2227 = vmatprep.subr.mxu0 0.0
        %2228 = vmatpush1.msra.mxu0 0.0
        %2229 = vmatprep.subr.mxu0 0.0
        %2230 = vmatpush1.msra.mxu0 0.0
        %2231 = vmatprep.subr.mxu0 0.0
        %2232 = vmatpush1.msra.mxu0 0.0
        %2233 = vmatprep.subr.mxu0 0.0
        %2234 = vmatpush1.msra.mxu0 0.0
        %2235 = vmatprep.mubr.f32.mxu0 0.0
        %2236 = vmatmul.mubr.f32.gmra.mrb[0].mxu0 %v2043
        %v2237 = vpop.f32.mrb[0].mxu0
        %v2238 = vadd.f32 0.0, %v2237
        %v2239 = vpop.f32.mrb[0].mxu0
        %2240 = vmatprep.mubr.f32.mxu0 0.0
        %2241 = vmatmul.mubr.f32.gmra.mrb[0].mxu0 %v2044
        %v2242 = vpop.f32.mrb[0].mxu0
        %v2243 = vadd.f32 0.0, %v2242
        %v2244 = vpop.f32.mrb[0].mxu0
        %2245 = vmatprep.mubr.f32.mxu0 0.0
        %2246 = vmatmul.mubr.f32.gmra.mrb[0].mxu0 %v2045
        %v2247 = vpop.f32.mrb[0].mxu0
        %v2248 = vadd.f32 0.0, %v2247
        %v2249 = vpop.f32.mrb[0].mxu0
        %2250 = vmatprep.mubr.f32.mxu0 0.0
        %2251 = vmatmul.mubr.f32.gmra.mrb[0].mxu0 %v2046
        %v2252 = vpop.f32.mrb[0].mxu0
        %v2253 = vadd.f32 0.0, %v2252
        %v2254 = vpop.f32.mrb[0].mxu0
        %2255 = vmatprep.mubr.f32.mxu0 0.0
        %2256 = vmatmul.mubr.f32.gmra.mrb[0].mxu0 %v2047
        %v2257 = vpop.f32.mrb[0].mxu0
        %v2258 = vadd.f32 0.0, %v2257
        %v2259 = vpop.f32.mrb[0].mxu0
        %2260 = vmatprep.mubr.f32.mxu0 0.0
        %2261 = vmatmul.mubr.f32.gmra.mrb[0].mxu0 %v2048
        %v2262 = vpop.f32.mrb[0].mxu0
        %v2263 = vadd.f32 0.0, %v2262
        %v2264 = vpop.f32.mrb[0].mxu0
        %2265 = vmatprep.mubr.f32.mxu0 0.0
        %2266 = vmatmul.mubr.f32.gmra.mrb[0].mxu0 %v2049
        %v2267 = vpop.f32.mrb[0].mxu0
        %v2268 = vadd.f32 0.0, %v2267
        %v2269 = vpop.f32.mrb[0].mxu0
        %2270 = vmatprep.mubr.f32.mxu0 0.0
        %2271 = vmatmul.mubr.f32.gmra.mrb[0].mxu0 %v2050
        %v2272 = vpop.f32.mrb[0].mxu0
        %v2273 = vadd.f32 0.0, %v2272
        %v2274 = vpop.f32.mrb[0].mxu0
        %2275 = vmatprep.mubr.f32.mxu0 0.0
        %2276 = vmatmul.mubr.f32.gmra.mrb[0].mxu0 %v2051
        %v2277 = vpop.f32.mrb[0].mxu0
        %v2278 = vadd.f32 0.0, %v2277
        %v2279 = vpop.f32.mrb[0].mxu0
        %2280 = vmatprep.mubr.f32.mxu0 0.0
        %2281 = vmatmul.mubr.f32.gmra.mrb[0].mxu0 %v2052
        %v2282 = vpop.f32.mrb[0].mxu0
        %v2283 = vadd.f32 0.0, %v2282
        %v2284 = vpop.f32.mrb[0].mxu0
        %2285 = vmatprep.mubr.f32.mxu0 0.0
        %2286 = vmatmul.mubr.f32.gmra.mrb[0].mxu0 %v2053
        %v2287 = vpop.f32.mrb[0].mxu0
        %v2288 = vadd.f32 0.0, %v2287
        %v2289 = vpop.f32.mrb[0].mxu0
        %2290 = vmatprep.mubr.f32.mxu0 0.0
        %2291 = vmatmul.mubr.f32.gmra.mrb[0].mxu0 %v2054
        %v2292 = vpop.f32.mrb[0].mxu0
        %v2293 = vadd.f32 0.0, %v2292
        %v2294 = vpop.f32.mrb[0].mxu0
        %2295 = vmatprep.mubr.f32.mxu0 0.0
        %2296 = vmatmul.mubr.f32.gmra.mrb[0].mxu0 %v2055
        %v2297 = vpop.f32.mrb[0].mxu0
        %v2298 = vadd.f32 0.0, %v2297
        %v2299 = vpop.f32.mrb[0].mxu0
        %2300 = vmatprep.mubr.f32.mxu0 0.0
        %2301 = vmatmul.mubr.f32.gmra.mrb[0].mxu0 %v2056
        %v2302 = vpop.f32.mrb[0].mxu0
        %v2303 = vadd.f32 0.0, %v2302
        %v2304 = vpop.f32.mrb[0].mxu0
        %2305 = vmatprep.mubr.f32.mxu0 0.0
        %2306 = vmatmul.mubr.f32.gmra.mrb[0].mxu0 %v2057
        %v2307 = vpop.f32.mrb[0].mxu0
        %v2308 = vadd.f32 0.0, %v2307
        %v2309 = vpop.f32.mrb[0].mxu0
        %2310 = vmatprep.mubr.f32.mxu0 0.0
        %2311 = vmatmul.mubr.f32.gmra.mrb[0].mxu0 %v2058
        %v2312 = vpop.f32.mrb[0].mxu0
        %v2313 = vadd.f32 0.0, %v2312
        %v2314 = vpop.f32.mrb[0].mxu0
        %2315 = vdwg.mxu0
        %2316 = vmatprep.subr.mxu0 0.0
        %2317 = vmatpush1.msra.mxu0 %v518
        %2318 = vmatprep.subr.mxu0 0.0
        %2319 = vmatpush1.msra.mxu0 %v519
        %2320 = vmatprep.subr.mxu0 0.0
        %2321 = vmatpush1.msra.mxu0 %v520
        %2322 = vmatprep.subr.mxu0 0.0
        %2323 = vmatpush1.msra.mxu0 %v521
        %2324 = vmatprep.subr.mxu0 0.0
        %2325 = vmatpush1.msra.mxu0 %v522
        %2326 = vmatprep.subr.mxu0 0.0
        %2327 = vmatpush1.msra.mxu0 %v523
        %2328 = vmatprep.subr.mxu0 0.0
        %2329 = vmatpush1.msra.mxu0 %v524
        %2330 = vmatprep.subr.mxu0 0.0
        %2331 = vmatpush1.msra.mxu0 %v525
        %2332 = vmatprep.subr.mxu0 0.0
        %2333 = vmatpush1.msra.mxu0 %v526
        %2334 = vmatprep.subr.mxu0 0.0
        %2335 = vmatpush1.msra.mxu0 %v527
        %2336 = vmatprep.subr.mxu0 0.0
        %2337 = vmatpush1.msra.mxu0 %v528
        %2338 = vmatprep.subr.mxu0 0.0
        %2339 = vmatpush1.msra.mxu0 %v529
        %2340 = vmatprep.subr.mxu0 0.0
        %2341 = vmatpush1.msra.mxu0 %v530
        %2342 = vmatprep.subr.mxu0 0.0
        %2343 = vmatpush1.msra.mxu0 %v531
        %2344 = vmatprep.subr.mxu0 0.0
        %2345 = vmatpush1.msra.mxu0 %v532
        %2346 = vmatprep.subr.mxu0 0.0
        %2347 = vmatpush1.msra.mxu0 %v533
        %2348 = vmatprep.subr.mxu0 0.0
        %2349 = vmatpush1.msra.mxu0 0.0
        %2350 = vmatprep.subr.mxu0 0.0
        %2351 = vmatpush1.msra.mxu0 0.0
        %2352 = vmatprep.subr.mxu0 0.0
        %2353 = vmatpush1.msra.mxu0 0.0
        %2354 = vmatprep.subr.mxu0 0.0
        %2355 = vmatpush1.msra.mxu0 0.0
        %2356 = vmatprep.subr.mxu0 0.0
        %2357 = vmatpush1.msra.mxu0 0.0
        %2358 = vmatprep.subr.mxu0 0.0
        %2359 = vmatpush1.msra.mxu0 0.0
        %2360 = vmatprep.subr.mxu0 0.0
        %2361 = vmatpush1.msra.mxu0 0.0
        %2362 = vmatprep.subr.mxu0 0.0
        %2363 = vmatpush1.msra.mxu0 0.0
        %2364 = vmatprep.subr.mxu0 0.0
        %2365 = vmatpush1.msra.mxu0 0.0
        %2366 = vmatprep.subr.mxu0 0.0
        %2367 = vmatpush1.msra.mxu0 0.0
        %2368 = vmatprep.subr.mxu0 0.0
        %2369 = vmatpush1.msra.mxu0 0.0
        %2370 = vmatprep.subr.mxu0 0.0
        %2371 = vmatpush1.msra.mxu0 0.0
        %2372 = vmatprep.subr.mxu0 0.0
        %2373 = vmatpush1.msra.mxu0 0.0
        %2374 = vmatprep.subr.mxu0 0.0
        %2375 = vmatpush1.msra.mxu0 0.0
        %2376 = vmatprep.subr.mxu0 0.0
        %2377 = vmatpush1.msra.mxu0 0.0
        %2378 = vmatprep.subr.mxu0 0.0
        %2379 = vmatpush1.msra.mxu0 0.0
        %2380 = vmatprep.mubr.f32.mxu0 0.0
        %2381 = vmatmul.mubr.f32.gmra.mrb[0].mxu0 %v2059
        %v2382 = vpop.f32.mrb[0].mxu0
        %v2383 = vadd.f32 0.0, %v2382
        %v2384 = vpop.f32.mrb[0].mxu0
        %2385 = vmatprep.mubr.f32.mxu0 0.0
        %2386 = vmatmul.mubr.f32.gmra.mrb[0].mxu0 %v2060
        %v2387 = vpop.f32.mrb[0].mxu0
        %v2388 = vadd.f32 0.0, %v2387
        %v2389 = vpop.f32.mrb[0].mxu0
        %2390 = vmatprep.mubr.f32.mxu0 0.0
        %2391 = vmatmul.mubr.f32.gmra.mrb[0].mxu0 %v2061
        %v2392 = vpop.f32.mrb[0].mxu0
        %v2393 = vadd.f32 0.0, %v2392
        %v2394 = vpop.f32.mrb[0].mxu0
        %2395 = vmatprep.mubr.f32.mxu0 0.0
        %2396 = vmatmul.mubr.f32.gmra.mrb[0].mxu0 %v2062
        %v2397 = vpop.f32.mrb[0].mxu0
        %v2398 = vadd.f32 0.0, %v2397
        %v2399 = vpop.f32.mrb[0].mxu0
        %2400 = vmatprep.mubr.f32.mxu0 0.0
        %2401 = vmatmul.mubr.f32.gmra.mrb[0].mxu0 %v2063
        %v2402 = vpop.f32.mrb[0].mxu0
        %v2403 = vadd.f32 0.0, %v2402
        %v2404 = vpop.f32.mrb[0].mxu0
        %2405 = vmatprep.mubr.f32.mxu0 0.0
        %2406 = vmatmul.mubr.f32.gmra.mrb[0].mxu0 %v2064
        %v2407 = vpop.f32.mrb[0].mxu0
        %v2408 = vadd.f32 0.0, %v2407
        %v2409 = vpop.f32.mrb[0].mxu0
        %2410 = vmatprep.mubr.f32.mxu0 0.0
        %2411 = vmatmul.mubr.f32.gmra.mrb[0].mxu0 %v2065
        %v2412 = vpop.f32.mrb[0].mxu0
        %v2413 = vadd.f32 0.0, %v2412
        %v2414 = vpop.f32.mrb[0].mxu0
        %2415 = vmatprep.mubr.f32.mxu0 0.0
        %2416 = vmatmul.mubr.f32.gmra.mrb[0].mxu0 %v2066
        %v2417 = vpop.f32.mrb[0].mxu0
        %v2418 = vadd.f32 0.0, %v2417
        %v2419 = vpop.f32.mrb[0].mxu0
        %2420 = vmatprep.mubr.f32.mxu0 0.0
        %2421 = vmatmul.mubr.f32.gmra.mrb[0].mxu0 %v2067
        %v2422 = vpop.f32.mrb[0].mxu0
        %v2423 = vadd.f32 0.0, %v2422
        %v2424 = vpop.f32.mrb[0].mxu0
        %2425 = vmatprep.mubr.f32.mxu0 0.0
        %2426 = vmatmul.mubr.f32.gmra.mrb[0].mxu0 %v2068
        %v2427 = vpop.f32.mrb[0].mxu0
        %v2428 = vadd.f32 0.0, %v2427
        %v2429 = vpop.f32.mrb[0].mxu0
        %2430 = vmatprep.mubr.f32.mxu0 0.0
        %2431 = vmatmul.mubr.f32.gmra.mrb[0].mxu0 %v2069
        %v2432 = vpop.f32.mrb[0].mxu0
        %v2433 = vadd.f32 0.0, %v2432
        %v2434 = vpop.f32.mrb[0].mxu0
        %2435 = vmatprep.mubr.f32.mxu0 0.0
        %2436 = vmatmul.mubr.f32.gmra.mrb[0].mxu0 %v2070
        %v2437 = vpop.f32.mrb[0].mxu0
        %v2438 = vadd.f32 0.0, %v2437
        %v2439 = vpop.f32.mrb[0].mxu0
        %2440 = vmatprep.mubr.f32.mxu0 0.0
        %2441 = vmatmul.mubr.f32.gmra.mrb[0].mxu0 %v2071
        %v2442 = vpop.f32.mrb[0].mxu0
        %v2443 = vadd.f32 0.0, %v2442
        %v2444 = vpop.f32.mrb[0].mxu0
        %2445 = vmatprep.mubr.f32.mxu0 0.0
        %2446 = vmatmul.mubr.f32.gmra.mrb[0].mxu0 %v2072
        %v2447 = vpop.f32.mrb[0].mxu0
        %v2448 = vadd.f32 0.0, %v2447
        %v2449 = vpop.f32.mrb[0].mxu0
        %2450 = vmatprep.mubr.f32.mxu0 0.0
        %2451 = vmatmul.mubr.f32.gmra.mrb[0].mxu0 %v2073
        %v2452 = vpop.f32.mrb[0].mxu0
        %v2453 = vadd.f32 0.0, %v2452
        %v2454 = vpop.f32.mrb[0].mxu0
        %2455 = vmatprep.mubr.f32.mxu0 0.0
        %2456 = vmatmul.mubr.f32.gmra.mrb[0].mxu0 %v2074
        %v2457 = vpop.f32.mrb[0].mxu0
        %v2458 = vadd.f32 0.0, %v2457
        %v2459 = vpop.f32.mrb[0].mxu0
        %2460 = vdwg.mxu0
        %2461 = vmatprep.subr.mxu0 0.0
        %2462 = vmatpush1.msra.mxu0 %v534
        %2463 = vmatprep.subr.mxu0 0.0
        %2464 = vmatpush1.msra.mxu0 %v535
        %2465 = vmatprep.subr.mxu0 0.0
        %2466 = vmatpush1.msra.mxu0 %v536
        %2467 = vmatprep.subr.mxu0 0.0
        %2468 = vmatpush1.msra.mxu0 %v537
        %2469 = vmatprep.subr.mxu0 0.0
        %2470 = vmatpush1.msra.mxu0 %v538
        %2471 = vmatprep.subr.mxu0 0.0
        %2472 = vmatpush1.msra.mxu0 %v539
        %2473 = vmatprep.subr.mxu0 0.0
        %2474 = vmatpush1.msra.mxu0 %v540
        %2475 = vmatprep.subr.mxu0 0.0
        %2476 = vmatpush1.msra.mxu0 %v541
        %2477 = vmatprep.subr.mxu0 0.0
        %2478 = vmatpush1.msra.mxu0 %v542
        %2479 = vmatprep.subr.mxu0 0.0
        %2480 = vmatpush1.msra.mxu0 %v543
        %2481 = vmatprep.subr.mxu0 0.0
        %2482 = vmatpush1.msra.mxu0 %v544
        %2483 = vmatprep.subr.mxu0 0.0
        %2484 = vmatpush1.msra.mxu0 %v545
        %2485 = vmatprep.subr.mxu0 0.0
        %2486 = vmatpush1.msra.mxu0 %v546
        %2487 = vmatprep.subr.mxu0 0.0
        %2488 = vmatpush1.msra.mxu0 %v547
        %2489 = vmatprep.subr.mxu0 0.0
        %2490 = vmatpush1.msra.mxu0 %v548
        %2491 = vmatprep.subr.mxu0 0.0
        %2492 = vmatpush1.msra.mxu0 %v549
        %2493 = vmatprep.subr.mxu0 0.0
        %2494 = vmatpush1.msra.mxu0 0.0
        %2495 = vmatprep.subr.mxu0 0.0
        %2496 = vmatpush1.msra.mxu0 0.0
        %2497 = vmatprep.subr.mxu0 0.0
        %2498 = vmatpush1.msra.mxu0 0.0
        %2499 = vmatprep.subr.mxu0 0.0
        %2500 = vmatpush1.msra.mxu0 0.0
        %2501 = vmatprep.subr.mxu0 0.0
        %2502 = vmatpush1.msra.mxu0 0.0
        %2503 = vmatprep.subr.mxu0 0.0
        %2504 = vmatpush1.msra.mxu0 0.0
        %2505 = vmatprep.subr.mxu0 0.0
        %2506 = vmatpush1.msra.mxu0 0.0
        %2507 = vmatprep.subr.mxu0 0.0
        %2508 = vmatpush1.msra.mxu0 0.0
        %2509 = vmatprep.subr.mxu0 0.0
        %2510 = vmatpush1.msra.mxu0 0.0
        %2511 = vmatprep.subr.mxu0 0.0
        %2512 = vmatpush1.msra.mxu0 0.0
        %2513 = vmatprep.subr.mxu0 0.0
        %2514 = vmatpush1.msra.mxu0 0.0
        %2515 = vmatprep.subr.mxu0 0.0
        %2516 = vmatpush1.msra.mxu0 0.0
        %2517 = vmatprep.subr.mxu0 0.0
        %2518 = vmatpush1.msra.mxu0 0.0
        %2519 = vmatprep.subr.mxu0 0.0
        %2520 = vmatpush1.msra.mxu0 0.0
        %2521 = vmatprep.subr.mxu0 0.0
        %2522 = vmatpush1.msra.mxu0 0.0
        %2523 = vmatprep.subr.mxu0 0.0
        %2524 = vmatpush1.msra.mxu0 0.0
        %2525 = vmatprep.mubr.f32.mxu0 0.0
        %2526 = vmatmul.mubr.f32.gmra.mrb[0].mxu0 %v2075
        %v2527 = vpop.f32.mrb[0].mxu0
        %v2528 = vadd.f32 0.0, %v2527
        %v2529 = vpop.f32.mrb[0].mxu0
        %2530 = vmatprep.mubr.f32.mxu0 0.0
        %2531 = vmatmul.mubr.f32.gmra.mrb[0].mxu0 %v2076
        %v2532 = vpop.f32.mrb[0].mxu0
        %v2533 = vadd.f32 0.0, %v2532
        %v2534 = vpop.f32.mrb[0].mxu0
        %2535 = vmatprep.mubr.f32.mxu0 0.0
        %2536 = vmatmul.mubr.f32.gmra.mrb[0].mxu0 %v2077
        %v2537 = vpop.f32.mrb[0].mxu0
        %v2538 = vadd.f32 0.0, %v2537
        %v2539 = vpop.f32.mrb[0].mxu0
        %2540 = vmatprep.mubr.f32.mxu0 0.0
        %2541 = vmatmul.mubr.f32.gmra.mrb[0].mxu0 %v2078
        %v2542 = vpop.f32.mrb[0].mxu0
        %v2543 = vadd.f32 0.0, %v2542
        %v2544 = vpop.f32.mrb[0].mxu0
        %2545 = vmatprep.mubr.f32.mxu0 0.0
        %2546 = vmatmul.mubr.f32.gmra.mrb[0].mxu0 %v2079
        %v2547 = vpop.f32.mrb[0].mxu0
        %v2548 = vadd.f32 0.0, %v2547
        %v2549 = vpop.f32.mrb[0].mxu0
        %2550 = vmatprep.mubr.f32.mxu0 0.0
        %2551 = vmatmul.mubr.f32.gmra.mrb[0].mxu0 %v2080
        %v2552 = vpop.f32.mrb[0].mxu0
        %v2553 = vadd.f32 0.0, %v2552
        %v2554 = vpop.f32.mrb[0].mxu0
        %2555 = vmatprep.mubr.f32.mxu0 0.0
        %2556 = vmatmul.mubr.f32.gmra.mrb[0].mxu0 %v2081
        %v2557 = vpop.f32.mrb[0].mxu0
        %v2558 = vadd.f32 0.0, %v2557
        %v2559 = vpop.f32.mrb[0].mxu0
        %2560 = vmatprep.mubr.f32.mxu0 0.0
        %2561 = vmatmul.mubr.f32.gmra.mrb[0].mxu0 %v2082
        %v2562 = vpop.f32.mrb[0].mxu0
        %v2563 = vadd.f32 0.0, %v2562
        %v2564 = vpop.f32.mrb[0].mxu0
        %2565 = vmatprep.mubr.f32.mxu0 0.0
        %2566 = vmatmul.mubr.f32.gmra.mrb[0].mxu0 %v2083
        %v2567 = vpop.f32.mrb[0].mxu0
        %v2568 = vadd.f32 0.0, %v2567
        %v2569 = vpop.f32.mrb[0].mxu0
        %2570 = vmatprep.mubr.f32.mxu0 0.0
        %2571 = vmatmul.mubr.f32.gmra.mrb[0].mxu0 %v2084
        %v2572 = vpop.f32.mrb[0].mxu0
        %v2573 = vadd.f32 0.0, %v2572
        %v2574 = vpop.f32.mrb[0].mxu0
        %2575 = vmatprep.mubr.f32.mxu0 0.0
        %2576 = vmatmul.mubr.f32.gmra.mrb[0].mxu0 %v2085
        %v2577 = vpop.f32.mrb[0].mxu0
        %v2578 = vadd.f32 0.0, %v2577
        %v2579 = vpop.f32.mrb[0].mxu0
        %2580 = vmatprep.mubr.f32.mxu0 0.0
        %2581 = vmatmul.mubr.f32.gmra.mrb[0].mxu0 %v2086
        %v2582 = vpop.f32.mrb[0].mxu0
        %v2583 = vadd.f32 0.0, %v2582
        %v2584 = vpop.f32.mrb[0].mxu0
        %2585 = vmatprep.mubr.f32.mxu0 0.0
        %2586 = vmatmul.mubr.f32.gmra.mrb[0].mxu0 %v2087
        %v2587 = vpop.f32.mrb[0].mxu0
        %v2588 = vadd.f32 0.0, %v2587
        %v2589 = vpop.f32.mrb[0].mxu0
        %2590 = vmatprep.mubr.f32.mxu0 0.0
        %2591 = vmatmul.mubr.f32.gmra.mrb[0].mxu0 %v2088
        %v2592 = vpop.f32.mrb[0].mxu0
        %v2593 = vadd.f32 0.0, %v2592
        %v2594 = vpop.f32.mrb[0].mxu0
        %2595 = vmatprep.mubr.f32.mxu0 0.0
        %2596 = vmatmul.mubr.f32.gmra.mrb[0].mxu0 %v2089
        %v2597 = vpop.f32.mrb[0].mxu0
        %v2598 = vadd.f32 0.0, %v2597
        %v2599 = vpop.f32.mrb[0].mxu0
        %2600 = vmatprep.mubr.f32.mxu0 0.0
        %2601 = vmatmul.mubr.f32.gmra.mrb[0].mxu0 %v2090
        %v2602 = vpop.f32.mrb[0].mxu0
        %v2603 = vadd.f32 0.0, %v2602
        %v2604 = vpop.f32.mrb[0].mxu0
        %2605 = vdwg.mxu0
        %2606 = vmatprep.subr.mxu0 0.0
        %2607 = vmatpush1.msra.mxu0 %v550
        %2608 = vmatprep.subr.mxu0 0.0
        %2609 = vmatpush1.msra.mxu0 %v551
        %2610 = vmatprep.subr.mxu0 0.0
        %2611 = vmatpush1.msra.mxu0 %v552
        %2612 = vmatprep.subr.mxu0 0.0
        %2613 = vmatpush1.msra.mxu0 %v553
        %2614 = vmatprep.subr.mxu0 0.0
        %2615 = vmatpush1.msra.mxu0 %v554
        %2616 = vmatprep.subr.mxu0 0.0
        %2617 = vmatpush1.msra.mxu0 %v555
        %2618 = vmatprep.subr.mxu0 0.0
        %2619 = vmatpush1.msra.mxu0 %v556
        %2620 = vmatprep.subr.mxu0 0.0
        %2621 = vmatpush1.msra.mxu0 %v557
        %2622 = vmatprep.subr.mxu0 0.0
        %2623 = vmatpush1.msra.mxu0 %v558
        %2624 = vmatprep.subr.mxu0 0.0
        %2625 = vmatpush1.msra.mxu0 %v559
        %2626 = vmatprep.subr.mxu0 0.0
        %2627 = vmatpush1.msra.mxu0 %v560
        %2628 = vmatprep.subr.mxu0 0.0
        %2629 = vmatpush1.msra.mxu0 %v561
        %2630 = vmatprep.subr.mxu0 0.0
        %2631 = vmatpush1.msra.mxu0 %v562
        %2632 = vmatprep.subr.mxu0 0.0
        %2633 = vmatpush1.msra.mxu0 %v563
        %2634 = vmatprep.subr.mxu0 0.0
        %2635 = vmatpush1.msra.mxu0 %v564
        %2636 = vmatprep.subr.mxu0 0.0
        %2637 = vmatpush1.msra.mxu0 %v565
        %2638 = vmatprep.subr.mxu0 0.0
        %2639 = vmatpush1.msra.mxu0 0.0
        %2640 = vmatprep.subr.mxu0 0.0
        %2641 = vmatpush1.msra.mxu0 0.0
        %2642 = vmatprep.subr.mxu0 0.0
        %2643 = vmatpush1.msra.mxu0 0.0
        %2644 = vmatprep.subr.mxu0 0.0
        %2645 = vmatpush1.msra.mxu0 0.0
        %2646 = vmatprep.subr.mxu0 0.0
        %2647 = vmatpush1.msra.mxu0 0.0
        %2648 = vmatprep.subr.mxu0 0.0
        %2649 = vmatpush1.msra.mxu0 0.0
        %2650 = vmatprep.subr.mxu0 0.0
        %2651 = vmatpush1.msra.mxu0 0.0
        %2652 = vmatprep.subr.mxu0 0.0
        %2653 = vmatpush1.msra.mxu0 0.0
        %2654 = vmatprep.subr.mxu0 0.0
        %2655 = vmatpush1.msra.mxu0 0.0
        %2656 = vmatprep.subr.mxu0 0.0
        %2657 = vmatpush1.msra.mxu0 0.0
        %2658 = vmatprep.subr.mxu0 0.0
        %2659 = vmatpush1.msra.mxu0 0.0
        %2660 = vmatprep.subr.mxu0 0.0
        %2661 = vmatpush1.msra.mxu0 0.0
        %2662 = vmatprep.subr.mxu0 0.0
        %2663 = vmatpush1.msra.mxu0 0.0
        %2664 = vmatprep.subr.mxu0 0.0
        %2665 = vmatpush1.msra.mxu0 0.0
        %2666 = vmatprep.subr.mxu0 0.0
        %2667 = vmatpush1.msra.mxu0 0.0
        %2668 = vmatprep.subr.mxu0 0.0
        %2669 = vmatpush1.msra.mxu0 0.0
        %2670 = vmatprep.mubr.f32.mxu0 0.0
        %2671 = vmatmul.mubr.f32.gmra.mrb[0].mxu0 %v2091
        %v2672 = vpop.f32.mrb[0].mxu0
        %v2673 = vadd.f32 0.0, %v2672
        %v2674 = vpop.f32.mrb[0].mxu0
        %2675 = vmatprep.mubr.f32.mxu0 0.0
        %2676 = vmatmul.mubr.f32.gmra.mrb[0].mxu0 %v2092
        %v2677 = vpop.f32.mrb[0].mxu0
        %v2678 = vadd.f32 0.0, %v2677
        %v2679 = vpop.f32.mrb[0].mxu0
        %2680 = vmatprep.mubr.f32.mxu0 0.0
        %2681 = vmatmul.mubr.f32.gmra.mrb[0].mxu0 %v2093
        %v2682 = vpop.f32.mrb[0].mxu0
        %v2683 = vadd.f32 0.0, %v2682
        %v2684 = vpop.f32.mrb[0].mxu0
        %2685 = vmatprep.mubr.f32.mxu0 0.0
        %2686 = vmatmul.mubr.f32.gmra.mrb[0].mxu0 %v2094
        %v2687 = vpop.f32.mrb[0].mxu0
        %v2688 = vadd.f32 0.0, %v2687
        %v2689 = vpop.f32.mrb[0].mxu0
        %2690 = vmatprep.mubr.f32.mxu0 0.0
        %2691 = vmatmul.mubr.f32.gmra.mrb[0].mxu0 %v2095
        %v2692 = vpop.f32.mrb[0].mxu0
        %v2693 = vadd.f32 0.0, %v2692
        %v2694 = vpop.f32.mrb[0].mxu0
        %2695 = vmatprep.mubr.f32.mxu0 0.0
        %2696 = vmatmul.mubr.f32.gmra.mrb[0].mxu0 %v2096
        %v2697 = vpop.f32.mrb[0].mxu0
        %v2698 = vadd.f32 0.0, %v2697
        %v2699 = vpop.f32.mrb[0].mxu0
        %2700 = vmatprep.mubr.f32.mxu0 0.0
        %2701 = vmatmul.mubr.f32.gmra.mrb[0].mxu0 %v2097
        %v2702 = vpop.f32.mrb[0].mxu0
        %v2703 = vadd.f32 0.0, %v2702
        %v2704 = vpop.f32.mrb[0].mxu0
        %2705 = vmatprep.mubr.f32.mxu0 0.0
        %2706 = vmatmul.mubr.f32.gmra.mrb[0].mxu0 %v2098
        %v2707 = vpop.f32.mrb[0].mxu0
        %v2708 = vadd.f32 0.0, %v2707
        %v2709 = vpop.f32.mrb[0].mxu0
        %2710 = vmatprep.mubr.f32.mxu0 0.0
        %2711 = vmatmul.mubr.f32.gmra.mrb[0].mxu0 %v2099
        %v2712 = vpop.f32.mrb[0].mxu0
        %v2713 = vadd.f32 0.0, %v2712
        %v2714 = vpop.f32.mrb[0].mxu0
        %2715 = vmatprep.mubr.f32.mxu0 0.0
        %2716 = vmatmul.mubr.f32.gmra.mrb[0].mxu0 %v2100
        %v2717 = vpop.f32.mrb[0].mxu0
        %v2718 = vadd.f32 0.0, %v2717
        %v2719 = vpop.f32.mrb[0].mxu0
        %2720 = vmatprep.mubr.f32.mxu0 0.0
        %2721 = vmatmul.mubr.f32.gmra.mrb[0].mxu0 %v2101
        %v2722 = vpop.f32.mrb[0].mxu0
        %v2723 = vadd.f32 0.0, %v2722
        %v2724 = vpop.f32.mrb[0].mxu0
        %2725 = vmatprep.mubr.f32.mxu0 0.0
        %2726 = vmatmul.mubr.f32.gmra.mrb[0].mxu0 %v2102
        %v2727 = vpop.f32.mrb[0].mxu0
        %v2728 = vadd.f32 0.0, %v2727
        %v2729 = vpop.f32.mrb[0].mxu0
        %2730 = vmatprep.mubr.f32.mxu0 0.0
        %2731 = vmatmul.mubr.f32.gmra.mrb[0].mxu0 %v2103
        %v2732 = vpop.f32.mrb[0].mxu0
        %v2733 = vadd.f32 0.0, %v2732
        %v2734 = vpop.f32.mrb[0].mxu0
        %2735 = vmatprep.mubr.f32.mxu0 0.0
        %2736 = vmatmul.mubr.f32.gmra.mrb[0].mxu0 %v2104
        %v2737 = vpop.f32.mrb[0].mxu0
        %v2738 = vadd.f32 0.0, %v2737
        %v2739 = vpop.f32.mrb[0].mxu0
        %2740 = vmatprep.mubr.f32.mxu0 0.0
        %2741 = vmatmul.mubr.f32.gmra.mrb[0].mxu0 %v2105
        %v2742 = vpop.f32.mrb[0].mxu0
        %v2743 = vadd.f32 0.0, %v2742
        %v2744 = vpop.f32.mrb[0].mxu0
        %2745 = vmatprep.mubr.f32.mxu0 0.0
        %2746 = vmatmul.mubr.f32.gmra.mrb[0].mxu0 %v2106
        %v2747 = vpop.f32.mrb[0].mxu0
        %v2748 = vadd.f32 0.0, %v2747
        %v2749 = vpop.f32.mrb[0].mxu0
        %2750 = vdwg.mxu0
        %2751 = vst.msk [vmem:[%s307] sm:$0xff] %vm566, %v2238
        %2752 = vst.msk [vmem:[%s307 + $0x8] sm:$0xff] %vm566, %v2243
        %2753 = vst.msk [vmem:[%s307 + $0x10] sm:$0xff] %vm566, %v2248
        %2754 = vst.msk [vmem:[%s307 + $0x18] sm:$0xff] %vm566, %v2253
        %2755 = vst.msk [vmem:[%s307 + $0x20] sm:$0xff] %vm566, %v2258
        %2756 = vst.msk [vmem:[%s307 + $0x28] sm:$0xff] %vm566, %v2263
        %2757 = vst.msk [vmem:[%s307 + $0x30] sm:$0xff] %vm566, %v2268
        %2758 = vst.msk [vmem:[%s307 + $0x38] sm:$0xff] %vm566, %v2273
        %2759 = vst.msk [vmem:[%s307 + $0x40] sm:$0xff] %vm566, %v2278
        %2760 = vst.msk [vmem:[%s307 + $0x48] sm:$0xff] %vm566, %v2283
        %2761 = vst.msk [vmem:[%s307 + $0x50] sm:$0xff] %vm566, %v2288
        %2762 = vst.msk [vmem:[%s307 + $0x58] sm:$0xff] %vm566, %v2293
        %2763 = vst.msk [vmem:[%s307 + $0x60] sm:$0xff] %vm566, %v2298
        %2764 = vst.msk [vmem:[%s307 + $0x68] sm:$0xff] %vm566, %v2303
        %2765 = vst.msk [vmem:[%s307 + $0x70] sm:$0xff] %vm566, %v2308
        %2766 = vst.msk [vmem:[%s307 + $0x78] sm:$0xff] %vm566, %v2313
        %2767 = vst.msk [vmem:[%s307 + $0x80] sm:$0xff] %vm566, %v2383
        %2768 = vst.msk [vmem:[%s307 + $0x88] sm:$0xff] %vm566, %v2388
        %2769 = vst.msk [vmem:[%s307 + $0x90] sm:$0xff] %vm566, %v2393
        %2770 = vst.msk [vmem:[%s307 + $0x98] sm:$0xff] %vm566, %v2398
        %2771 = vst.msk [vmem:[%s307 + $0xa0] sm:$0xff] %vm566, %v2403
        %2772 = vst.msk [vmem:[%s307 + $0xa8] sm:$0xff] %vm566, %v2408
        %2773 = vst.msk [vmem:[%s307 + $0xb0] sm:$0xff] %vm566, %v2413
        %2774 = vst.msk [vmem:[%s307 + $0xb8] sm:$0xff] %vm566, %v2418
        %2775 = vst.msk [vmem:[%s307 + $0xc0] sm:$0xff] %vm566, %v2423
        %2776 = vst.msk [vmem:[%s307 + $0xc8] sm:$0xff] %vm566, %v2428
        %2777 = vst.msk [vmem:[%s307 + $0xd0] sm:$0xff] %vm566, %v2433
        %2778 = vst.msk [vmem:[%s307 + $0xd8] sm:$0xff] %vm566, %v2438
        %2779 = vst.msk [vmem:[%s307 + $0xe0] sm:$0xff] %vm566, %v2443
        %2780 = vst.msk [vmem:[%s307 + $0xe8] sm:$0xff] %vm566, %v2448
        %2781 = vst.msk [vmem:[%s307 + $0xf0] sm:$0xff] %vm566, %v2453
        %2782 = vst.msk [vmem:[%s307 + $0xf8] sm:$0xff] %vm566, %v2458
        %2783 = vst.msk [vmem:[%s307 + $0x100] sm:$0xff] %vm566, %v2528
        %2784 = vst.msk [vmem:[%s307 + $0x108] sm:$0xff] %vm566, %v2533
        %2785 = vst.msk [vmem:[%s307 + $0x110] sm:$0xff] %vm566, %v2538
        %2786 = vst.msk [vmem:[%s307 + $0x118] sm:$0xff] %vm566, %v2543
        %2787 = vst.msk [vmem:[%s307 + $0x120] sm:$0xff] %vm566, %v2548
        %2788 = vst.msk [vmem:[%s307 + $0x128] sm:$0xff] %vm566, %v2553
        %2789 = vst.msk [vmem:[%s307 + $0x130] sm:$0xff] %vm566, %v2558
        %2790 = vst.msk [vmem:[%s307 + $0x138] sm:$0xff] %vm566, %v2563
        %2791 = vst.msk [vmem:[%s307 + $0x140] sm:$0xff] %vm566, %v2568
        %2792 = vst.msk [vmem:[%s307 + $0x148] sm:$0xff] %vm566, %v2573
        %2793 = vst.msk [vmem:[%s307 + $0x150] sm:$0xff] %vm566, %v2578
        %2794 = vst.msk [vmem:[%s307 + $0x158] sm:$0xff] %vm566, %v2583
        %2795 = vst.msk [vmem:[%s307 + $0x160] sm:$0xff] %vm566, %v2588
        %2796 = vst.msk [vmem:[%s307 + $0x168] sm:$0xff] %vm566, %v2593
        %2797 = vst.msk [vmem:[%s307 + $0x170] sm:$0xff] %vm566, %v2598
        %2798 = vst.msk [vmem:[%s307 + $0x178] sm:$0xff] %vm566, %v2603
        %2799 = vst.msk [vmem:[%s307 + $0x180] sm:$0xff] %vm566, %v2673
        %2800 = vst.msk [vmem:[%s307 + $0x188] sm:$0xff] %vm566, %v2678
        %2801 = vst.msk [vmem:[%s307 + $0x190] sm:$0xff] %vm566, %v2683
        %2802 = vst.msk [vmem:[%s307 + $0x198] sm:$0xff] %vm566, %v2688
        %2803 = vst.msk [vmem:[%s307 + $0x1a0] sm:$0xff] %vm566, %v2693
        %2804 = vst.msk [vmem:[%s307 + $0x1a8] sm:$0xff] %vm566, %v2698
        %2805 = vst.msk [vmem:[%s307 + $0x1b0] sm:$0xff] %vm566, %v2703
        %2806 = vst.msk [vmem:[%s307 + $0x1b8] sm:$0xff] %vm566, %v2708
        %2807 = vst.msk [vmem:[%s307 + $0x1c0] sm:$0xff] %vm566, %v2713
        %2808 = vst.msk [vmem:[%s307 + $0x1c8] sm:$0xff] %vm566, %v2718
        %2809 = vst.msk [vmem:[%s307 + $0x1d0] sm:$0xff] %vm566, %v2723
        %2810 = vst.msk [vmem:[%s307 + $0x1d8] sm:$0xff] %vm566, %v2728
        %2811 = vst.msk [vmem:[%s307 + $0x1e0] sm:$0xff] %vm566, %v2733
        %2812 = vst.msk [vmem:[%s307 + $0x1e8] sm:$0xff] %vm566, %v2738
        %2813 = vst.msk [vmem:[%s307 + $0x1f0] sm:$0xff] %vm566, %v2743
        %2814 = vst.msk [vmem:[%s307 + $0x1f8] sm:$0xff] %vm566, %v2748
        %s2815 = sand.u32 %s121, 1
        %s2816 = scalar_lea.sflag [#allocation3], %s2815
        %s2817 = sand.u32 %s121, 1
        %s2818 = smul.addr %s2817, 512
        %s2819 = scalar_lea.vmem [#allocation2], %s2818
        %s2820 = smul.u32 4, %s23
        %s2821 = smul.u32 16, %s24
        %p2822 = scmp.lt.s32.totalorder %s2820, 7
        %s2823 = scalar_select %p2822, %s2820, 7
        %p2824 = scmp.lt.s32.totalorder %s2821, 15
        %s2825 = scalar_select %p2824, %s2821, 15
        %s2826 = smul.addr %s2823, 16
        %s2827 = sadd.s32 %s2825, %s2826
        %s2828 = smul.addr %s2827, 8
        %s2829 = scalar_lea.vmem %s4, %s2828
        // Predicated region
        $region33: #{attention_extract_forward.2} parent=31 // pred_check
          %p2830 = pneg %p131
        $region34: #{attention_extract_forward.2} parent=31 // pred_check_branch
          %2832 = sbr.rel (%p2830) target = $region36
        $region35: #{attention_extract_forward.2} parent=31 // pred_region
          %s2833 = smul.u32 4, %s23
          %s2834 = smul.u32 16, %s24
          %s2836 = ssub.s32 8192, 8192
          %2837 = vsyncadd %s2816, %s2836
          %s2838 = smul.addr %s2833, 16
          %s2839 = sadd.s32 %s2834, %s2838
          %s2840 = smul.addr %s2839, 128
          %s2841 = scalar_lea.hbm %s3, %s2840
          %s2842 = sshll.u32 %s2819, 4
          %s2843 = int_to_ptr.vmem [resolvable:$true] %s2842
          %2848 = dma.vmem_to_hbm [thread:$0]  %s2843, 8192, %s2841, %s2816, 128, 128, 8
        $region36: #{attention_extract_forward.2} parent=31 // pred_fallthru
          _
        // Predicated region
        $region37: #{attention_extract_forward.2} parent=31 // pred_check
          %p2849 = pneg %p159
        $region38: #{attention_extract_forward.2} parent=31 // pred_check_branch
          %2851 = sbr.rel (%p2849) target = $region40
        $region39: #{attention_extract_forward.2} parent=31 // pred_region
          %s2852 = smul.u32 4, %s23
          %s2853 = smul.u32 16, %s24
        $region40: #{attention_extract_forward.2} parent=31 // pred_fallthru
          _
      $region32: #{attention_extract_forward.2} parent=5 // pred_fallthru
        _
      %p2854 = scmp.le.s32.totalorder 2, %s14
      // Predicated region
      $region41: #{attention_extract_forward.2} parent=5 // pred_check
        %p2855 = pneg %p2854
      $region42: #{attention_extract_forward.2} parent=5 // pred_check_branch
        %2857 = sbr.rel (%p2855) target = $region44
      $region43: #{attention_extract_forward.2} parent=5 // pred_region
        %s2858 = ssub.s32 %s14, 2
        // Predicated region
        $region45: #{attention_extract_forward.2} parent=43 // pred_check
          %p2859 = pneg %p137
        $region46: #{attention_extract_forward.2} parent=43 // pred_check_branch
          %2861 = sbr.rel (%p2859) target = $region48
        $region47: #{attention_extract_forward.2} parent=43 // pred_region
          %s2862 = sand.u32 %s122, 1
          %s2863 = scalar_lea.sflag [#allocation3], %s2862
          %s2864 = sand.u32 %s122, 1
          %s2865 = smul.addr %s2864, 512
          %s2866 = scalar_lea.vmem [#allocation2], %s2865
          %2867 = dma.done %s2863, 8192
        $region48: #{attention_extract_forward.2} parent=43 // pred_fallthru
          _
        // Predicated region
        $region49: #{attention_extract_forward.2} parent=43 // pred_check
          %p2868 = pneg %p165
        $region50: #{attention_extract_forward.2} parent=43 // pred_check_branch
          %2870 = sbr.rel (%p2868) target = $region52
        $region51: #{attention_extract_forward.2} parent=43 // pred_region
          %s2871 = smul.u32 4, %s25
          %s2872 = smul.u32 16, %s26
          %p2873 = scmp.lt.s32.totalorder %s2871, 7
          %s2874 = scalar_select %p2873, %s2871, 7
          %p2875 = scmp.lt.s32.totalorder %s2872, 15
          %s2876 = scalar_select %p2875, %s2872, 15
          %s2877 = smul.addr %s2874, 16
          %s2878 = sadd.s32 %s2876, %s2877
          %s2879 = smul.addr %s2878, 8
          %s2880 = scalar_lea.vmem %s4, %s2879
        $region52: #{attention_extract_forward.2} parent=43 // pred_fallthru
          _
      $region44: #{attention_extract_forward.2} parent=5 // pred_fallthru
        _
    $region6: #{attention_extract_forward.2} parent=1 // loop_footer
      %s18 = sadd.s32 1, %s14
    $region7: #{attention_extract_forward.2} parent=1 // loop_footer_branch
      %13 = sbr.rel target = $region3
    $region8: #{attention_extract_forward.2} parent=1 // loop_exit
      _
    %2881 = vsyncpa [#allocation3], 1
    %s2882 = scalar_lea.sflag [#allocation3], 1
    %2883 = vsyncpa %s2882, 1

// kernel: attention_extract_forward.3
$region0: #{attention_extract_forward.3}
  #allocation0 [shape = 'u32[]', space=smem, size = 0x4, offset = 0x4, fixed_abs, tag = 'smem constant byte address 0x4 - core index']
  #allocation1 [shape = 'u32[144,128]{1,0:T(1,128)}', space=vmem, size = 0x12000, scoped, tag = 'internal scratch']
  %s0 = inlined_call_operand.vmem [shape: f32[8,128,16], index: 0, kind: input, shape index: {}]
  %s1 = inlined_call_operand.vmem [shape: f32[8,128,16], index: 1, kind: input, shape index: {}]
  %s2 = inlined_call_operand.vmem [shape: f32[8,128,16], index: 2, kind: input, shape index: {}]
  %s3 = inlined_call_operand.hbm [shape: f32[8,128,128], index: 3, kind: output, shape index: {0}]
  %s4 = inlined_call_operand.hbm [shape: f32[8,128,16], index: 4, kind: output, shape index: {1}]
  %5 = xla_tuple %s3, %s4
  %s6 = sld [smem:[#allocation0]]
  $region53: #{attention_extract_forward.3} parent=0
    _
  %s8 = ssub.s32 1, %s6
  %s9 = scalar_select 0, %s8, %s6
  $region1: #{attention_extract_forward.3} parent=0
    #allocation2 [shape = 'u8[524288]{0}', space=vmem, size = 0x80000, scoped, tag = 'output window, operand 0']
    #allocation3 [shape = 's32[2]{0}', space=sflag, size = 0x8, scoped, tag = 'scoped memory for attention_extract_forward.3']
    #allocation4 [shape = 'u8[524288]{0}', space=vmem, size = 0x80000, scoped, tag = 'output window, operand 1']
    #allocation5 [shape = 's32[2]{0}', space=sflag, size = 0x8, scoped, tag = 'scoped memory for attention_extract_forward.3']
    %10 = vsyncpa [#allocation3], 0
    %s11 = scalar_lea.sflag [#allocation3], 1
    %12 = vsyncpa %s11, 0
    %13 = vsyncpa [#allocation5], 0
    %s14 = scalar_lea.sflag [#allocation5], 1
    %15 = vsyncpa %s14, 0
    loop: start=0, step=1, limit=4
    $region2: #{attention_extract_forward.3} parent=1 // loop_pre_header
      _
    $region3: #{attention_extract_forward.3} parent=1 // loop_header
      %s17 = sphi 0, %s21
      %p18 = scmp.ge.s32.totalorder %s17, 4
      %s24 = sphi 0, %s36
      %s25 = sphi 0, %s32
      %s26 = sphi 0, %s24
      %s27 = sphi 0, %s25
      %s28 = sphi 0, %s26
      %s29 = sphi 0, %s27
      %s41 = sphi 0, %s43
      %s44 = sphi 0, %s41
      %s45 = sphi 0, %s44
      %s61 = sphi 0, %s45
      %s67 = sphi 0, %s69
      %s70 = sphi 0, %s67
      %s71 = sphi 0, %s70
      %s87 = sphi 0, %s71
      %s93 = sphi 0, %s95
      %s96 = sphi 0, %s93
      %s97 = sphi 0, %s96
      %s113 = sphi 0, %s97
      %s121 = sphi 0, %s123
      %s124 = sphi 0, %s121
      %s125 = sphi 0, %s124
      %s141 = sphi 0, %s125
      %s149 = sphi 0, %s151
      %s152 = sphi 0, %s149
      %s153 = sphi 0, %s152
      %s169 = sphi 0, %s153
    $region4: #{attention_extract_forward.3} parent=1 // loop_header_branch
      %20 = sbr.rel (%p18) target = $region8
    $region5: #{attention_extract_forward.3} parent=1 // loop_body
      %s22 = ssub.s32 %s17, 1
      %s23 = ssub.s32 %s17, 2
      %s30 = sadd.s32 1, %s25
      %p31 = scmp.ge.s32.totalorder %s30, 1
      %s32 = scalar_select %p31, 0, %s30
      %s33 = sadd.s32 1, %s24
      %s34 = scalar_select %p31, %s33, %s24
      %p35 = scmp.ge.s32.totalorder %s34, 2
      %s36 = scalar_select %p35, 0, %s34
      %s37 = ssub.s32 %s24, %s36
      %s38 = ssub.s32 %s25, %s32
      %s39 = sor.u32 %s37, %s38
      %p40 = scmp.eq.s32.totalorder %s39, 0
      %s42 = sadd.s32 %s41, 1
      %s43 = scalar_select %p40, %s41, %s42
      %p46 = pneg %p40
      %p47 = scmp.eq.s32.totalorder %s17, 1
      %p48 = por %p46, %p47
      %p49 = scmp.ne.s32.totalorder %s41, %s44
      %p50 = scmp.eq.s32.totalorder %s17, 0
      %p51 = por %p49, %p50
      %p52 = scmp.ne.s32.totalorder %s41, %s44
      %p53 = scmp.eq.s32.totalorder %s22, 1
      %p54 = por %p52, %p53
      %p55 = scmp.ne.s32.totalorder %s44, %s45
      %p56 = scmp.eq.s32.totalorder %s22, 0
      %p57 = por %p55, %p56
      %p58 = scmp.ne.s32.totalorder %s44, %s45
      %p59 = scmp.eq.s32.totalorder %s23, 1
      %p60 = por %p58, %p59
      %p62 = scmp.ne.s32.totalorder %s45, %s61
      %p63 = scmp.eq.s32.totalorder %s23, 0
      %p64 = por %p62, %p63
      %s65 = ssub.s32 %s24, %s36
      %p66 = scmp.eq.s32.totalorder %s65, 0
      %s68 = sadd.s32 %s67, 1
      %s69 = scalar_select %p66, %s67, %s68
      %p72 = pneg %p66
      %p73 = scmp.eq.s32.totalorder %s17, 1
      %p74 = por %p72, %p73
      %p75 = scmp.ne.s32.totalorder %s67, %s70
      %p76 = scmp.eq.s32.totalorder %s17, 0
      %p77 = por %p75, %p76
      %p78 = scmp.ne.s32.totalorder %s67, %s70
      %p79 = scmp.eq.s32.totalorder %s22, 1
      %p80 = por %p78, %p79
      %p81 = scmp.ne.s32.totalorder %s70, %s71
      %p82 = scmp.eq.s32.totalorder %s22, 0
      %p83 = por %p81, %p82
      %p84 = scmp.ne.s32.totalorder %s70, %s71
      %p85 = scmp.eq.s32.totalorder %s23, 1
      %p86 = por %p84, %p85
      %p88 = scmp.ne.s32.totalorder %s71, %s87
      %p89 = scmp.eq.s32.totalorder %s23, 0
      %p90 = por %p88, %p89
      %s91 = ssub.s32 %s24, %s36
      %p92 = scmp.eq.s32.totalorder %s91, 0
      %s94 = sadd.s32 %s93, 1
      %s95 = scalar_select %p92, %s93, %s94
      %p98 = pneg %p92
      %p99 = scmp.eq.s32.totalorder %s17, 1
      %p100 = por %p98, %p99
      %p101 = scmp.ne.s32.totalorder %s93, %s96
      %p102 = scmp.eq.s32.totalorder %s17, 0
      %p103 = por %p101, %p102
      %p104 = scmp.ne.s32.totalorder %s93, %s96
      %p105 = scmp.eq.s32.totalorder %s22, 1
      %p106 = por %p104, %p105
      %p107 = scmp.ne.s32.totalorder %s96, %s97
      %p108 = scmp.eq.s32.totalorder %s22, 0
      %p109 = por %p107, %p108
      %p110 = scmp.ne.s32.totalorder %s96, %s97
      %p111 = scmp.eq.s32.totalorder %s23, 1
      %p112 = por %p110, %p111
      %p114 = scmp.ne.s32.totalorder %s97, %s113
      %p115 = scmp.eq.s32.totalorder %s23, 0
      %p116 = por %p114, %p115
      %s117 = ssub.s32 %s24, %s36
      %s118 = ssub.s32 %s25, %s32
      %s119 = sor.u32 %s117, %s118
      %p120 = scmp.eq.s32.totalorder %s119, 0
      %s122 = sadd.s32 %s121, 1
      %s123 = scalar_select %p120, %s121, %s122
      %p126 = pneg %p120
      %p127 = scmp.eq.s32.totalorder %s17, 1
      %p128 = por %p126, %p127
      %p129 = scmp.ne.s32.totalorder %s121, %s124
      %p130 = scmp.eq.s32.totalorder %s17, 0
      %p131 = por %p129, %p130
      %p132 = scmp.ne.s32.totalorder %s121, %s124
      %p133 = scmp.eq.s32.totalorder %s22, 1
      %p134 = por %p132, %p133
      %p135 = scmp.ne.s32.totalorder %s124, %s125
      %p136 = scmp.eq.s32.totalorder %s22, 0
      %p137 = por %p135, %p136
      %p138 = scmp.ne.s32.totalorder %s124, %s125
      %p139 = scmp.eq.s32.totalorder %s23, 1
      %p140 = por %p138, %p139
      %p142 = scmp.ne.s32.totalorder %s125, %s141
      %p143 = scmp.eq.s32.totalorder %s23, 0
      %p144 = por %p142, %p143
      %s145 = ssub.s32 %s24, %s36
      %s146 = ssub.s32 %s25, %s32
      %s147 = sor.u32 %s145, %s146
      %p148 = scmp.eq.s32.totalorder %s147, 0
      %s150 = sadd.s32 %s149, 1
      %s151 = scalar_select %p148, %s149, %s150
      %p154 = pneg %p148
      %p155 = scmp.eq.s32.totalorder %s17, 1
      %p156 = por %p154, %p155
      %p157 = scmp.ne.s32.totalorder %s149, %s152
      %p158 = scmp.eq.s32.totalorder %s17, 0
      %p159 = por %p157, %p158
      %p160 = scmp.ne.s32.totalorder %s149, %s152
      %p161 = scmp.eq.s32.totalorder %s22, 1
      %p162 = por %p160, %p161
      %p163 = scmp.ne.s32.totalorder %s152, %s153
      %p164 = scmp.eq.s32.totalorder %s22, 0
      %p165 = por %p163, %p164
      %p166 = scmp.ne.s32.totalorder %s152, %s153
      %p167 = scmp.eq.s32.totalorder %s23, 1
      %p168 = por %p166, %p167
      %p170 = scmp.ne.s32.totalorder %s153, %s169
      %p171 = scmp.eq.s32.totalorder %s23, 0
      %p172 = por %p170, %p171
      %p173 = scmp.le.s32.totalorder 1, %s17
      %p174 = scmp.lt.s32.totalorder %s17, 3
      %p175 = pnand %p173, %p174
      %p176 = pneg %p175
      // Predicated region
      $region9: #{attention_extract_forward.3} parent=5 // pred_check
        _
      $region10: #{attention_extract_forward.3} parent=5 // pred_check_branch
        %178 = sbr.rel (%p175) target = $region12
      $region11: #{attention_extract_forward.3} parent=5 // pred_region
        %s179 = ssub.s32 %s17, 1
      $region12: #{attention_extract_forward.3} parent=5 // pred_fallthru
        _
      %p180 = scmp.lt.s32.totalorder %s17, 2
      // Predicated region
      $region13: #{attention_extract_forward.3} parent=5 // pred_check
        %p181 = pneg %p180
      $region14: #{attention_extract_forward.3} parent=5 // pred_check_branch
        %183 = sbr.rel (%p181) target = $region16
      $region15: #{attention_extract_forward.3} parent=5 // pred_region
        // Predicated region
        $region17: #{attention_extract_forward.3} parent=15 // pred_check
          %p184 = pneg %p51
        $region18: #{attention_extract_forward.3} parent=15 // pred_check_branch
          %186 = sbr.rel (%p184) target = $region20
        $region19: #{attention_extract_forward.3} parent=15 // pred_region
          %s187 = smul.u32 4, %s24
          %s188 = smul.u32 16, %s25
          %p189 = scmp.lt.s32.totalorder %s187, 7
          %s190 = scalar_select %p189, %s187, 7
          %p191 = scmp.lt.s32.totalorder %s188, 15
          %s192 = scalar_select %p191, %s188, 15
          %s193 = smul.addr %s190, 16
          %s194 = sadd.s32 %s192, %s193
          %s195 = smul.addr %s194, 8
          %s196 = scalar_lea.vmem %s0, %s195
          %s197 = smul.u32 4, %s24
          %s198 = smul.u32 16, %s25
        $region20: #{attention_extract_forward.3} parent=15 // pred_fallthru
          _
        // Predicated region
        $region21: #{attention_extract_forward.3} parent=15 // pred_check
          %p199 = pneg %p77
        $region22: #{attention_extract_forward.3} parent=15 // pred_check_branch
          %201 = sbr.rel (%p199) target = $region24
        $region23: #{attention_extract_forward.3} parent=15 // pred_region
          %s202 = smul.u32 4, %s24
          %p203 = scmp.lt.s32.totalorder %s202, 7
          %s204 = scalar_select %p203, %s202, 7
          %s205 = smul.addr %s204, 16
          %s206 = smul.addr %s205, 8
          %s207 = scalar_lea.vmem %s1, %s206
          %s208 = smul.u32 4, %s24
        $region24: #{attention_extract_forward.3} parent=15 // pred_fallthru
          _
        // Predicated region
        $region25: #{attention_extract_forward.3} parent=15 // pred_check
          %p209 = pneg %p103
        $region26: #{attention_extract_forward.3} parent=15 // pred_check_branch
          %211 = sbr.rel (%p209) target = $region28
        $region27: #{attention_extract_forward.3} parent=15 // pred_region
          %s212 = smul.u32 4, %s24
          %p213 = scmp.lt.s32.totalorder %s212, 7
          %s214 = scalar_select %p213, %s212, 7
          %s215 = smul.addr %s214, 16
          %s216 = smul.addr %s215, 8
          %s217 = scalar_lea.vmem %s2, %s216
          %s218 = smul.u32 4, %s24
        $region28: #{attention_extract_forward.3} parent=15 // pred_fallthru
          _
      $region16: #{attention_extract_forward.3} parent=5 // pred_fallthru
        _
      %p219 = scmp.le.s32.totalorder 1, %s17
      %p220 = scmp.lt.s32.totalorder %s17, 3
      %p221 = pnand %p219, %p220
      %p222 = pneg %p221
      // Predicated region
      $region29: #{attention_extract_forward.3} parent=5 // pred_check
        _
      $region30: #{attention_extract_forward.3} parent=5 // pred_check_branch
        %224 = sbr.rel (%p221) target = $region32
      $region31: #{attention_extract_forward.3} parent=5 // pred_region
        %s225 = ssub.s32 %s17, 1
        %s226 = smul.u32 4, %s26
        %s227 = smul.u32 16, %s27
        %p228 = scmp.lt.s32.totalorder %s226, 7
        %s229 = scalar_select %p228, %s226, 7
        %p230 = scmp.lt.s32.totalorder %s227, 15
        %s231 = scalar_select %p230, %s227, 15
        %s232 = smul.addr %s229, 16
        %s233 = sadd.s32 %s231, %s232
        %s234 = smul.addr %s233, 8
        %s235 = scalar_lea.vmem %s0, %s234
        %p236 = pneg %p57
        %p237 = pneg %p54
        %s238 = smul.u32 4, %s26
        %p239 = scmp.lt.s32.totalorder %s238, 7
        %s240 = scalar_select %p239, %s238, 7
        %s241 = smul.addr %s240, 16
        %s242 = smul.addr %s241, 8
        %s243 = scalar_lea.vmem %s1, %s242
        %p244 = pneg %p83
        %p245 = pneg %p80
        %s246 = smul.u32 4, %s26
        %p247 = scmp.lt.s32.totalorder %s246, 7
        %s248 = scalar_select %p247, %s246, 7
        %s249 = smul.addr %s248, 16
        %s250 = smul.addr %s249, 8
        %s251 = scalar_lea.vmem %s2, %s250
        %p252 = pneg %p109
        %p253 = pneg %p106
        %p254 = pneg %p137
        %p255 = pneg %p134
        %s256 = sand.u32 %s124, 1
        %s257 = scalar_lea.sflag [#allocation3], %s256
        %s258 = sand.u32 %s124, 1
        %s259 = smul.addr %s258, 512
        %s260 = scalar_lea.vmem [#allocation2], %s259
        %p261 = pneg %p165
        %p262 = pneg %p162
        %s263 = sand.u32 %s152, 1
        %s264 = scalar_lea.sflag [#allocation5], %s263
        %s265 = sand.u32 %s152, 1
        %s266 = smul.addr %s265, 512
        %s267 = scalar_lea.vmem [#allocation4], %s266
        %s268 = smul.u32 4, %s26
        %s269 = smul.u32 16, %s27
        %p270 = scmp.lt.s32.totalorder %s268, 7
        %s271 = scalar_select %p270, %s268, 7
        %p272 = scmp.lt.s32.totalorder %s269, 15
        %s273 = scalar_select %p272, %s269, 15
        %s274 = smul.addr %s271, 16
        %s275 = sadd.s32 %s273, %s274
        %s276 = smul.addr %s275, 8
        %s277 = scalar_lea.vmem %s0, %s276
        %s278 = smul.u32 4, %s26
        %s279 = smul.u32 16, %s27
        %s280 = smul.u32 4, %s26
        %p281 = scmp.lt.s32.totalorder %s280, 7
        %s282 = scalar_select %p281, %s280, 7
        %s283 = smul.addr %s282, 16
        %s284 = smul.addr %s283, 8
        %s285 = scalar_lea.vmem %s1, %s284
        %s286 = smul.u32 4, %s26
        %s287 = smul.u32 4, %s26
        %p288 = scmp.lt.s32.totalorder %s287, 7
        %s289 = scalar_select %p288, %s287, 7
        %s290 = smul.addr %s289, 16
        %s291 = smul.addr %s290, 8
        %s292 = scalar_lea.vmem %s2, %s291
        %s293 = smul.u32 4, %s26
        %s294 = smul.u32 4, %s26
        %s295 = smul.u32 16, %s27
        %s296 = smul.u32 4, %s26
        %s297 = smul.u32 16, %s27
        %v298 = vld [vmem:[%s277] sm:$0xff]
        %v299 = vld [vmem:[%s277 + $0x8] sm:$0xff]
        %v300 = vld [vmem:[%s277 + $0x10] sm:$0xff]
        %v301 = vld [vmem:[%s277 + $0x18] sm:$0xff]
        %v302 = vld [vmem:[%s277 + $0x20] sm:$0xff]
        %v303 = vld [vmem:[%s277 + $0x28] sm:$0xff]
        %v304 = vld [vmem:[%s277 + $0x30] sm:$0xff]
        %v305 = vld [vmem:[%s277 + $0x38] sm:$0xff]
        %v306 = vld [vmem:[%s277 + $0x40] sm:$0xff]
        %v307 = vld [vmem:[%s277 + $0x48] sm:$0xff]
        %v308 = vld [vmem:[%s277 + $0x50] sm:$0xff]
        %v309 = vld [vmem:[%s277 + $0x58] sm:$0xff]
        %v310 = vld [vmem:[%s277 + $0x60] sm:$0xff]
        %v311 = vld [vmem:[%s277 + $0x68] sm:$0xff]
        %v312 = vld [vmem:[%s277 + $0x70] sm:$0xff]
        %v313 = vld [vmem:[%s277 + $0x78] sm:$0xff]
        %v314 = vld [vmem:[%s277 + $0x80] sm:$0xff]
        %v315 = vld [vmem:[%s277 + $0x88] sm:$0xff]
        %v316 = vld [vmem:[%s277 + $0x90] sm:$0xff]
        %v317 = vld [vmem:[%s277 + $0x98] sm:$0xff]
        %v318 = vld [vmem:[%s277 + $0xa0] sm:$0xff]
        %v319 = vld [vmem:[%s277 + $0xa8] sm:$0xff]
        %v320 = vld [vmem:[%s277 + $0xb0] sm:$0xff]
        %v321 = vld [vmem:[%s277 + $0xb8] sm:$0xff]
        %v322 = vld [vmem:[%s277 + $0xc0] sm:$0xff]
        %v323 = vld [vmem:[%s277 + $0xc8] sm:$0xff]
        %v324 = vld [vmem:[%s277 + $0xd0] sm:$0xff]
        %v325 = vld [vmem:[%s277 + $0xd8] sm:$0xff]
        %v326 = vld [vmem:[%s277 + $0xe0] sm:$0xff]
        %v327 = vld [vmem:[%s277 + $0xe8] sm:$0xff]
        %v328 = vld [vmem:[%s277 + $0xf0] sm:$0xff]
        %v329 = vld [vmem:[%s277 + $0xf8] sm:$0xff]
        %v330 = vld [vmem:[%s277 + $0x100] sm:$0xff]
        %v331 = vld [vmem:[%s277 + $0x108] sm:$0xff]
        %v332 = vld [vmem:[%s277 + $0x110] sm:$0xff]
        %v333 = vld [vmem:[%s277 + $0x118] sm:$0xff]
        %v334 = vld [vmem:[%s277 + $0x120] sm:$0xff]
        %v335 = vld [vmem:[%s277 + $0x128] sm:$0xff]
        %v336 = vld [vmem:[%s277 + $0x130] sm:$0xff]
        %v337 = vld [vmem:[%s277 + $0x138] sm:$0xff]
        %v338 = vld [vmem:[%s277 + $0x140] sm:$0xff]
        %v339 = vld [vmem:[%s277 + $0x148] sm:$0xff]
        %v340 = vld [vmem:[%s277 + $0x150] sm:$0xff]
        %v341 = vld [vmem:[%s277 + $0x158] sm:$0xff]
        %v342 = vld [vmem:[%s277 + $0x160] sm:$0xff]
        %v343 = vld [vmem:[%s277 + $0x168] sm:$0xff]
        %v344 = vld [vmem:[%s277 + $0x170] sm:$0xff]
        %v345 = vld [vmem:[%s277 + $0x178] sm:$0xff]
        %v346 = vld [vmem:[%s277 + $0x180] sm:$0xff]
        %v347 = vld [vmem:[%s277 + $0x188] sm:$0xff]
        %v348 = vld [vmem:[%s277 + $0x190] sm:$0xff]
        %v349 = vld [vmem:[%s277 + $0x198] sm:$0xff]
        %v350 = vld [vmem:[%s277 + $0x1a0] sm:$0xff]
        %v351 = vld [vmem:[%s277 + $0x1a8] sm:$0xff]
        %v352 = vld [vmem:[%s277 + $0x1b0] sm:$0xff]
        %v353 = vld [vmem:[%s277 + $0x1b8] sm:$0xff]
        %v354 = vld [vmem:[%s277 + $0x1c0] sm:$0xff]
        %v355 = vld [vmem:[%s277 + $0x1c8] sm:$0xff]
        %v356 = vld [vmem:[%s277 + $0x1d0] sm:$0xff]
        %v357 = vld [vmem:[%s277 + $0x1d8] sm:$0xff]
        %v358 = vld [vmem:[%s277 + $0x1e0] sm:$0xff]
        %v359 = vld [vmem:[%s277 + $0x1e8] sm:$0xff]
        %v360 = vld [vmem:[%s277 + $0x1f0] sm:$0xff]
        %v361 = vld [vmem:[%s277 + $0x1f8] sm:$0xff]
        %v362 = vmul.f32 %v298, 0.25
        %v363 = vmul.f32 %v299, 0.25
        %v364 = vmul.f32 %v300, 0.25
        %v365 = vmul.f32 %v301, 0.25
        %v366 = vmul.f32 %v302, 0.25
        %v367 = vmul.f32 %v303, 0.25
        %v368 = vmul.f32 %v304, 0.25
        %v369 = vmul.f32 %v305, 0.25
        %v370 = vmul.f32 %v306, 0.25
        %v371 = vmul.f32 %v307, 0.25
        %v372 = vmul.f32 %v308, 0.25
        %v373 = vmul.f32 %v309, 0.25
        %v374 = vmul.f32 %v310, 0.25
        %v375 = vmul.f32 %v311, 0.25
        %v376 = vmul.f32 %v312, 0.25
        %v377 = vmul.f32 %v313, 0.25
        %v378 = vmul.f32 %v314, 0.25
        %v379 = vmul.f32 %v315, 0.25
        %v380 = vmul.f32 %v316, 0.25
        %v381 = vmul.f32 %v317, 0.25
        %v382 = vmul.f32 %v318, 0.25
        %v383 = vmul.f32 %v319, 0.25
        %v384 = vmul.f32 %v320, 0.25
        %v385 = vmul.f32 %v321, 0.25
        %v386 = vmul.f32 %v322, 0.25
        %v387 = vmul.f32 %v323, 0.25
        %v388 = vmul.f32 %v324, 0.25
        %v389 = vmul.f32 %v325, 0.25
        %v390 = vmul.f32 %v326, 0.25
        %v391 = vmul.f32 %v327, 0.25
        %v392 = vmul.f32 %v328, 0.25
        %v393 = vmul.f32 %v329, 0.25
        %v394 = vmul.f32 %v330, 0.25
        %v395 = vmul.f32 %v331, 0.25
        %v396 = vmul.f32 %v332, 0.25
        %v397 = vmul.f32 %v333, 0.25
        %v398 = vmul.f32 %v334, 0.25
        %v399 = vmul.f32 %v335, 0.25
        %v400 = vmul.f32 %v336, 0.25
        %v401 = vmul.f32 %v337, 0.25
        %v402 = vmul.f32 %v338, 0.25
        %v403 = vmul.f32 %v339, 0.25
        %v404 = vmul.f32 %v340, 0.25
        %v405 = vmul.f32 %v341, 0.25
        %v406 = vmul.f32 %v342, 0.25
        %v407 = vmul.f32 %v343, 0.25
        %v408 = vmul.f32 %v344, 0.25
        %v409 = vmul.f32 %v345, 0.25
        %v410 = vmul.f32 %v346, 0.25
        %v411 = vmul.f32 %v347, 0.25
        %v412 = vmul.f32 %v348, 0.25
        %v413 = vmul.f32 %v349, 0.25
        %v414 = vmul.f32 %v350, 0.25
        %v415 = vmul.f32 %v351, 0.25
        %v416 = vmul.f32 %v352, 0.25
        %v417 = vmul.f32 %v353, 0.25
        %v418 = vmul.f32 %v354, 0.25
        %v419 = vmul.f32 %v355, 0.25
        %v420 = vmul.f32 %v356, 0.25
        %v421 = vmul.f32 %v357, 0.25
        %v422 = vmul.f32 %v358, 0.25
        %v423 = vmul.f32 %v359, 0.25
        %v424 = vmul.f32 %v360, 0.25
        %v425 = vmul.f32 %v361, 0.25
        %v426 = vld [vmem:[%s285] sm:$0xff]
        %v427 = vld [vmem:[%s285 + $0x8] sm:$0xff]
        %v428 = vld [vmem:[%s285 + $0x10] sm:$0xff]
        %v429 = vld [vmem:[%s285 + $0x18] sm:$0xff]
        %v430 = vld [vmem:[%s285 + $0x20] sm:$0xff]
        %v431 = vld [vmem:[%s285 + $0x28] sm:$0xff]
        %v432 = vld [vmem:[%s285 + $0x30] sm:$0xff]
        %v433 = vld [vmem:[%s285 + $0x38] sm:$0xff]
        %v434 = vld [vmem:[%s285 + $0x40] sm:$0xff]
        %v435 = vld [vmem:[%s285 + $0x48] sm:$0xff]
        %v436 = vld [vmem:[%s285 + $0x50] sm:$0xff]
        %v437 = vld [vmem:[%s285 + $0x58] sm:$0xff]
        %v438 = vld [vmem:[%s285 + $0x60] sm:$0xff]
        %v439 = vld [vmem:[%s285 + $0x68] sm:$0xff]
        %v440 = vld [vmem:[%s285 + $0x70] sm:$0xff]
        %v441 = vld [vmem:[%s285 + $0x78] sm:$0xff]
        %v442 = vld [vmem:[%s285 + $0x80] sm:$0xff]
        %v443 = vld [vmem:[%s285 + $0x88] sm:$0xff]
        %v444 = vld [vmem:[%s285 + $0x90] sm:$0xff]
        %v445 = vld [vmem:[%s285 + $0x98] sm:$0xff]
        %v446 = vld [vmem:[%s285 + $0xa0] sm:$0xff]
        %v447 = vld [vmem:[%s285 + $0xa8] sm:$0xff]
        %v448 = vld [vmem:[%s285 + $0xb0] sm:$0xff]
        %v449 = vld [vmem:[%s285 + $0xb8] sm:$0xff]
        %v450 = vld [vmem:[%s285 + $0xc0] sm:$0xff]
        %v451 = vld [vmem:[%s285 + $0xc8] sm:$0xff]
        %v452 = vld [vmem:[%s285 + $0xd0] sm:$0xff]
        %v453 = vld [vmem:[%s285 + $0xd8] sm:$0xff]
        %v454 = vld [vmem:[%s285 + $0xe0] sm:$0xff]
        %v455 = vld [vmem:[%s285 + $0xe8] sm:$0xff]
        %v456 = vld [vmem:[%s285 + $0xf0] sm:$0xff]
        %v457 = vld [vmem:[%s285 + $0xf8] sm:$0xff]
        %v458 = vld [vmem:[%s285 + $0x100] sm:$0xff]
        %v459 = vld [vmem:[%s285 + $0x108] sm:$0xff]
        %v460 = vld [vmem:[%s285 + $0x110] sm:$0xff]
        %v461 = vld [vmem:[%s285 + $0x118] sm:$0xff]
        %v462 = vld [vmem:[%s285 + $0x120] sm:$0xff]
        %v463 = vld [vmem:[%s285 + $0x128] sm:$0xff]
        %v464 = vld [vmem:[%s285 + $0x130] sm:$0xff]
        %v465 = vld [vmem:[%s285 + $0x138] sm:$0xff]
        %v466 = vld [vmem:[%s285 + $0x140] sm:$0xff]
        %v467 = vld [vmem:[%s285 + $0x148] sm:$0xff]
        %v468 = vld [vmem:[%s285 + $0x150] sm:$0xff]
        %v469 = vld [vmem:[%s285 + $0x158] sm:$0xff]
        %v470 = vld [vmem:[%s285 + $0x160] sm:$0xff]
        %v471 = vld [vmem:[%s285 + $0x168] sm:$0xff]
        %v472 = vld [vmem:[%s285 + $0x170] sm:$0xff]
        %v473 = vld [vmem:[%s285 + $0x178] sm:$0xff]
        %v474 = vld [vmem:[%s285 + $0x180] sm:$0xff]
        %v475 = vld [vmem:[%s285 + $0x188] sm:$0xff]
        %v476 = vld [vmem:[%s285 + $0x190] sm:$0xff]
        %v477 = vld [vmem:[%s285 + $0x198] sm:$0xff]
        %v478 = vld [vmem:[%s285 + $0x1a0] sm:$0xff]
        %v479 = vld [vmem:[%s285 + $0x1a8] sm:$0xff]
        %v480 = vld [vmem:[%s285 + $0x1b0] sm:$0xff]
        %v481 = vld [vmem:[%s285 + $0x1b8] sm:$0xff]
        %v482 = vld [vmem:[%s285 + $0x1c0] sm:$0xff]
        %v483 = vld [vmem:[%s285 + $0x1c8] sm:$0xff]
        %v484 = vld [vmem:[%s285 + $0x1d0] sm:$0xff]
        %v485 = vld [vmem:[%s285 + $0x1d8] sm:$0xff]
        %v486 = vld [vmem:[%s285 + $0x1e0] sm:$0xff]
        %v487 = vld [vmem:[%s285 + $0x1e8] sm:$0xff]
        %v488 = vld [vmem:[%s285 + $0x1f0] sm:$0xff]
        %v489 = vld [vmem:[%s285 + $0x1f8] sm:$0xff]
        %v490 = vld [vmem:[%s292] sm:$0xff]
        %v491 = vld [vmem:[%s292 + $0x8] sm:$0xff]
        %v492 = vld [vmem:[%s292 + $0x10] sm:$0xff]
        %v493 = vld [vmem:[%s292 + $0x18] sm:$0xff]
        %v494 = vld [vmem:[%s292 + $0x20] sm:$0xff]
        %v495 = vld [vmem:[%s292 + $0x28] sm:$0xff]
        %v496 = vld [vmem:[%s292 + $0x30] sm:$0xff]
        %v497 = vld [vmem:[%s292 + $0x38] sm:$0xff]
        %v498 = vld [vmem:[%s292 + $0x40] sm:$0xff]
        %v499 = vld [vmem:[%s292 + $0x48] sm:$0xff]
        %v500 = vld [vmem:[%s292 + $0x50] sm:$0xff]
        %v501 = vld [vmem:[%s292 + $0x58] sm:$0xff]
        %v502 = vld [vmem:[%s292 + $0x60] sm:$0xff]
        %v503 = vld [vmem:[%s292 + $0x68] sm:$0xff]
        %v504 = vld [vmem:[%s292 + $0x70] sm:$0xff]
        %v505 = vld [vmem:[%s292 + $0x78] sm:$0xff]
        %v506 = vld [vmem:[%s292 + $0x80] sm:$0xff]
        %v507 = vld [vmem:[%s292 + $0x88] sm:$0xff]
        %v508 = vld [vmem:[%s292 + $0x90] sm:$0xff]
        %v509 = vld [vmem:[%s292 + $0x98] sm:$0xff]
        %v510 = vld [vmem:[%s292 + $0xa0] sm:$0xff]
        %v511 = vld [vmem:[%s292 + $0xa8] sm:$0xff]
        %v512 = vld [vmem:[%s292 + $0xb0] sm:$0xff]
        %v513 = vld [vmem:[%s292 + $0xb8] sm:$0xff]
        %v514 = vld [vmem:[%s292 + $0xc0] sm:$0xff]
        %v515 = vld [vmem:[%s292 + $0xc8] sm:$0xff]
        %v516 = vld [vmem:[%s292 + $0xd0] sm:$0xff]
        %v517 = vld [vmem:[%s292 + $0xd8] sm:$0xff]
        %v518 = vld [vmem:[%s292 + $0xe0] sm:$0xff]
        %v519 = vld [vmem:[%s292 + $0xe8] sm:$0xff]
        %v520 = vld [vmem:[%s292 + $0xf0] sm:$0xff]
        %v521 = vld [vmem:[%s292 + $0xf8] sm:$0xff]
        %v522 = vld [vmem:[%s292 + $0x100] sm:$0xff]
        %v523 = vld [vmem:[%s292 + $0x108] sm:$0xff]
        %v524 = vld [vmem:[%s292 + $0x110] sm:$0xff]
        %v525 = vld [vmem:[%s292 + $0x118] sm:$0xff]
        %v526 = vld [vmem:[%s292 + $0x120] sm:$0xff]
        %v527 = vld [vmem:[%s292 + $0x128] sm:$0xff]
        %v528 = vld [vmem:[%s292 + $0x130] sm:$0xff]
        %v529 = vld [vmem:[%s292 + $0x138] sm:$0xff]
        %v530 = vld [vmem:[%s292 + $0x140] sm:$0xff]
        %v531 = vld [vmem:[%s292 + $0x148] sm:$0xff]
        %v532 = vld [vmem:[%s292 + $0x150] sm:$0xff]
        %v533 = vld [vmem:[%s292 + $0x158] sm:$0xff]
        %v534 = vld [vmem:[%s292 + $0x160] sm:$0xff]
        %v535 = vld [vmem:[%s292 + $0x168] sm:$0xff]
        %v536 = vld [vmem:[%s292 + $0x170] sm:$0xff]
        %v537 = vld [vmem:[%s292 + $0x178] sm:$0xff]
        %v538 = vld [vmem:[%s292 + $0x180] sm:$0xff]
        %v539 = vld [vmem:[%s292 + $0x188] sm:$0xff]
        %v540 = vld [vmem:[%s292 + $0x190] sm:$0xff]
        %v541 = vld [vmem:[%s292 + $0x198] sm:$0xff]
        %v542 = vld [vmem:[%s292 + $0x1a0] sm:$0xff]
        %v543 = vld [vmem:[%s292 + $0x1a8] sm:$0xff]
        %v544 = vld [vmem:[%s292 + $0x1b0] sm:$0xff]
        %v545 = vld [vmem:[%s292 + $0x1b8] sm:$0xff]
        %v546 = vld [vmem:[%s292 + $0x1c0] sm:$0xff]
        %v547 = vld [vmem:[%s292 + $0x1c8] sm:$0xff]
        %v548 = vld [vmem:[%s292 + $0x1d0] sm:$0xff]
        %v549 = vld [vmem:[%s292 + $0x1d8] sm:$0xff]
        %v550 = vld [vmem:[%s292 + $0x1e0] sm:$0xff]
        %v551 = vld [vmem:[%s292 + $0x1e8] sm:$0xff]
        %v552 = vld [vmem:[%s292 + $0x1f0] sm:$0xff]
        %v553 = vld [vmem:[%s292 + $0x1f8] sm:$0xff]
        %vm554 = vcmask 130048
        %v556 = vsel %vm554, %v362, 0
        %v559 = vsel %vm554, %v363, 0
        %v562 = vsel %vm554, %v364, 0
        %v565 = vsel %vm554, %v365, 0
        %v568 = vsel %vm554, %v366, 0
        %v571 = vsel %vm554, %v367, 0
        %v574 = vsel %vm554, %v368, 0
        %v577 = vsel %vm554, %v369, 0
        %v580 = vsel %vm554, %v370, 0
        %v583 = vsel %vm554, %v371, 0
        %v586 = vsel %vm554, %v372, 0
        %v589 = vsel %vm554, %v373, 0
        %v592 = vsel %vm554, %v374, 0
        %v595 = vsel %vm554, %v375, 0
        %v598 = vsel %vm554, %v376, 0
        %v601 = vsel %vm554, %v377, 0
        %v604 = vsel %vm554, %v426, 0
        %v607 = vsel %vm554, %v427, 0
        %v610 = vsel %vm554, %v428, 0
        %v613 = vsel %vm554, %v429, 0
        %v616 = vsel %vm554, %v430, 0
        %v619 = vsel %vm554, %v431, 0
        %v622 = vsel %vm554, %v432, 0
        %v625 = vsel %vm554, %v433, 0
        %v628 = vsel %vm554, %v434, 0
        %v631 = vsel %vm554, %v435, 0
        %v634 = vsel %vm554, %v436, 0
        %v637 = vsel %vm554, %v437, 0
        %v640 = vsel %vm554, %v438, 0
        %v643 = vsel %vm554, %v439, 0
        %v646 = vsel %vm554, %v440, 0
        %v649 = vsel %vm554, %v441, 0
        %651 = vmatprep.subr.mxu0 0.0
        %652 = vmatpush1.xpose.msra.mxu0 %v604
        %653 = vmatprep.subr.mxu0 0.0
        %654 = vmatpush1.xpose.msra.mxu0 %v607
        %655 = vmatprep.subr.mxu0 0.0
        %656 = vmatpush1.xpose.msra.mxu0 %v610
        %657 = vmatprep.subr.mxu0 0.0
        %658 = vmatpush1.xpose.msra.mxu0 %v613
        %659 = vmatprep.subr.mxu0 0.0
        %660 = vmatpush1.xpose.msra.mxu0 %v616
        %661 = vmatprep.subr.mxu0 0.0
        %662 = vmatpush1.xpose.msra.mxu0 %v619
        %663 = vmatprep.subr.mxu0 0.0
        %664 = vmatpush1.xpose.msra.mxu0 %v622
        %665 = vmatprep.subr.mxu0 0.0
        %666 = vmatpush1.xpose.msra.mxu0 %v625
        %667 = vmatprep.subr.mxu0 0.0
        %668 = vmatpush1.xpose.msra.mxu0 %v628
        %669 = vmatprep.subr.mxu0 0.0
        %670 = vmatpush1.xpose.msra.mxu0 %v631
        %671 = vmatprep.subr.mxu0 0.0
        %672 = vmatpush1.xpose.msra.mxu0 %v634
        %673 = vmatprep.subr.mxu0 0.0
        %674 = vmatpush1.xpose.msra.mxu0 %v637
        %675 = vmatprep.subr.mxu0 0.0
        %676 = vmatpush1.xpose.msra.mxu0 %v640
        %677 = vmatprep.subr.mxu0 0.0
        %678 = vmatpush1.xpose.msra.mxu0 %v643
        %679 = vmatprep.subr.mxu0 0.0
        %680 = vmatpush1.xpose.msra.mxu0 %v646
        %681 = vmatprep.subr.mxu0 0.0
        %682 = vmatpush1.xpose.msra.mxu0 %v649
        %683 = vmatprep.subr.mxu0 0.0
        %684 = vmatpush1.xpose.msra.mxu0 0.0
        %685 = vmatprep.subr.mxu0 0.0
        %686 = vmatpush1.xpose.msra.mxu0 0.0
        %687 = vmatprep.subr.mxu0 0.0
        %688 = vmatpush1.xpose.msra.mxu0 0.0
        %689 = vmatprep.subr.mxu0 0.0
        %690 = vmatpush1.xpose.msra.mxu0 0.0
        %691 = vmatprep.subr.mxu0 0.0
        %692 = vmatpush1.xpose.msra.mxu0 0.0
        %693 = vmatprep.subr.mxu0 0.0
        %694 = vmatpush1.xpose.msra.mxu0 0.0
        %695 = vmatprep.subr.mxu0 0.0
        %696 = vmatpush1.xpose.msra.mxu0 0.0
        %697 = vmatprep.subr.mxu0 0.0
        %698 = vmatpush1.xpose.msra.mxu0 0.0
        %699 = vmatprep.subr.mxu0 0.0
        %700 = vmatpush1.xpose.msra.mxu0 0.0
        %701 = vmatprep.subr.mxu0 0.0
        %702 = vmatpush1.xpose.msra.mxu0 0.0
        %703 = vmatprep.subr.mxu0 0.0
        %704 = vmatpush1.xpose.msra.mxu0 0.0
        %705 = vmatprep.subr.mxu0 0.0
        %706 = vmatpush1.xpose.msra.mxu0 0.0
        %707 = vmatprep.subr.mxu0 0.0
        %708 = vmatpush1.xpose.msra.mxu0 0.0
        %709 = vmatprep.subr.mxu0 0.0
        %710 = vmatpush1.xpose.msra.mxu0 0.0
        %711 = vmatprep.subr.mxu0 0.0
        %712 = vmatpush1.xpose.msra.mxu0 0.0
        %713 = vmatprep.subr.mxu0 0.0
        %714 = vmatpush1.xpose.msra.mxu0 0.0
        %715 = vmatprep.mubr.f32.mxu0 0.0
        %716 = vmatmul.mubr.f32.gmra.mrb[0].mxu0 %v556
        %v717 = vpop.f32.mrb[0].mxu0
        %v718 = vadd.f32 0.0, %v717
        %v719 = vpop.f32.mrb[0].mxu0
        %720 = vmatprep.mubr.f32.mxu0 0.0
        %721 = vmatmul.mubr.f32.gmra.mrb[0].mxu0 %v559
        %v722 = vpop.f32.mrb[0].mxu0
        %v723 = vadd.f32 0.0, %v722
        %v724 = vpop.f32.mrb[0].mxu0
        %725 = vmatprep.mubr.f32.mxu0 0.0
        %726 = vmatmul.mubr.f32.gmra.mrb[0].mxu0 %v562
        %v727 = vpop.f32.mrb[0].mxu0
        %v728 = vadd.f32 0.0, %v727
        %v729 = vpop.f32.mrb[0].mxu0
        %730 = vmatprep.mubr.f32.mxu0 0.0
        %731 = vmatmul.mubr.f32.gmra.mrb[0].mxu0 %v565
        %v732 = vpop.f32.mrb[0].mxu0
        %v733 = vadd.f32 0.0, %v732
        %v734 = vpop.f32.mrb[0].mxu0
        %735 = vmatprep.mubr.f32.mxu0 0.0
        %736 = vmatmul.mubr.f32.gmra.mrb[0].mxu0 %v568
        %v737 = vpop.f32.mrb[0].mxu0
        %v738 = vadd.f32 0.0, %v737
        %v739 = vpop.f32.mrb[0].mxu0
        %740 = vmatprep.mubr.f32.mxu0 0.0
        %741 = vmatmul.mubr.f32.gmra.mrb[0].mxu0 %v571
        %v742 = vpop.f32.mrb[0].mxu0
        %v743 = vadd.f32 0.0, %v742
        %v744 = vpop.f32.mrb[0].mxu0
        %745 = vmatprep.mubr.f32.mxu0 0.0
        %746 = vmatmul.mubr.f32.gmra.mrb[0].mxu0 %v574
        %v747 = vpop.f32.mrb[0].mxu0
        %v748 = vadd.f32 0.0, %v747
        %v749 = vpop.f32.mrb[0].mxu0
        %750 = vmatprep.mubr.f32.mxu0 0.0
        %751 = vmatmul.mubr.f32.gmra.mrb[0].mxu0 %v577
        %v752 = vpop.f32.mrb[0].mxu0
        %v753 = vadd.f32 0.0, %v752
        %v754 = vpop.f32.mrb[0].mxu0
        %755 = vmatprep.mubr.f32.mxu0 0.0
        %756 = vmatmul.mubr.f32.gmra.mrb[0].mxu0 %v580
        %v757 = vpop.f32.mrb[0].mxu0
        %v758 = vadd.f32 0.0, %v757
        %v759 = vpop.f32.mrb[0].mxu0
        %760 = vmatprep.mubr.f32.mxu0 0.0
        %761 = vmatmul.mubr.f32.gmra.mrb[0].mxu0 %v583
        %v762 = vpop.f32.mrb[0].mxu0
        %v763 = vadd.f32 0.0, %v762
        %v764 = vpop.f32.mrb[0].mxu0
        %765 = vmatprep.mubr.f32.mxu0 0.0
        %766 = vmatmul.mubr.f32.gmra.mrb[0].mxu0 %v586
        %v767 = vpop.f32.mrb[0].mxu0
        %v768 = vadd.f32 0.0, %v767
        %v769 = vpop.f32.mrb[0].mxu0
        %770 = vmatprep.mubr.f32.mxu0 0.0
        %771 = vmatmul.mubr.f32.gmra.mrb[0].mxu0 %v589
        %v772 = vpop.f32.mrb[0].mxu0
        %v773 = vadd.f32 0.0, %v772
        %v774 = vpop.f32.mrb[0].mxu0
        %775 = vmatprep.mubr.f32.mxu0 0.0
        %776 = vmatmul.mubr.f32.gmra.mrb[0].mxu0 %v592
        %v777 = vpop.f32.mrb[0].mxu0
        %v778 = vadd.f32 0.0, %v777
        %v779 = vpop.f32.mrb[0].mxu0
        %780 = vmatprep.mubr.f32.mxu0 0.0
        %781 = vmatmul.mubr.f32.gmra.mrb[0].mxu0 %v595
        %v782 = vpop.f32.mrb[0].mxu0
        %v783 = vadd.f32 0.0, %v782
        %v784 = vpop.f32.mrb[0].mxu0
        %785 = vmatprep.mubr.f32.mxu0 0.0
        %786 = vmatmul.mubr.f32.gmra.mrb[0].mxu0 %v598
        %v787 = vpop.f32.mrb[0].mxu0
        %v788 = vadd.f32 0.0, %v787
        %v789 = vpop.f32.mrb[0].mxu0
        %790 = vmatprep.mubr.f32.mxu0 0.0
        %791 = vmatmul.mubr.f32.gmra.mrb[0].mxu0 %v601
        %v792 = vpop.f32.mrb[0].mxu0
        %v793 = vadd.f32 0.0, %v792
        %v794 = vpop.f32.mrb[0].mxu0
        %795 = vdwg.mxu0
        %v797 = vsel %vm554, %v378, 0
        %v800 = vsel %vm554, %v379, 0
        %v803 = vsel %vm554, %v380, 0
        %v806 = vsel %vm554, %v381, 0
        %v809 = vsel %vm554, %v382, 0
        %v812 = vsel %vm554, %v383, 0
        %v815 = vsel %vm554, %v384, 0
        %v818 = vsel %vm554, %v385, 0
        %v821 = vsel %vm554, %v386, 0
        %v824 = vsel %vm554, %v387, 0
        %v827 = vsel %vm554, %v388, 0
        %v830 = vsel %vm554, %v389, 0
        %v833 = vsel %vm554, %v390, 0
        %v836 = vsel %vm554, %v391, 0
        %v839 = vsel %vm554, %v392, 0
        %v842 = vsel %vm554, %v393, 0
        %v845 = vsel %vm554, %v442, 0
        %v848 = vsel %vm554, %v443, 0
        %v851 = vsel %vm554, %v444, 0
        %v854 = vsel %vm554, %v445, 0
        %v857 = vsel %vm554, %v446, 0
        %v860 = vsel %vm554, %v447, 0
        %v863 = vsel %vm554, %v448, 0
        %v866 = vsel %vm554, %v449, 0
        %v869 = vsel %vm554, %v450, 0
        %v872 = vsel %vm554, %v451, 0
        %v875 = vsel %vm554, %v452, 0
        %v878 = vsel %vm554, %v453, 0
        %v881 = vsel %vm554, %v454, 0
        %v884 = vsel %vm554, %v455, 0
        %v887 = vsel %vm554, %v456, 0
        %v890 = vsel %vm554, %v457, 0
        %892 = vmatprep.subr.mxu0 0.0
        %893 = vmatpush1.xpose.msra.mxu0 %v845
        %894 = vmatprep.subr.mxu0 0.0
        %895 = vmatpush1.xpose.msra.mxu0 %v848
        %896 = vmatprep.subr.mxu0 0.0
        %897 = vmatpush1.xpose.msra.mxu0 %v851
        %898 = vmatprep.subr.mxu0 0.0
        %899 = vmatpush1.xpose.msra.mxu0 %v854
        %900 = vmatprep.subr.mxu0 0.0
        %901 = vmatpush1.xpose.msra.mxu0 %v857
        %902 = vmatprep.subr.mxu0 0.0
        %903 = vmatpush1.xpose.msra.mxu0 %v860
        %904 = vmatprep.subr.mxu0 0.0
        %905 = vmatpush1.xpose.msra.mxu0 %v863
        %906 = vmatprep.subr.mxu0 0.0
        %907 = vmatpush1.xpose.msra.mxu0 %v866
        %908 = vmatprep.subr.mxu0 0.0
        %909 = vmatpush1.xpose.msra.mxu0 %v869
        %910 = vmatprep.subr.mxu0 0.0
        %911 = vmatpush1.xpose.msra.mxu0 %v872
        %912 = vmatprep.subr.mxu0 0.0
        %913 = vmatpush1.xpose.msra.mxu0 %v875
        %914 = vmatprep.subr.mxu0 0.0
        %915 = vmatpush1.xpose.msra.mxu0 %v878
        %916 = vmatprep.subr.mxu0 0.0
        %917 = vmatpush1.xpose.msra.mxu0 %v881
        %918 = vmatprep.subr.mxu0 0.0
        %919 = vmatpush1.xpose.msra.mxu0 %v884
        %920 = vmatprep.subr.mxu0 0.0
        %921 = vmatpush1.xpose.msra.mxu0 %v887
        %922 = vmatprep.subr.mxu0 0.0
        %923 = vmatpush1.xpose.msra.mxu0 %v890
        %924 = vmatprep.subr.mxu0 0.0
        %925 = vmatpush1.xpose.msra.mxu0 0.0
        %926 = vmatprep.subr.mxu0 0.0
        %927 = vmatpush1.xpose.msra.mxu0 0.0
        %928 = vmatprep.subr.mxu0 0.0
        %929 = vmatpush1.xpose.msra.mxu0 0.0
        %930 = vmatprep.subr.mxu0 0.0
        %931 = vmatpush1.xpose.msra.mxu0 0.0
        %932 = vmatprep.subr.mxu0 0.0
        %933 = vmatpush1.xpose.msra.mxu0 0.0
        %934 = vmatprep.subr.mxu0 0.0
        %935 = vmatpush1.xpose.msra.mxu0 0.0
        %936 = vmatprep.subr.mxu0 0.0
        %937 = vmatpush1.xpose.msra.mxu0 0.0
        %938 = vmatprep.subr.mxu0 0.0
        %939 = vmatpush1.xpose.msra.mxu0 0.0
        %940 = vmatprep.subr.mxu0 0.0
        %941 = vmatpush1.xpose.msra.mxu0 0.0
        %942 = vmatprep.subr.mxu0 0.0
        %943 = vmatpush1.xpose.msra.mxu0 0.0
        %944 = vmatprep.subr.mxu0 0.0
        %945 = vmatpush1.xpose.msra.mxu0 0.0
        %946 = vmatprep.subr.mxu0 0.0
        %947 = vmatpush1.xpose.msra.mxu0 0.0
        %948 = vmatprep.subr.mxu0 0.0
        %949 = vmatpush1.xpose.msra.mxu0 0.0
        %950 = vmatprep.subr.mxu0 0.0
        %951 = vmatpush1.xpose.msra.mxu0 0.0
        %952 = vmatprep.subr.mxu0 0.0
        %953 = vmatpush1.xpose.msra.mxu0 0.0
        %954 = vmatprep.subr.mxu0 0.0
        %955 = vmatpush1.xpose.msra.mxu0 0.0
        %956 = vmatprep.mubr.f32.mxu0 0.0
        %957 = vmatmul.mubr.f32.gmra.mrb[0].mxu0 %v797
        %v958 = vpop.f32.mrb[0].mxu0
        %v959 = vadd.f32 0.0, %v958
        %v960 = vpop.f32.mrb[0].mxu0
        %961 = vmatprep.mubr.f32.mxu0 0.0
        %962 = vmatmul.mubr.f32.gmra.mrb[0].mxu0 %v800
        %v963 = vpop.f32.mrb[0].mxu0
        %v964 = vadd.f32 0.0, %v963
        %v965 = vpop.f32.mrb[0].mxu0
        %966 = vmatprep.mubr.f32.mxu0 0.0
        %967 = vmatmul.mubr.f32.gmra.mrb[0].mxu0 %v803
        %v968 = vpop.f32.mrb[0].mxu0
        %v969 = vadd.f32 0.0, %v968
        %v970 = vpop.f32.mrb[0].mxu0
        %971 = vmatprep.mubr.f32.mxu0 0.0
        %972 = vmatmul.mubr.f32.gmra.mrb[0].mxu0 %v806
        %v973 = vpop.f32.mrb[0].mxu0
        %v974 = vadd.f32 0.0, %v973
        %v975 = vpop.f32.mrb[0].mxu0
        %976 = vmatprep.mubr.f32.mxu0 0.0
        %977 = vmatmul.mubr.f32.gmra.mrb[0].mxu0 %v809
        %v978 = vpop.f32.mrb[0].mxu0
        %v979 = vadd.f32 0.0, %v978
        %v980 = vpop.f32.mrb[0].mxu0
        %981 = vmatprep.mubr.f32.mxu0 0.0
        %982 = vmatmul.mubr.f32.gmra.mrb[0].mxu0 %v812
        %v983 = vpop.f32.mrb[0].mxu0
        %v984 = vadd.f32 0.0, %v983
        %v985 = vpop.f32.mrb[0].mxu0
        %986 = vmatprep.mubr.f32.mxu0 0.0
        %987 = vmatmul.mubr.f32.gmra.mrb[0].mxu0 %v815
        %v988 = vpop.f32.mrb[0].mxu0
        %v989 = vadd.f32 0.0, %v988
        %v990 = vpop.f32.mrb[0].mxu0
        %991 = vmatprep.mubr.f32.mxu0 0.0
        %992 = vmatmul.mubr.f32.gmra.mrb[0].mxu0 %v818
        %v993 = vpop.f32.mrb[0].mxu0
        %v994 = vadd.f32 0.0, %v993
        %v995 = vpop.f32.mrb[0].mxu0
        %996 = vmatprep.mubr.f32.mxu0 0.0
        %997 = vmatmul.mubr.f32.gmra.mrb[0].mxu0 %v821
        %v998 = vpop.f32.mrb[0].mxu0
        %v999 = vadd.f32 0.0, %v998
        %v1000 = vpop.f32.mrb[0].mxu0
        %1001 = vmatprep.mubr.f32.mxu0 0.0
        %1002 = vmatmul.mubr.f32.gmra.mrb[0].mxu0 %v824
        %v1003 = vpop.f32.mrb[0].mxu0
        %v1004 = vadd.f32 0.0, %v1003
        %v1005 = vpop.f32.mrb[0].mxu0
        %1006 = vmatprep.mubr.f32.mxu0 0.0
        %1007 = vmatmul.mubr.f32.gmra.mrb[0].mxu0 %v827
        %v1008 = vpop.f32.mrb[0].mxu0
        %v1009 = vadd.f32 0.0, %v1008
        %v1010 = vpop.f32.mrb[0].mxu0
        %1011 = vmatprep.mubr.f32.mxu0 0.0
        %1012 = vmatmul.mubr.f32.gmra.mrb[0].mxu0 %v830
        %v1013 = vpop.f32.mrb[0].mxu0
        %v1014 = vadd.f32 0.0, %v1013
        %v1015 = vpop.f32.mrb[0].mxu0
        %1016 = vmatprep.mubr.f32.mxu0 0.0
        %1017 = vmatmul.mubr.f32.gmra.mrb[0].mxu0 %v833
        %v1018 = vpop.f32.mrb[0].mxu0
        %v1019 = vadd.f32 0.0, %v1018
        %v1020 = vpop.f32.mrb[0].mxu0
        %1021 = vmatprep.mubr.f32.mxu0 0.0
        %1022 = vmatmul.mubr.f32.gmra.mrb[0].mxu0 %v836
        %v1023 = vpop.f32.mrb[0].mxu0
        %v1024 = vadd.f32 0.0, %v1023
        %v1025 = vpop.f32.mrb[0].mxu0
        %1026 = vmatprep.mubr.f32.mxu0 0.0
        %1027 = vmatmul.mubr.f32.gmra.mrb[0].mxu0 %v839
        %v1028 = vpop.f32.mrb[0].mxu0
        %v1029 = vadd.f32 0.0, %v1028
        %v1030 = vpop.f32.mrb[0].mxu0
        %1031 = vmatprep.mubr.f32.mxu0 0.0
        %1032 = vmatmul.mubr.f32.gmra.mrb[0].mxu0 %v842
        %v1033 = vpop.f32.mrb[0].mxu0
        %v1034 = vadd.f32 0.0, %v1033
        %v1035 = vpop.f32.mrb[0].mxu0
        %1036 = vdwg.mxu0
        %v1038 = vsel %vm554, %v394, 0
        %v1041 = vsel %vm554, %v395, 0
        %v1044 = vsel %vm554, %v396, 0
        %v1047 = vsel %vm554, %v397, 0
        %v1050 = vsel %vm554, %v398, 0
        %v1053 = vsel %vm554, %v399, 0
        %v1056 = vsel %vm554, %v400, 0
        %v1059 = vsel %vm554, %v401, 0
        %v1062 = vsel %vm554, %v402, 0
        %v1065 = vsel %vm554, %v403, 0
        %v1068 = vsel %vm554, %v404, 0
        %v1071 = vsel %vm554, %v405, 0
        %v1074 = vsel %vm554, %v406, 0
        %v1077 = vsel %vm554, %v407, 0
        %v1080 = vsel %vm554, %v408, 0
        %v1083 = vsel %vm554, %v409, 0
        %v1086 = vsel %vm554, %v458, 0
        %v1089 = vsel %vm554, %v459, 0
        %v1092 = vsel %vm554, %v460, 0
        %v1095 = vsel %vm554, %v461, 0
        %v1098 = vsel %vm554, %v462, 0
        %v1101 = vsel %vm554, %v463, 0
        %v1104 = vsel %vm554, %v464, 0
        %v1107 = vsel %vm554, %v465, 0
        %v1110 = vsel %vm554, %v466, 0
        %v1113 = vsel %vm554, %v467, 0
        %v1116 = vsel %vm554, %v468, 0
        %v1119 = vsel %vm554, %v469, 0
        %v1122 = vsel %vm554, %v470, 0
        %v1125 = vsel %vm554, %v471, 0
        %v1128 = vsel %vm554, %v472, 0
        %v1131 = vsel %vm554, %v473, 0
        %1133 = vmatprep.subr.mxu0 0.0
        %1134 = vmatpush1.xpose.msra.mxu0 %v1086
        %1135 = vmatprep.subr.mxu0 0.0
        %1136 = vmatpush1.xpose.msra.mxu0 %v1089
        %1137 = vmatprep.subr.mxu0 0.0
        %1138 = vmatpush1.xpose.msra.mxu0 %v1092
        %1139 = vmatprep.subr.mxu0 0.0
        %1140 = vmatpush1.xpose.msra.mxu0 %v1095
        %1141 = vmatprep.subr.mxu0 0.0
        %1142 = vmatpush1.xpose.msra.mxu0 %v1098
        %1143 = vmatprep.subr.mxu0 0.0
        %1144 = vmatpush1.xpose.msra.mxu0 %v1101
        %1145 = vmatprep.subr.mxu0 0.0
        %1146 = vmatpush1.xpose.msra.mxu0 %v1104
        %1147 = vmatprep.subr.mxu0 0.0
        %1148 = vmatpush1.xpose.msra.mxu0 %v1107
        %1149 = vmatprep.subr.mxu0 0.0
        %1150 = vmatpush1.xpose.msra.mxu0 %v1110
        %1151 = vmatprep.subr.mxu0 0.0
        %1152 = vmatpush1.xpose.msra.mxu0 %v1113
        %1153 = vmatprep.subr.mxu0 0.0
        %1154 = vmatpush1.xpose.msra.mxu0 %v1116
        %1155 = vmatprep.subr.mxu0 0.0
        %1156 = vmatpush1.xpose.msra.mxu0 %v1119
        %1157 = vmatprep.subr.mxu0 0.0
        %1158 = vmatpush1.xpose.msra.mxu0 %v1122
        %1159 = vmatprep.subr.mxu0 0.0
        %1160 = vmatpush1.xpose.msra.mxu0 %v1125
        %1161 = vmatprep.subr.mxu0 0.0
        %1162 = vmatpush1.xpose.msra.mxu0 %v1128
        %1163 = vmatprep.subr.mxu0 0.0
        %1164 = vmatpush1.xpose.msra.mxu0 %v1131
        %1165 = vmatprep.subr.mxu0 0.0
        %1166 = vmatpush1.xpose.msra.mxu0 0.0
        %1167 = vmatprep.subr.mxu0 0.0
        %1168 = vmatpush1.xpose.msra.mxu0 0.0
        %1169 = vmatprep.subr.mxu0 0.0
        %1170 = vmatpush1.xpose.msra.mxu0 0.0
        %1171 = vmatprep.subr.mxu0 0.0
        %1172 = vmatpush1.xpose.msra.mxu0 0.0
        %1173 = vmatprep.subr.mxu0 0.0
        %1174 = vmatpush1.xpose.msra.mxu0 0.0
        %1175 = vmatprep.subr.mxu0 0.0
        %1176 = vmatpush1.xpose.msra.mxu0 0.0
        %1177 = vmatprep.subr.mxu0 0.0
        %1178 = vmatpush1.xpose.msra.mxu0 0.0
        %1179 = vmatprep.subr.mxu0 0.0
        %1180 = vmatpush1.xpose.msra.mxu0 0.0
        %1181 = vmatprep.subr.mxu0 0.0
        %1182 = vmatpush1.xpose.msra.mxu0 0.0
        %1183 = vmatprep.subr.mxu0 0.0
        %1184 = vmatpush1.xpose.msra.mxu0 0.0
        %1185 = vmatprep.subr.mxu0 0.0
        %1186 = vmatpush1.xpose.msra.mxu0 0.0
        %1187 = vmatprep.subr.mxu0 0.0
        %1188 = vmatpush1.xpose.msra.mxu0 0.0
        %1189 = vmatprep.subr.mxu0 0.0
        %1190 = vmatpush1.xpose.msra.mxu0 0.0
        %1191 = vmatprep.subr.mxu0 0.0
        %1192 = vmatpush1.xpose.msra.mxu0 0.0
        %1193 = vmatprep.subr.mxu0 0.0
        %1194 = vmatpush1.xpose.msra.mxu0 0.0
        %1195 = vmatprep.subr.mxu0 0.0
        %1196 = vmatpush1.xpose.msra.mxu0 0.0
        %1197 = vmatprep.mubr.f32.mxu0 0.0
        %1198 = vmatmul.mubr.f32.gmra.mrb[0].mxu0 %v1038
        %v1199 = vpop.f32.mrb[0].mxu0
        %v1200 = vadd.f32 0.0, %v1199
        %v1201 = vpop.f32.mrb[0].mxu0
        %1202 = vmatprep.mubr.f32.mxu0 0.0
        %1203 = vmatmul.mubr.f32.gmra.mrb[0].mxu0 %v1041
        %v1204 = vpop.f32.mrb[0].mxu0
        %v1205 = vadd.f32 0.0, %v1204
        %v1206 = vpop.f32.mrb[0].mxu0
        %1207 = vmatprep.mubr.f32.mxu0 0.0
        %1208 = vmatmul.mubr.f32.gmra.mrb[0].mxu0 %v1044
        %v1209 = vpop.f32.mrb[0].mxu0
        %v1210 = vadd.f32 0.0, %v1209
        %v1211 = vpop.f32.mrb[0].mxu0
        %1212 = vmatprep.mubr.f32.mxu0 0.0
        %1213 = vmatmul.mubr.f32.gmra.mrb[0].mxu0 %v1047
        %v1214 = vpop.f32.mrb[0].mxu0
        %v1215 = vadd.f32 0.0, %v1214
        %v1216 = vpop.f32.mrb[0].mxu0
        %1217 = vmatprep.mubr.f32.mxu0 0.0
        %1218 = vmatmul.mubr.f32.gmra.mrb[0].mxu0 %v1050
        %v1219 = vpop.f32.mrb[0].mxu0
        %v1220 = vadd.f32 0.0, %v1219
        %v1221 = vpop.f32.mrb[0].mxu0
        %1222 = vmatprep.mubr.f32.mxu0 0.0
        %1223 = vmatmul.mubr.f32.gmra.mrb[0].mxu0 %v1053
        %v1224 = vpop.f32.mrb[0].mxu0
        %v1225 = vadd.f32 0.0, %v1224
        %v1226 = vpop.f32.mrb[0].mxu0
        %1227 = vmatprep.mubr.f32.mxu0 0.0
        %1228 = vmatmul.mubr.f32.gmra.mrb[0].mxu0 %v1056
        %v1229 = vpop.f32.mrb[0].mxu0
        %v1230 = vadd.f32 0.0, %v1229
        %v1231 = vpop.f32.mrb[0].mxu0
        %1232 = vmatprep.mubr.f32.mxu0 0.0
        %1233 = vmatmul.mubr.f32.gmra.mrb[0].mxu0 %v1059
        %v1234 = vpop.f32.mrb[0].mxu0
        %v1235 = vadd.f32 0.0, %v1234
        %v1236 = vpop.f32.mrb[0].mxu0
        %1237 = vmatprep.mubr.f32.mxu0 0.0
        %1238 = vmatmul.mubr.f32.gmra.mrb[0].mxu0 %v1062
        %v1239 = vpop.f32.mrb[0].mxu0
        %v1240 = vadd.f32 0.0, %v1239
        %v1241 = vpop.f32.mrb[0].mxu0
        %1242 = vmatprep.mubr.f32.mxu0 0.0
        %1243 = vmatmul.mubr.f32.gmra.mrb[0].mxu0 %v1065
        %v1244 = vpop.f32.mrb[0].mxu0
        %v1245 = vadd.f32 0.0, %v1244
        %v1246 = vpop.f32.mrb[0].mxu0
        %1247 = vmatprep.mubr.f32.mxu0 0.0
        %1248 = vmatmul.mubr.f32.gmra.mrb[0].mxu0 %v1068
        %v1249 = vpop.f32.mrb[0].mxu0
        %v1250 = vadd.f32 0.0, %v1249
        %v1251 = vpop.f32.mrb[0].mxu0
        %1252 = vmatprep.mubr.f32.mxu0 0.0
        %1253 = vmatmul.mubr.f32.gmra.mrb[0].mxu0 %v1071
        %v1254 = vpop.f32.mrb[0].mxu0
        %v1255 = vadd.f32 0.0, %v1254
        %v1256 = vpop.f32.mrb[0].mxu0
        %1257 = vmatprep.mubr.f32.mxu0 0.0
        %1258 = vmatmul.mubr.f32.gmra.mrb[0].mxu0 %v1074
        %v1259 = vpop.f32.mrb[0].mxu0
        %v1260 = vadd.f32 0.0, %v1259
        %v1261 = vpop.f32.mrb[0].mxu0
        %1262 = vmatprep.mubr.f32.mxu0 0.0
        %1263 = vmatmul.mubr.f32.gmra.mrb[0].mxu0 %v1077
        %v1264 = vpop.f32.mrb[0].mxu0
        %v1265 = vadd.f32 0.0, %v1264
        %v1266 = vpop.f32.mrb[0].mxu0
        %1267 = vmatprep.mubr.f32.mxu0 0.0
        %1268 = vmatmul.mubr.f32.gmra.mrb[0].mxu0 %v1080
        %v1269 = vpop.f32.mrb[0].mxu0
        %v1270 = vadd.f32 0.0, %v1269
        %v1271 = vpop.f32.mrb[0].mxu0
        %1272 = vmatprep.mubr.f32.mxu0 0.0
        %1273 = vmatmul.mubr.f32.gmra.mrb[0].mxu0 %v1083
        %v1274 = vpop.f32.mrb[0].mxu0
        %v1275 = vadd.f32 0.0, %v1274
        %v1276 = vpop.f32.mrb[0].mxu0
        %1277 = vdwg.mxu0
        %v1279 = vsel %vm554, %v410, 0
        %v1282 = vsel %vm554, %v411, 0
        %v1285 = vsel %vm554, %v412, 0
        %v1288 = vsel %vm554, %v413, 0
        %v1291 = vsel %vm554, %v414, 0
        %v1294 = vsel %vm554, %v415, 0
        %v1297 = vsel %vm554, %v416, 0
        %v1300 = vsel %vm554, %v417, 0
        %v1303 = vsel %vm554, %v418, 0
        %v1306 = vsel %vm554, %v419, 0
        %v1309 = vsel %vm554, %v420, 0
        %v1312 = vsel %vm554, %v421, 0
        %v1315 = vsel %vm554, %v422, 0
        %v1318 = vsel %vm554, %v423, 0
        %v1321 = vsel %vm554, %v424, 0
        %v1324 = vsel %vm554, %v425, 0
        %v1327 = vsel %vm554, %v474, 0
        %v1330 = vsel %vm554, %v475, 0
        %v1333 = vsel %vm554, %v476, 0
        %v1336 = vsel %vm554, %v477, 0
        %v1339 = vsel %vm554, %v478, 0
        %v1342 = vsel %vm554, %v479, 0
        %v1345 = vsel %vm554, %v480, 0
        %v1348 = vsel %vm554, %v481, 0
        %v1351 = vsel %vm554, %v482, 0
        %v1354 = vsel %vm554, %v483, 0
        %v1357 = vsel %vm554, %v484, 0
        %v1360 = vsel %vm554, %v485, 0
        %v1363 = vsel %vm554, %v486, 0
        %v1366 = vsel %vm554, %v487, 0
        %v1369 = vsel %vm554, %v488, 0
        %v1372 = vsel %vm554, %v489, 0
        %1374 = vmatprep.subr.mxu0 0.0
        %1375 = vmatpush1.xpose.msra.mxu0 %v1327
        %1376 = vmatprep.subr.mxu0 0.0
        %1377 = vmatpush1.xpose.msra.mxu0 %v1330
        %1378 = vmatprep.subr.mxu0 0.0
        %1379 = vmatpush1.xpose.msra.mxu0 %v1333
        %1380 = vmatprep.subr.mxu0 0.0
        %1381 = vmatpush1.xpose.msra.mxu0 %v1336
        %1382 = vmatprep.subr.mxu0 0.0
        %1383 = vmatpush1.xpose.msra.mxu0 %v1339
        %1384 = vmatprep.subr.mxu0 0.0
        %1385 = vmatpush1.xpose.msra.mxu0 %v1342
        %1386 = vmatprep.subr.mxu0 0.0
        %1387 = vmatpush1.xpose.msra.mxu0 %v1345
        %1388 = vmatprep.subr.mxu0 0.0
        %1389 = vmatpush1.xpose.msra.mxu0 %v1348
        %1390 = vmatprep.subr.mxu0 0.0
        %1391 = vmatpush1.xpose.msra.mxu0 %v1351
        %1392 = vmatprep.subr.mxu0 0.0
        %1393 = vmatpush1.xpose.msra.mxu0 %v1354
        %1394 = vmatprep.subr.mxu0 0.0
        %1395 = vmatpush1.xpose.msra.mxu0 %v1357
        %1396 = vmatprep.subr.mxu0 0.0
        %1397 = vmatpush1.xpose.msra.mxu0 %v1360
        %1398 = vmatprep.subr.mxu0 0.0
        %1399 = vmatpush1.xpose.msra.mxu0 %v1363
        %1400 = vmatprep.subr.mxu0 0.0
        %1401 = vmatpush1.xpose.msra.mxu0 %v1366
        %1402 = vmatprep.subr.mxu0 0.0
        %1403 = vmatpush1.xpose.msra.mxu0 %v1369
        %1404 = vmatprep.subr.mxu0 0.0
        %1405 = vmatpush1.xpose.msra.mxu0 %v1372
        %1406 = vmatprep.subr.mxu0 0.0
        %1407 = vmatpush1.xpose.msra.mxu0 0.0
        %1408 = vmatprep.subr.mxu0 0.0
        %1409 = vmatpush1.xpose.msra.mxu0 0.0
        %1410 = vmatprep.subr.mxu0 0.0
        %1411 = vmatpush1.xpose.msra.mxu0 0.0
        %1412 = vmatprep.subr.mxu0 0.0
        %1413 = vmatpush1.xpose.msra.mxu0 0.0
        %1414 = vmatprep.subr.mxu0 0.0
        %1415 = vmatpush1.xpose.msra.mxu0 0.0
        %1416 = vmatprep.subr.mxu0 0.0
        %1417 = vmatpush1.xpose.msra.mxu0 0.0
        %1418 = vmatprep.subr.mxu0 0.0
        %1419 = vmatpush1.xpose.msra.mxu0 0.0
        %1420 = vmatprep.subr.mxu0 0.0
        %1421 = vmatpush1.xpose.msra.mxu0 0.0
        %1422 = vmatprep.subr.mxu0 0.0
        %1423 = vmatpush1.xpose.msra.mxu0 0.0
        %1424 = vmatprep.subr.mxu0 0.0
        %1425 = vmatpush1.xpose.msra.mxu0 0.0
        %1426 = vmatprep.subr.mxu0 0.0
        %1427 = vmatpush1.xpose.msra.mxu0 0.0
        %1428 = vmatprep.subr.mxu0 0.0
        %1429 = vmatpush1.xpose.msra.mxu0 0.0
        %1430 = vmatprep.subr.mxu0 0.0
        %1431 = vmatpush1.xpose.msra.mxu0 0.0
        %1432 = vmatprep.subr.mxu0 0.0
        %1433 = vmatpush1.xpose.msra.mxu0 0.0
        %1434 = vmatprep.subr.mxu0 0.0
        %1435 = vmatpush1.xpose.msra.mxu0 0.0
        %1436 = vmatprep.subr.mxu0 0.0
        %1437 = vmatpush1.xpose.msra.mxu0 0.0
        %1438 = vmatprep.mubr.f32.mxu0 0.0
        %1439 = vmatmul.mubr.f32.gmra.mrb[0].mxu0 %v1279
        %v1440 = vpop.f32.mrb[0].mxu0
        %v1441 = vadd.f32 0.0, %v1440
        %v1442 = vpop.f32.mrb[0].mxu0
        %1443 = vmatprep.mubr.f32.mxu0 0.0
        %1444 = vmatmul.mubr.f32.gmra.mrb[0].mxu0 %v1282
        %v1445 = vpop.f32.mrb[0].mxu0
        %v1446 = vadd.f32 0.0, %v1445
        %v1447 = vpop.f32.mrb[0].mxu0
        %1448 = vmatprep.mubr.f32.mxu0 0.0
        %1449 = vmatmul.mubr.f32.gmra.mrb[0].mxu0 %v1285
        %v1450 = vpop.f32.mrb[0].mxu0
        %v1451 = vadd.f32 0.0, %v1450
        %v1452 = vpop.f32.mrb[0].mxu0
        %1453 = vmatprep.mubr.f32.mxu0 0.0
        %1454 = vmatmul.mubr.f32.gmra.mrb[0].mxu0 %v1288
        %v1455 = vpop.f32.mrb[0].mxu0
        %v1456 = vadd.f32 0.0, %v1455
        %v1457 = vpop.f32.mrb[0].mxu0
        %1458 = vmatprep.mubr.f32.mxu0 0.0
        %1459 = vmatmul.mubr.f32.gmra.mrb[0].mxu0 %v1291
        %v1460 = vpop.f32.mrb[0].mxu0
        %v1461 = vadd.f32 0.0, %v1460
        %v1462 = vpop.f32.mrb[0].mxu0
        %1463 = vmatprep.mubr.f32.mxu0 0.0
        %1464 = vmatmul.mubr.f32.gmra.mrb[0].mxu0 %v1294
        %v1465 = vpop.f32.mrb[0].mxu0
        %v1466 = vadd.f32 0.0, %v1465
        %v1467 = vpop.f32.mrb[0].mxu0
        %1468 = vmatprep.mubr.f32.mxu0 0.0
        %1469 = vmatmul.mubr.f32.gmra.mrb[0].mxu0 %v1297
        %v1470 = vpop.f32.mrb[0].mxu0
        %v1471 = vadd.f32 0.0, %v1470
        %v1472 = vpop.f32.mrb[0].mxu0
        %1473 = vmatprep.mubr.f32.mxu0 0.0
        %1474 = vmatmul.mubr.f32.gmra.mrb[0].mxu0 %v1300
        %v1475 = vpop.f32.mrb[0].mxu0
        %v1476 = vadd.f32 0.0, %v1475
        %v1477 = vpop.f32.mrb[0].mxu0
        %1478 = vmatprep.mubr.f32.mxu0 0.0
        %1479 = vmatmul.mubr.f32.gmra.mrb[0].mxu0 %v1303
        %v1480 = vpop.f32.mrb[0].mxu0
        %v1481 = vadd.f32 0.0, %v1480
        %v1482 = vpop.f32.mrb[0].mxu0
        %1483 = vmatprep.mubr.f32.mxu0 0.0
        %1484 = vmatmul.mubr.f32.gmra.mrb[0].mxu0 %v1306
        %v1485 = vpop.f32.mrb[0].mxu0
        %v1486 = vadd.f32 0.0, %v1485
        %v1487 = vpop.f32.mrb[0].mxu0
        %1488 = vmatprep.mubr.f32.mxu0 0.0
        %1489 = vmatmul.mubr.f32.gmra.mrb[0].mxu0 %v1309
        %v1490 = vpop.f32.mrb[0].mxu0
        %v1491 = vadd.f32 0.0, %v1490
        %v1492 = vpop.f32.mrb[0].mxu0
        %1493 = vmatprep.mubr.f32.mxu0 0.0
        %1494 = vmatmul.mubr.f32.gmra.mrb[0].mxu0 %v1312
        %v1495 = vpop.f32.mrb[0].mxu0
        %v1496 = vadd.f32 0.0, %v1495
        %v1497 = vpop.f32.mrb[0].mxu0
        %1498 = vmatprep.mubr.f32.mxu0 0.0
        %1499 = vmatmul.mubr.f32.gmra.mrb[0].mxu0 %v1315
        %v1500 = vpop.f32.mrb[0].mxu0
        %v1501 = vadd.f32 0.0, %v1500
        %v1502 = vpop.f32.mrb[0].mxu0
        %1503 = vmatprep.mubr.f32.mxu0 0.0
        %1504 = vmatmul.mubr.f32.gmra.mrb[0].mxu0 %v1318
        %v1505 = vpop.f32.mrb[0].mxu0
        %v1506 = vadd.f32 0.0, %v1505
        %v1507 = vpop.f32.mrb[0].mxu0
        %1508 = vmatprep.mubr.f32.mxu0 0.0
        %1509 = vmatmul.mubr.f32.gmra.mrb[0].mxu0 %v1321
        %v1510 = vpop.f32.mrb[0].mxu0
        %v1511 = vadd.f32 0.0, %v1510
        %v1512 = vpop.f32.mrb[0].mxu0
        %1513 = vmatprep.mubr.f32.mxu0 0.0
        %1514 = vmatmul.mubr.f32.gmra.mrb[0].mxu0 %v1324
        %v1515 = vpop.f32.mrb[0].mxu0
        %v1516 = vadd.f32 0.0, %v1515
        %v1517 = vpop.f32.mrb[0].mxu0
        %1518 = vdwg.mxu0
        %1519 = vmax.xlane.f32.xlu0 %v718
        %v1520 = vpop.xlane.xlu0 %1519
        %1521 = vmax.xlane.f32.xlu0 %v723
        %v1522 = vpop.xlane.xlu0 %1521
        %1523 = vmax.xlane.f32.xlu0 %v728
        %v1524 = vpop.xlane.xlu0 %1523
        %1525 = vmax.xlane.f32.xlu0 %v733
        %v1526 = vpop.xlane.xlu0 %1525
        %1527 = vmax.xlane.f32.xlu0 %v738
        %v1528 = vpop.xlane.xlu0 %1527
        %1529 = vmax.xlane.f32.xlu0 %v743
        %v1530 = vpop.xlane.xlu0 %1529
        %1531 = vmax.xlane.f32.xlu0 %v748
        %v1532 = vpop.xlane.xlu0 %1531
        %1533 = vmax.xlane.f32.xlu0 %v753
        %v1534 = vpop.xlane.xlu0 %1533
        %1535 = vmax.xlane.f32.xlu0 %v758
        %v1536 = vpop.xlane.xlu0 %1535
        %1537 = vmax.xlane.f32.xlu0 %v763
        %v1538 = vpop.xlane.xlu0 %1537
        %1539 = vmax.xlane.f32.xlu0 %v768
        %v1540 = vpop.xlane.xlu0 %1539
        %1541 = vmax.xlane.f32.xlu0 %v773
        %v1542 = vpop.xlane.xlu0 %1541
        %1543 = vmax.xlane.f32.xlu0 %v778
        %v1544 = vpop.xlane.xlu0 %1543
        %1545 = vmax.xlane.f32.xlu0 %v783
        %v1546 = vpop.xlane.xlu0 %1545
        %1547 = vmax.xlane.f32.xlu0 %v788
        %v1548 = vpop.xlane.xlu0 %1547
        %1549 = vmax.xlane.f32.xlu0 %v793
        %v1550 = vpop.xlane.xlu0 %1549
        %1551 = vmax.xlane.f32.xlu0 %v959
        %v1552 = vpop.xlane.xlu0 %1551
        %1553 = vmax.xlane.f32.xlu0 %v964
        %v1554 = vpop.xlane.xlu0 %1553
        %1555 = vmax.xlane.f32.xlu0 %v969
        %v1556 = vpop.xlane.xlu0 %1555
        %1557 = vmax.xlane.f32.xlu0 %v974
        %v1558 = vpop.xlane.xlu0 %1557
        %1559 = vmax.xlane.f32.xlu0 %v979
        %v1560 = vpop.xlane.xlu0 %1559
        %1561 = vmax.xlane.f32.xlu0 %v984
        %v1562 = vpop.xlane.xlu0 %1561
        %1563 = vmax.xlane.f32.xlu0 %v989
        %v1564 = vpop.xlane.xlu0 %1563
        %1565 = vmax.xlane.f32.xlu0 %v994
        %v1566 = vpop.xlane.xlu0 %1565
        %1567 = vmax.xlane.f32.xlu0 %v999
        %v1568 = vpop.xlane.xlu0 %1567
        %1569 = vmax.xlane.f32.xlu0 %v1004
        %v1570 = vpop.xlane.xlu0 %1569
        %1571 = vmax.xlane.f32.xlu0 %v1009
        %v1572 = vpop.xlane.xlu0 %1571
        %1573 = vmax.xlane.f32.xlu0 %v1014
        %v1574 = vpop.xlane.xlu0 %1573
        %1575 = vmax.xlane.f32.xlu0 %v1019
        %v1576 = vpop.xlane.xlu0 %1575
        %1577 = vmax.xlane.f32.xlu0 %v1024
        %v1578 = vpop.xlane.xlu0 %1577
        %1579 = vmax.xlane.f32.xlu0 %v1029
        %v1580 = vpop.xlane.xlu0 %1579
        %1581 = vmax.xlane.f32.xlu0 %v1034
        %v1582 = vpop.xlane.xlu0 %1581
        %1583 = vmax.xlane.f32.xlu0 %v1200
        %v1584 = vpop.xlane.xlu0 %1583
        %1585 = vmax.xlane.f32.xlu0 %v1205
        %v1586 = vpop.xlane.xlu0 %1585
        %1587 = vmax.xlane.f32.xlu0 %v1210
        %v1588 = vpop.xlane.xlu0 %1587
        %1589 = vmax.xlane.f32.xlu0 %v1215
        %v1590 = vpop.xlane.xlu0 %1589
        %1591 = vmax.xlane.f32.xlu0 %v1220
        %v1592 = vpop.xlane.xlu0 %1591
        %1593 = vmax.xlane.f32.xlu0 %v1225
        %v1594 = vpop.xlane.xlu0 %1593
        %1595 = vmax.xlane.f32.xlu0 %v1230
        %v1596 = vpop.xlane.xlu0 %1595
        %1597 = vmax.xlane.f32.xlu0 %v1235
        %v1598 = vpop.xlane.xlu0 %1597
        %1599 = vmax.xlane.f32.xlu0 %v1240
        %v1600 = vpop.xlane.xlu0 %1599
        %1601 = vmax.xlane.f32.xlu0 %v1245
        %v1602 = vpop.xlane.xlu0 %1601
        %1603 = vmax.xlane.f32.xlu0 %v1250
        %v1604 = vpop.xlane.xlu0 %1603
        %1605 = vmax.xlane.f32.xlu0 %v1255
        %v1606 = vpop.xlane.xlu0 %1605
        %1607 = vmax.xlane.f32.xlu0 %v1260
        %v1608 = vpop.xlane.xlu0 %1607
        %1609 = vmax.xlane.f32.xlu0 %v1265
        %v1610 = vpop.xlane.xlu0 %1609
        %1611 = vmax.xlane.f32.xlu0 %v1270
        %v1612 = vpop.xlane.xlu0 %1611
        %1613 = vmax.xlane.f32.xlu0 %v1275
        %v1614 = vpop.xlane.xlu0 %1613
        %1615 = vmax.xlane.f32.xlu0 %v1441
        %v1616 = vpop.xlane.xlu0 %1615
        %1617 = vmax.xlane.f32.xlu0 %v1446
        %v1618 = vpop.xlane.xlu0 %1617
        %1619 = vmax.xlane.f32.xlu0 %v1451
        %v1620 = vpop.xlane.xlu0 %1619
        %1621 = vmax.xlane.f32.xlu0 %v1456
        %v1622 = vpop.xlane.xlu0 %1621
        %1623 = vmax.xlane.f32.xlu0 %v1461
        %v1624 = vpop.xlane.xlu0 %1623
        %1625 = vmax.xlane.f32.xlu0 %v1466
        %v1626 = vpop.xlane.xlu0 %1625
        %1627 = vmax.xlane.f32.xlu0 %v1471
        %v1628 = vpop.xlane.xlu0 %1627
        %1629 = vmax.xlane.f32.xlu0 %v1476
        %v1630 = vpop.xlane.xlu0 %1629
        %1631 = vmax.xlane.f32.xlu0 %v1481
        %v1632 = vpop.xlane.xlu0 %1631
        %1633 = vmax.xlane.f32.xlu0 %v1486
        %v1634 = vpop.xlane.xlu0 %1633
        %1635 = vmax.xlane.f32.xlu0 %v1491
        %v1636 = vpop.xlane.xlu0 %1635
        %1637 = vmax.xlane.f32.xlu0 %v1496
        %v1638 = vpop.xlane.xlu0 %1637
        %1639 = vmax.xlane.f32.xlu0 %v1501
        %v1640 = vpop.xlane.xlu0 %1639
        %1641 = vmax.xlane.f32.xlu0 %v1506
        %v1642 = vpop.xlane.xlu0 %1641
        %1643 = vmax.xlane.f32.xlu0 %v1511
        %v1644 = vpop.xlane.xlu0 %1643
        %1645 = vmax.xlane.f32.xlu0 %v1516
        %v1646 = vpop.xlane.xlu0 %1645
        %v1647 = vsub.f32 %v718, %v1520
        %v1648 = vsub.f32 %v723, %v1522
        %v1649 = vsub.f32 %v728, %v1524
        %v1650 = vsub.f32 %v733, %v1526
        %v1651 = vsub.f32 %v738, %v1528
        %v1652 = vsub.f32 %v743, %v1530
        %v1653 = vsub.f32 %v748, %v1532
        %v1654 = vsub.f32 %v753, %v1534
        %v1655 = vsub.f32 %v758, %v1536
        %v1656 = vsub.f32 %v763, %v1538
        %v1657 = vsub.f32 %v768, %v1540
        %v1658 = vsub.f32 %v773, %v1542
        %v1659 = vsub.f32 %v778, %v1544
        %v1660 = vsub.f32 %v783, %v1546
        %v1661 = vsub.f32 %v788, %v1548
        %v1662 = vsub.f32 %v793, %v1550
        %v1663 = vsub.f32 %v959, %v1552
        %v1664 = vsub.f32 %v964, %v1554
        %v1665 = vsub.f32 %v969, %v1556
        %v1666 = vsub.f32 %v974, %v1558
        %v1667 = vsub.f32 %v979, %v1560
        %v1668 = vsub.f32 %v984, %v1562
        %v1669 = vsub.f32 %v989, %v1564
        %v1670 = vsub.f32 %v994, %v1566
        %v1671 = vsub.f32 %v999, %v1568
        %v1672 = vsub.f32 %v1004, %v1570
        %v1673 = vsub.f32 %v1009, %v1572
        %v1674 = vsub.f32 %v1014, %v1574
        %v1675 = vsub.f32 %v1019, %v1576
        %v1676 = vsub.f32 %v1024, %v1578
        %v1677 = vsub.f32 %v1029, %v1580
        %v1678 = vsub.f32 %v1034, %v1582
        %v1679 = vsub.f32 %v1200, %v1584
        %v1680 = vsub.f32 %v1205, %v1586
        %v1681 = vsub.f32 %v1210, %v1588
        %v1682 = vsub.f32 %v1215, %v1590
        %v1683 = vsub.f32 %v1220, %v1592
        %v1684 = vsub.f32 %v1225, %v1594
        %v1685 = vsub.f32 %v1230, %v1596
        %v1686 = vsub.f32 %v1235, %v1598
        %v1687 = vsub.f32 %v1240, %v1600
        %v1688 = vsub.f32 %v1245, %v1602
        %v1689 = vsub.f32 %v1250, %v1604
        %v1690 = vsub.f32 %v1255, %v1606
        %v1691 = vsub.f32 %v1260, %v1608
        %v1692 = vsub.f32 %v1265, %v1610
        %v1693 = vsub.f32 %v1270, %v1612
        %v1694 = vsub.f32 %v1275, %v1614
        %v1695 = vsub.f32 %v1441, %v1616
        %v1696 = vsub.f32 %v1446, %v1618
        %v1697 = vsub.f32 %v1451, %v1620
        %v1698 = vsub.f32 %v1456, %v1622
        %v1699 = vsub.f32 %v1461, %v1624
        %v1700 = vsub.f32 %v1466, %v1626
        %v1701 = vsub.f32 %v1471, %v1628
        %v1702 = vsub.f32 %v1476, %v1630
        %v1703 = vsub.f32 %v1481, %v1632
        %v1704 = vsub.f32 %v1486, %v1634
        %v1705 = vsub.f32 %v1491, %v1636
        %v1706 = vsub.f32 %v1496, %v1638
        %v1707 = vsub.f32 %v1501, %v1640
        %v1708 = vsub.f32 %v1506, %v1642
        %v1709 = vsub.f32 %v1511, %v1644
        %v1710 = vsub.f32 %v1516, %v1646
        %v1711 = vmul.f32 %v1647, 1.442695
        %v1712 = vpow.pop %v1711
        %v1713 = vmul.f32 %v1648, 1.442695
        %v1714 = vpow.pop %v1713
        %v1715 = vmul.f32 %v1649, 1.442695
        %v1716 = vpow.pop %v1715
        %v1717 = vmul.f32 %v1650, 1.442695
        %v1718 = vpow.pop %v1717
        %v1719 = vmul.f32 %v1651, 1.442695
        %v1720 = vpow.pop %v1719
        %v1721 = vmul.f32 %v1652, 1.442695
        %v1722 = vpow.pop %v1721
        %v1723 = vmul.f32 %v1653, 1.442695
        %v1724 = vpow.pop %v1723
        %v1725 = vmul.f32 %v1654, 1.442695
        %v1726 = vpow.pop %v1725
        %v1727 = vmul.f32 %v1655, 1.442695
        %v1728 = vpow.pop %v1727
        %v1729 = vmul.f32 %v1656, 1.442695
        %v1730 = vpow.pop %v1729
        %v1731 = vmul.f32 %v1657, 1.442695
        %v1732 = vpow.pop %v1731
        %v1733 = vmul.f32 %v1658, 1.442695
        %v1734 = vpow.pop %v1733
        %v1735 = vmul.f32 %v1659, 1.442695
        %v1736 = vpow.pop %v1735
        %v1737 = vmul.f32 %v1660, 1.442695
        %v1738 = vpow.pop %v1737
        %v1739 = vmul.f32 %v1661, 1.442695
        %v1740 = vpow.pop %v1739
        %v1741 = vmul.f32 %v1662, 1.442695
        %v1742 = vpow.pop %v1741
        %v1743 = vmul.f32 %v1663, 1.442695
        %v1744 = vpow.pop %v1743
        %v1745 = vmul.f32 %v1664, 1.442695
        %v1746 = vpow.pop %v1745
        %v1747 = vmul.f32 %v1665, 1.442695
        %v1748 = vpow.pop %v1747
        %v1749 = vmul.f32 %v1666, 1.442695
        %v1750 = vpow.pop %v1749
        %v1751 = vmul.f32 %v1667, 1.442695
        %v1752 = vpow.pop %v1751
        %v1753 = vmul.f32 %v1668, 1.442695
        %v1754 = vpow.pop %v1753
        %v1755 = vmul.f32 %v1669, 1.442695
        %v1756 = vpow.pop %v1755
        %v1757 = vmul.f32 %v1670, 1.442695
        %v1758 = vpow.pop %v1757
        %v1759 = vmul.f32 %v1671, 1.442695
        %v1760 = vpow.pop %v1759
        %v1761 = vmul.f32 %v1672, 1.442695
        %v1762 = vpow.pop %v1761
        %v1763 = vmul.f32 %v1673, 1.442695
        %v1764 = vpow.pop %v1763
        %v1765 = vmul.f32 %v1674, 1.442695
        %v1766 = vpow.pop %v1765
        %v1767 = vmul.f32 %v1675, 1.442695
        %v1768 = vpow.pop %v1767
        %v1769 = vmul.f32 %v1676, 1.442695
        %v1770 = vpow.pop %v1769
        %v1771 = vmul.f32 %v1677, 1.442695
        %v1772 = vpow.pop %v1771
        %v1773 = vmul.f32 %v1678, 1.442695
        %v1774 = vpow.pop %v1773
        %v1775 = vmul.f32 %v1679, 1.442695
        %v1776 = vpow.pop %v1775
        %v1777 = vmul.f32 %v1680, 1.442695
        %v1778 = vpow.pop %v1777
        %v1779 = vmul.f32 %v1681, 1.442695
        %v1780 = vpow.pop %v1779
        %v1781 = vmul.f32 %v1682, 1.442695
        %v1782 = vpow.pop %v1781
        %v1783 = vmul.f32 %v1683, 1.442695
        %v1784 = vpow.pop %v1783
        %v1785 = vmul.f32 %v1684, 1.442695
        %v1786 = vpow.pop %v1785
        %v1787 = vmul.f32 %v1685, 1.442695
        %v1788 = vpow.pop %v1787
        %v1789 = vmul.f32 %v1686, 1.442695
        %v1790 = vpow.pop %v1789
        %v1791 = vmul.f32 %v1687, 1.442695
        %v1792 = vpow.pop %v1791
        %v1793 = vmul.f32 %v1688, 1.442695
        %v1794 = vpow.pop %v1793
        %v1795 = vmul.f32 %v1689, 1.442695
        %v1796 = vpow.pop %v1795
        %v1797 = vmul.f32 %v1690, 1.442695
        %v1798 = vpow.pop %v1797
        %v1799 = vmul.f32 %v1691, 1.442695
        %v1800 = vpow.pop %v1799
        %v1801 = vmul.f32 %v1692, 1.442695
        %v1802 = vpow.pop %v1801
        %v1803 = vmul.f32 %v1693, 1.442695
        %v1804 = vpow.pop %v1803
        %v1805 = vmul.f32 %v1694, 1.442695
        %v1806 = vpow.pop %v1805
        %v1807 = vmul.f32 %v1695, 1.442695
        %v1808 = vpow.pop %v1807
        %v1809 = vmul.f32 %v1696, 1.442695
        %v1810 = vpow.pop %v1809
        %v1811 = vmul.f32 %v1697, 1.442695
        %v1812 = vpow.pop %v1811
        %v1813 = vmul.f32 %v1698, 1.442695
        %v1814 = vpow.pop %v1813
        %v1815 = vmul.f32 %v1699, 1.442695
        %v1816 = vpow.pop %v1815
        %v1817 = vmul.f32 %v1700, 1.442695
        %v1818 = vpow.pop %v1817
        %v1819 = vmul.f32 %v1701, 1.442695
        %v1820 = vpow.pop %v1819
        %v1821 = vmul.f32 %v1702, 1.442695
        %v1822 = vpow.pop %v1821
        %v1823 = vmul.f32 %v1703, 1.442695
        %v1824 = vpow.pop %v1823
        %v1825 = vmul.f32 %v1704, 1.442695
        %v1826 = vpow.pop %v1825
        %v1827 = vmul.f32 %v1705, 1.442695
        %v1828 = vpow.pop %v1827
        %v1829 = vmul.f32 %v1706, 1.442695
        %v1830 = vpow.pop %v1829
        %v1831 = vmul.f32 %v1707, 1.442695
        %v1832 = vpow.pop %v1831
        %v1833 = vmul.f32 %v1708, 1.442695
        %v1834 = vpow.pop %v1833
        %v1835 = vmul.f32 %v1709, 1.442695
        %v1836 = vpow.pop %v1835
        %v1837 = vmul.f32 %v1710, 1.442695
        %v1838 = vpow.pop %v1837
        %1839 = vadd.xlane.f32.xlu0 %v1712
        %v1840 = vpop.xlane.xlu0 %1839
        %1841 = vadd.xlane.f32.xlu0 %v1714
        %v1842 = vpop.xlane.xlu0 %1841
        %1843 = vadd.xlane.f32.xlu0 %v1716
        %v1844 = vpop.xlane.xlu0 %1843
        %1845 = vadd.xlane.f32.xlu0 %v1718
        %v1846 = vpop.xlane.xlu0 %1845
        %1847 = vadd.xlane.f32.xlu0 %v1720
        %v1848 = vpop.xlane.xlu0 %1847
        %1849 = vadd.xlane.f32.xlu0 %v1722
        %v1850 = vpop.xlane.xlu0 %1849
        %1851 = vadd.xlane.f32.xlu0 %v1724
        %v1852 = vpop.xlane.xlu0 %1851
        %1853 = vadd.xlane.f32.xlu0 %v1726
        %v1854 = vpop.xlane.xlu0 %1853
        %1855 = vadd.xlane.f32.xlu0 %v1728
        %v1856 = vpop.xlane.xlu0 %1855
        %1857 = vadd.xlane.f32.xlu0 %v1730
        %v1858 = vpop.xlane.xlu0 %1857
        %1859 = vadd.xlane.f32.xlu0 %v1732
        %v1860 = vpop.xlane.xlu0 %1859
        %1861 = vadd.xlane.f32.xlu0 %v1734
        %v1862 = vpop.xlane.xlu0 %1861
        %1863 = vadd.xlane.f32.xlu0 %v1736
        %v1864 = vpop.xlane.xlu0 %1863
        %1865 = vadd.xlane.f32.xlu0 %v1738
        %v1866 = vpop.xlane.xlu0 %1865
        %1867 = vadd.xlane.f32.xlu0 %v1740
        %v1868 = vpop.xlane.xlu0 %1867
        %1869 = vadd.xlane.f32.xlu0 %v1742
        %v1870 = vpop.xlane.xlu0 %1869
        %1871 = vadd.xlane.f32.xlu0 %v1744
        %v1872 = vpop.xlane.xlu0 %1871
        %1873 = vadd.xlane.f32.xlu0 %v1746
        %v1874 = vpop.xlane.xlu0 %1873
        %1875 = vadd.xlane.f32.xlu0 %v1748
        %v1876 = vpop.xlane.xlu0 %1875
        %1877 = vadd.xlane.f32.xlu0 %v1750
        %v1878 = vpop.xlane.xlu0 %1877
        %1879 = vadd.xlane.f32.xlu0 %v1752
        %v1880 = vpop.xlane.xlu0 %1879
        %1881 = vadd.xlane.f32.xlu0 %v1754
        %v1882 = vpop.xlane.xlu0 %1881
        %1883 = vadd.xlane.f32.xlu0 %v1756
        %v1884 = vpop.xlane.xlu0 %1883
        %1885 = vadd.xlane.f32.xlu0 %v1758
        %v1886 = vpop.xlane.xlu0 %1885
        %1887 = vadd.xlane.f32.xlu0 %v1760
        %v1888 = vpop.xlane.xlu0 %1887
        %1889 = vadd.xlane.f32.xlu0 %v1762
        %v1890 = vpop.xlane.xlu0 %1889
        %1891 = vadd.xlane.f32.xlu0 %v1764
        %v1892 = vpop.xlane.xlu0 %1891
        %1893 = vadd.xlane.f32.xlu0 %v1766
        %v1894 = vpop.xlane.xlu0 %1893
        %1895 = vadd.xlane.f32.xlu0 %v1768
        %v1896 = vpop.xlane.xlu0 %1895
        %1897 = vadd.xlane.f32.xlu0 %v1770
        %v1898 = vpop.xlane.xlu0 %1897
        %1899 = vadd.xlane.f32.xlu0 %v1772
        %v1900 = vpop.xlane.xlu0 %1899
        %1901 = vadd.xlane.f32.xlu0 %v1774
        %v1902 = vpop.xlane.xlu0 %1901
        %1903 = vadd.xlane.f32.xlu0 %v1776
        %v1904 = vpop.xlane.xlu0 %1903
        %1905 = vadd.xlane.f32.xlu0 %v1778
        %v1906 = vpop.xlane.xlu0 %1905
        %1907 = vadd.xlane.f32.xlu0 %v1780
        %v1908 = vpop.xlane.xlu0 %1907
        %1909 = vadd.xlane.f32.xlu0 %v1782
        %v1910 = vpop.xlane.xlu0 %1909
        %1911 = vadd.xlane.f32.xlu0 %v1784
        %v1912 = vpop.xlane.xlu0 %1911
        %1913 = vadd.xlane.f32.xlu0 %v1786
        %v1914 = vpop.xlane.xlu0 %1913
        %1915 = vadd.xlane.f32.xlu0 %v1788
        %v1916 = vpop.xlane.xlu0 %1915
        %1917 = vadd.xlane.f32.xlu0 %v1790
        %v1918 = vpop.xlane.xlu0 %1917
        %1919 = vadd.xlane.f32.xlu0 %v1792
        %v1920 = vpop.xlane.xlu0 %1919
        %1921 = vadd.xlane.f32.xlu0 %v1794
        %v1922 = vpop.xlane.xlu0 %1921
        %1923 = vadd.xlane.f32.xlu0 %v1796
        %v1924 = vpop.xlane.xlu0 %1923
        %1925 = vadd.xlane.f32.xlu0 %v1798
        %v1926 = vpop.xlane.xlu0 %1925
        %1927 = vadd.xlane.f32.xlu0 %v1800
        %v1928 = vpop.xlane.xlu0 %1927
        %1929 = vadd.xlane.f32.xlu0 %v1802
        %v1930 = vpop.xlane.xlu0 %1929
        %1931 = vadd.xlane.f32.xlu0 %v1804
        %v1932 = vpop.xlane.xlu0 %1931
        %1933 = vadd.xlane.f32.xlu0 %v1806
        %v1934 = vpop.xlane.xlu0 %1933
        %1935 = vadd.xlane.f32.xlu0 %v1808
        %v1936 = vpop.xlane.xlu0 %1935
        %1937 = vadd.xlane.f32.xlu0 %v1810
        %v1938 = vpop.xlane.xlu0 %1937
        %1939 = vadd.xlane.f32.xlu0 %v1812
        %v1940 = vpop.xlane.xlu0 %1939
        %1941 = vadd.xlane.f32.xlu0 %v1814
        %v1942 = vpop.xlane.xlu0 %1941
        %1943 = vadd.xlane.f32.xlu0 %v1816
        %v1944 = vpop.xlane.xlu0 %1943
        %1945 = vadd.xlane.f32.xlu0 %v1818
        %v1946 = vpop.xlane.xlu0 %1945
        %1947 = vadd.xlane.f32.xlu0 %v1820
        %v1948 = vpop.xlane.xlu0 %1947
        %1949 = vadd.xlane.f32.xlu0 %v1822
        %v1950 = vpop.xlane.xlu0 %1949
        %1951 = vadd.xlane.f32.xlu0 %v1824
        %v1952 = vpop.xlane.xlu0 %1951
        %1953 = vadd.xlane.f32.xlu0 %v1826
        %v1954 = vpop.xlane.xlu0 %1953
        %1955 = vadd.xlane.f32.xlu0 %v1828
        %v1956 = vpop.xlane.xlu0 %1955
        %1957 = vadd.xlane.f32.xlu0 %v1830
        %v1958 = vpop.xlane.xlu0 %1957
        %1959 = vadd.xlane.f32.xlu0 %v1832
        %v1960 = vpop.xlane.xlu0 %1959
        %1961 = vadd.xlane.f32.xlu0 %v1834
        %v1962 = vpop.xlane.xlu0 %1961
        %1963 = vadd.xlane.f32.xlu0 %v1836
        %v1964 = vpop.xlane.xlu0 %1963
        %1965 = vadd.xlane.f32.xlu0 %v1838
        %v1966 = vpop.xlane.xlu0 %1965
        %v1967 = vrcp.pop %v1840
        %v1968 = vrcp.pop %v1842
        %v1969 = vrcp.pop %v1844
        %v1970 = vrcp.pop %v1846
        %v1971 = vrcp.pop %v1848
        %v1972 = vrcp.pop %v1850
        %v1973 = vrcp.pop %v1852
        %v1974 = vrcp.pop %v1854
        %v1975 = vrcp.pop %v1856
        %v1976 = vrcp.pop %v1858
        %v1977 = vrcp.pop %v1860
        %v1978 = vrcp.pop %v1862
        %v1979 = vrcp.pop %v1864
        %v1980 = vrcp.pop %v1866
        %v1981 = vrcp.pop %v1868
        %v1982 = vrcp.pop %v1870
        %v1983 = vrcp.pop %v1872
        %v1984 = vrcp.pop %v1874
        %v1985 = vrcp.pop %v1876
        %v1986 = vrcp.pop %v1878
        %v1987 = vrcp.pop %v1880
        %v1988 = vrcp.pop %v1882
        %v1989 = vrcp.pop %v1884
        %v1990 = vrcp.pop %v1886
        %v1991 = vrcp.pop %v1888
        %v1992 = vrcp.pop %v1890
        %v1993 = vrcp.pop %v1892
        %v1994 = vrcp.pop %v1894
        %v1995 = vrcp.pop %v1896
        %v1996 = vrcp.pop %v1898
        %v1997 = vrcp.pop %v1900
        %v1998 = vrcp.pop %v1902
        %v1999 = vrcp.pop %v1904
        %v2000 = vrcp.pop %v1906
        %v2001 = vrcp.pop %v1908
        %v2002 = vrcp.pop %v1910
        %v2003 = vrcp.pop %v1912
        %v2004 = vrcp.pop %v1914
        %v2005 = vrcp.pop %v1916
        %v2006 = vrcp.pop %v1918
        %v2007 = vrcp.pop %v1920
        %v2008 = vrcp.pop %v1922
        %v2009 = vrcp.pop %v1924
        %v2010 = vrcp.pop %v1926
        %v2011 = vrcp.pop %v1928
        %v2012 = vrcp.pop %v1930
        %v2013 = vrcp.pop %v1932
        %v2014 = vrcp.pop %v1934
        %v2015 = vrcp.pop %v1936
        %v2016 = vrcp.pop %v1938
        %v2017 = vrcp.pop %v1940
        %v2018 = vrcp.pop %v1942
        %v2019 = vrcp.pop %v1944
        %v2020 = vrcp.pop %v1946
        %v2021 = vrcp.pop %v1948
        %v2022 = vrcp.pop %v1950
        %v2023 = vrcp.pop %v1952
        %v2024 = vrcp.pop %v1954
        %v2025 = vrcp.pop %v1956
        %v2026 = vrcp.pop %v1958
        %v2027 = vrcp.pop %v1960
        %v2028 = vrcp.pop %v1962
        %v2029 = vrcp.pop %v1964
        %v2030 = vrcp.pop %v1966
        %v2031 = vmul.f32 %v1712, %v1967
        %v2032 = vmul.f32 %v1714, %v1968
        %v2033 = vmul.f32 %v1716, %v1969
        %v2034 = vmul.f32 %v1718, %v1970
        %v2035 = vmul.f32 %v1720, %v1971
        %v2036 = vmul.f32 %v1722, %v1972
        %v2037 = vmul.f32 %v1724, %v1973
        %v2038 = vmul.f32 %v1726, %v1974
        %v2039 = vmul.f32 %v1728, %v1975
        %v2040 = vmul.f32 %v1730, %v1976
        %v2041 = vmul.f32 %v1732, %v1977
        %v2042 = vmul.f32 %v1734, %v1978
        %v2043 = vmul.f32 %v1736, %v1979
        %v2044 = vmul.f32 %v1738, %v1980
        %v2045 = vmul.f32 %v1740, %v1981
        %v2046 = vmul.f32 %v1742, %v1982
        %v2047 = vmul.f32 %v1744, %v1983
        %v2048 = vmul.f32 %v1746, %v1984
        %v2049 = vmul.f32 %v1748, %v1985
        %v2050 = vmul.f32 %v1750, %v1986
        %v2051 = vmul.f32 %v1752, %v1987
        %v2052 = vmul.f32 %v1754, %v1988
        %v2053 = vmul.f32 %v1756, %v1989
        %v2054 = vmul.f32 %v1758, %v1990
        %v2055 = vmul.f32 %v1760, %v1991
        %v2056 = vmul.f32 %v1762, %v1992
        %v2057 = vmul.f32 %v1764, %v1993
        %v2058 = vmul.f32 %v1766, %v1994
        %v2059 = vmul.f32 %v1768, %v1995
        %v2060 = vmul.f32 %v1770, %v1996
        %v2061 = vmul.f32 %v1772, %v1997
        %v2062 = vmul.f32 %v1774, %v1998
        %v2063 = vmul.f32 %v1776, %v1999
        %v2064 = vmul.f32 %v1778, %v2000
        %v2065 = vmul.f32 %v1780, %v2001
        %v2066 = vmul.f32 %v1782, %v2002
        %v2067 = vmul.f32 %v1784, %v2003
        %v2068 = vmul.f32 %v1786, %v2004
        %v2069 = vmul.f32 %v1788, %v2005
        %v2070 = vmul.f32 %v1790, %v2006
        %v2071 = vmul.f32 %v1792, %v2007
        %v2072 = vmul.f32 %v1794, %v2008
        %v2073 = vmul.f32 %v1796, %v2009
        %v2074 = vmul.f32 %v1798, %v2010
        %v2075 = vmul.f32 %v1800, %v2011
        %v2076 = vmul.f32 %v1802, %v2012
        %v2077 = vmul.f32 %v1804, %v2013
        %v2078 = vmul.f32 %v1806, %v2014
        %v2079 = vmul.f32 %v1808, %v2015
        %v2080 = vmul.f32 %v1810, %v2016
        %v2081 = vmul.f32 %v1812, %v2017
        %v2082 = vmul.f32 %v1814, %v2018
        %v2083 = vmul.f32 %v1816, %v2019
        %v2084 = vmul.f32 %v1818, %v2020
        %v2085 = vmul.f32 %v1820, %v2021
        %v2086 = vmul.f32 %v1822, %v2022
        %v2087 = vmul.f32 %v1824, %v2023
        %v2088 = vmul.f32 %v1826, %v2024
        %v2089 = vmul.f32 %v1828, %v2025
        %v2090 = vmul.f32 %v1830, %v2026
        %v2091 = vmul.f32 %v1832, %v2027
        %v2092 = vmul.f32 %v1834, %v2028
        %v2093 = vmul.f32 %v1836, %v2029
        %v2094 = vmul.f32 %v1838, %v2030
        %2095 = vst [vmem:[%s260] sm:$0xff] %v2031
        %2096 = vst [vmem:[%s260 + $0x8] sm:$0xff] %v2032
        %2097 = vst [vmem:[%s260 + $0x10] sm:$0xff] %v2033
        %2098 = vst [vmem:[%s260 + $0x18] sm:$0xff] %v2034
        %2099 = vst [vmem:[%s260 + $0x20] sm:$0xff] %v2035
        %2100 = vst [vmem:[%s260 + $0x28] sm:$0xff] %v2036
        %2101 = vst [vmem:[%s260 + $0x30] sm:$0xff] %v2037
        %2102 = vst [vmem:[%s260 + $0x38] sm:$0xff] %v2038
        %2103 = vst [vmem:[%s260 + $0x40] sm:$0xff] %v2039
        %2104 = vst [vmem:[%s260 + $0x48] sm:$0xff] %v2040
        %2105 = vst [vmem:[%s260 + $0x50] sm:$0xff] %v2041
        %2106 = vst [vmem:[%s260 + $0x58] sm:$0xff] %v2042
        %2107 = vst [vmem:[%s260 + $0x60] sm:$0xff] %v2043
        %2108 = vst [vmem:[%s260 + $0x68] sm:$0xff] %v2044
        %2109 = vst [vmem:[%s260 + $0x70] sm:$0xff] %v2045
        %2110 = vst [vmem:[%s260 + $0x78] sm:$0xff] %v2046
        %2111 = vst [vmem:[%s260 + $0x80] sm:$0xff] %v2047
        %2112 = vst [vmem:[%s260 + $0x88] sm:$0xff] %v2048
        %2113 = vst [vmem:[%s260 + $0x90] sm:$0xff] %v2049
        %2114 = vst [vmem:[%s260 + $0x98] sm:$0xff] %v2050
        %2115 = vst [vmem:[%s260 + $0xa0] sm:$0xff] %v2051
        %2116 = vst [vmem:[%s260 + $0xa8] sm:$0xff] %v2052
        %2117 = vst [vmem:[%s260 + $0xb0] sm:$0xff] %v2053
        %2118 = vst [vmem:[%s260 + $0xb8] sm:$0xff] %v2054
        %2119 = vst [vmem:[%s260 + $0xc0] sm:$0xff] %v2055
        %2120 = vst [vmem:[%s260 + $0xc8] sm:$0xff] %v2056
        %2121 = vst [vmem:[%s260 + $0xd0] sm:$0xff] %v2057
        %2122 = vst [vmem:[%s260 + $0xd8] sm:$0xff] %v2058
        %2123 = vst [vmem:[%s260 + $0xe0] sm:$0xff] %v2059
        %2124 = vst [vmem:[%s260 + $0xe8] sm:$0xff] %v2060
        %2125 = vst [vmem:[%s260 + $0xf0] sm:$0xff] %v2061
        %2126 = vst [vmem:[%s260 + $0xf8] sm:$0xff] %v2062
        %2127 = vst [vmem:[%s260 + $0x100] sm:$0xff] %v2063
        %2128 = vst [vmem:[%s260 + $0x108] sm:$0xff] %v2064
        %2129 = vst [vmem:[%s260 + $0x110] sm:$0xff] %v2065
        %2130 = vst [vmem:[%s260 + $0x118] sm:$0xff] %v2066
        %2131 = vst [vmem:[%s260 + $0x120] sm:$0xff] %v2067
        %2132 = vst [vmem:[%s260 + $0x128] sm:$0xff] %v2068
        %2133 = vst [vmem:[%s260 + $0x130] sm:$0xff] %v2069
        %2134 = vst [vmem:[%s260 + $0x138] sm:$0xff] %v2070
        %2135 = vst [vmem:[%s260 + $0x140] sm:$0xff] %v2071
        %2136 = vst [vmem:[%s260 + $0x148] sm:$0xff] %v2072
        %2137 = vst [vmem:[%s260 + $0x150] sm:$0xff] %v2073
        %2138 = vst [vmem:[%s260 + $0x158] sm:$0xff] %v2074
        %2139 = vst [vmem:[%s260 + $0x160] sm:$0xff] %v2075
        %2140 = vst [vmem:[%s260 + $0x168] sm:$0xff] %v2076
        %2141 = vst [vmem:[%s260 + $0x170] sm:$0xff] %v2077
        %2142 = vst [vmem:[%s260 + $0x178] sm:$0xff] %v2078
        %2143 = vst [vmem:[%s260 + $0x180] sm:$0xff] %v2079
        %2144 = vst [vmem:[%s260 + $0x188] sm:$0xff] %v2080
        %2145 = vst [vmem:[%s260 + $0x190] sm:$0xff] %v2081
        %2146 = vst [vmem:[%s260 + $0x198] sm:$0xff] %v2082
        %2147 = vst [vmem:[%s260 + $0x1a0] sm:$0xff] %v2083
        %2148 = vst [vmem:[%s260 + $0x1a8] sm:$0xff] %v2084
        %2149 = vst [vmem:[%s260 + $0x1b0] sm:$0xff] %v2085
        %2150 = vst [vmem:[%s260 + $0x1b8] sm:$0xff] %v2086
        %2151 = vst [vmem:[%s260 + $0x1c0] sm:$0xff] %v2087
        %2152 = vst [vmem:[%s260 + $0x1c8] sm:$0xff] %v2088
        %2153 = vst [vmem:[%s260 + $0x1d0] sm:$0xff] %v2089
        %2154 = vst [vmem:[%s260 + $0x1d8] sm:$0xff] %v2090
        %2155 = vst [vmem:[%s260 + $0x1e0] sm:$0xff] %v2091
        %2156 = vst [vmem:[%s260 + $0x1e8] sm:$0xff] %v2092
        %2157 = vst [vmem:[%s260 + $0x1f0] sm:$0xff] %v2093
        %2158 = vst [vmem:[%s260 + $0x1f8] sm:$0xff] %v2094
        %2159 = vmatprep.subr.mxu0 0.0
        %2160 = vmatpush1.msra.mxu0 %v490
        %2161 = vmatprep.subr.mxu0 0.0
        %2162 = vmatpush1.msra.mxu0 %v491
        %2163 = vmatprep.subr.mxu0 0.0
        %2164 = vmatpush1.msra.mxu0 %v492
        %2165 = vmatprep.subr.mxu0 0.0
        %2166 = vmatpush1.msra.mxu0 %v493
        %2167 = vmatprep.subr.mxu0 0.0
        %2168 = vmatpush1.msra.mxu0 %v494
        %2169 = vmatprep.subr.mxu0 0.0
        %2170 = vmatpush1.msra.mxu0 %v495
        %2171 = vmatprep.subr.mxu0 0.0
        %2172 = vmatpush1.msra.mxu0 %v496
        %2173 = vmatprep.subr.mxu0 0.0
        %2174 = vmatpush1.msra.mxu0 %v497
        %2175 = vmatprep.subr.mxu0 0.0
        %2176 = vmatpush1.msra.mxu0 %v498
        %2177 = vmatprep.subr.mxu0 0.0
        %2178 = vmatpush1.msra.mxu0 %v499
        %2179 = vmatprep.subr.mxu0 0.0
        %2180 = vmatpush1.msra.mxu0 %v500
        %2181 = vmatprep.subr.mxu0 0.0
        %2182 = vmatpush1.msra.mxu0 %v501
        %2183 = vmatprep.subr.mxu0 0.0
        %2184 = vmatpush1.msra.mxu0 %v502
        %2185 = vmatprep.subr.mxu0 0.0
        %2186 = vmatpush1.msra.mxu0 %v503
        %2187 = vmatprep.subr.mxu0 0.0
        %2188 = vmatpush1.msra.mxu0 %v504
        %2189 = vmatprep.subr.mxu0 0.0
        %2190 = vmatpush1.msra.mxu0 %v505
        %2191 = vmatprep.subr.mxu0 0.0
        %2192 = vmatpush1.msra.mxu0 0.0
        %2193 = vmatprep.subr.mxu0 0.0
        %2194 = vmatpush1.msra.mxu0 0.0
        %2195 = vmatprep.subr.mxu0 0.0
        %2196 = vmatpush1.msra.mxu0 0.0
        %2197 = vmatprep.subr.mxu0 0.0
        %2198 = vmatpush1.msra.mxu0 0.0
        %2199 = vmatprep.subr.mxu0 0.0
        %2200 = vmatpush1.msra.mxu0 0.0
        %2201 = vmatprep.subr.mxu0 0.0
        %2202 = vmatpush1.msra.mxu0 0.0
        %2203 = vmatprep.subr.mxu0 0.0
        %2204 = vmatpush1.msra.mxu0 0.0
        %2205 = vmatprep.subr.mxu0 0.0
        %2206 = vmatpush1.msra.mxu0 0.0
        %2207 = vmatprep.subr.mxu0 0.0
        %2208 = vmatpush1.msra.mxu0 0.0
        %2209 = vmatprep.subr.mxu0 0.0
        %2210 = vmatpush1.msra.mxu0 0.0
        %2211 = vmatprep.subr.mxu0 0.0
        %2212 = vmatpush1.msra.mxu0 0.0
        %2213 = vmatprep.subr.mxu0 0.0
        %2214 = vmatpush1.msra.mxu0 0.0
        %2215 = vmatprep.subr.mxu0 0.0
        %2216 = vmatpush1.msra.mxu0 0.0
        %2217 = vmatprep.subr.mxu0 0.0
        %2218 = vmatpush1.msra.mxu0 0.0
        %2219 = vmatprep.subr.mxu0 0.0
        %2220 = vmatpush1.msra.mxu0 0.0
        %2221 = vmatprep.subr.mxu0 0.0
        %2222 = vmatpush1.msra.mxu0 0.0
        %2223 = vmatprep.mubr.f32.mxu0 0.0
        %2224 = vmatmul.mubr.f32.gmra.mrb[0].mxu0 %v2031
        %v2225 = vpop.f32.mrb[0].mxu0
        %v2226 = vadd.f32 0.0, %v2225
        %v2227 = vpop.f32.mrb[0].mxu0
        %2228 = vmatprep.mubr.f32.mxu0 0.0
        %2229 = vmatmul.mubr.f32.gmra.mrb[0].mxu0 %v2032
        %v2230 = vpop.f32.mrb[0].mxu0
        %v2231 = vadd.f32 0.0, %v2230
        %v2232 = vpop.f32.mrb[0].mxu0
        %2233 = vmatprep.mubr.f32.mxu0 0.0
        %2234 = vmatmul.mubr.f32.gmra.mrb[0].mxu0 %v2033
        %v2235 = vpop.f32.mrb[0].mxu0
        %v2236 = vadd.f32 0.0, %v2235
        %v2237 = vpop.f32.mrb[0].mxu0
        %2238 = vmatprep.mubr.f32.mxu0 0.0
        %2239 = vmatmul.mubr.f32.gmra.mrb[0].mxu0 %v2034
        %v2240 = vpop.f32.mrb[0].mxu0
        %v2241 = vadd.f32 0.0, %v2240
        %v2242 = vpop.f32.mrb[0].mxu0
        %2243 = vmatprep.mubr.f32.mxu0 0.0
        %2244 = vmatmul.mubr.f32.gmra.mrb[0].mxu0 %v2035
        %v2245 = vpop.f32.mrb[0].mxu0
        %v2246 = vadd.f32 0.0, %v2245
        %v2247 = vpop.f32.mrb[0].mxu0
        %2248 = vmatprep.mubr.f32.mxu0 0.0
        %2249 = vmatmul.mubr.f32.gmra.mrb[0].mxu0 %v2036
        %v2250 = vpop.f32.mrb[0].mxu0
        %v2251 = vadd.f32 0.0, %v2250
        %v2252 = vpop.f32.mrb[0].mxu0
        %2253 = vmatprep.mubr.f32.mxu0 0.0
        %2254 = vmatmul.mubr.f32.gmra.mrb[0].mxu0 %v2037
        %v2255 = vpop.f32.mrb[0].mxu0
        %v2256 = vadd.f32 0.0, %v2255
        %v2257 = vpop.f32.mrb[0].mxu0
        %2258 = vmatprep.mubr.f32.mxu0 0.0
        %2259 = vmatmul.mubr.f32.gmra.mrb[0].mxu0 %v2038
        %v2260 = vpop.f32.mrb[0].mxu0
        %v2261 = vadd.f32 0.0, %v2260
        %v2262 = vpop.f32.mrb[0].mxu0
        %2263 = vmatprep.mubr.f32.mxu0 0.0
        %2264 = vmatmul.mubr.f32.gmra.mrb[0].mxu0 %v2039
        %v2265 = vpop.f32.mrb[0].mxu0
        %v2266 = vadd.f32 0.0, %v2265
        %v2267 = vpop.f32.mrb[0].mxu0
        %2268 = vmatprep.mubr.f32.mxu0 0.0
        %2269 = vmatmul.mubr.f32.gmra.mrb[0].mxu0 %v2040
        %v2270 = vpop.f32.mrb[0].mxu0
        %v2271 = vadd.f32 0.0, %v2270
        %v2272 = vpop.f32.mrb[0].mxu0
        %2273 = vmatprep.mubr.f32.mxu0 0.0
        %2274 = vmatmul.mubr.f32.gmra.mrb[0].mxu0 %v2041
        %v2275 = vpop.f32.mrb[0].mxu0
        %v2276 = vadd.f32 0.0, %v2275
        %v2277 = vpop.f32.mrb[0].mxu0
        %2278 = vmatprep.mubr.f32.mxu0 0.0
        %2279 = vmatmul.mubr.f32.gmra.mrb[0].mxu0 %v2042
        %v2280 = vpop.f32.mrb[0].mxu0
        %v2281 = vadd.f32 0.0, %v2280
        %v2282 = vpop.f32.mrb[0].mxu0
        %2283 = vmatprep.mubr.f32.mxu0 0.0
        %2284 = vmatmul.mubr.f32.gmra.mrb[0].mxu0 %v2043
        %v2285 = vpop.f32.mrb[0].mxu0
        %v2286 = vadd.f32 0.0, %v2285
        %v2287 = vpop.f32.mrb[0].mxu0
        %2288 = vmatprep.mubr.f32.mxu0 0.0
        %2289 = vmatmul.mubr.f32.gmra.mrb[0].mxu0 %v2044
        %v2290 = vpop.f32.mrb[0].mxu0
        %v2291 = vadd.f32 0.0, %v2290
        %v2292 = vpop.f32.mrb[0].mxu0
        %2293 = vmatprep.mubr.f32.mxu0 0.0
        %2294 = vmatmul.mubr.f32.gmra.mrb[0].mxu0 %v2045
        %v2295 = vpop.f32.mrb[0].mxu0
        %v2296 = vadd.f32 0.0, %v2295
        %v2297 = vpop.f32.mrb[0].mxu0
        %2298 = vmatprep.mubr.f32.mxu0 0.0
        %2299 = vmatmul.mubr.f32.gmra.mrb[0].mxu0 %v2046
        %v2300 = vpop.f32.mrb[0].mxu0
        %v2301 = vadd.f32 0.0, %v2300
        %v2302 = vpop.f32.mrb[0].mxu0
        %2303 = vdwg.mxu0
        %2304 = vmatprep.subr.mxu0 0.0
        %2305 = vmatpush1.msra.mxu0 %v506
        %2306 = vmatprep.subr.mxu0 0.0
        %2307 = vmatpush1.msra.mxu0 %v507
        %2308 = vmatprep.subr.mxu0 0.0
        %2309 = vmatpush1.msra.mxu0 %v508
        %2310 = vmatprep.subr.mxu0 0.0
        %2311 = vmatpush1.msra.mxu0 %v509
        %2312 = vmatprep.subr.mxu0 0.0
        %2313 = vmatpush1.msra.mxu0 %v510
        %2314 = vmatprep.subr.mxu0 0.0
        %2315 = vmatpush1.msra.mxu0 %v511
        %2316 = vmatprep.subr.mxu0 0.0
        %2317 = vmatpush1.msra.mxu0 %v512
        %2318 = vmatprep.subr.mxu0 0.0
        %2319 = vmatpush1.msra.mxu0 %v513
        %2320 = vmatprep.subr.mxu0 0.0
        %2321 = vmatpush1.msra.mxu0 %v514
        %2322 = vmatprep.subr.mxu0 0.0
        %2323 = vmatpush1.msra.mxu0 %v515
        %2324 = vmatprep.subr.mxu0 0.0
        %2325 = vmatpush1.msra.mxu0 %v516
        %2326 = vmatprep.subr.mxu0 0.0
        %2327 = vmatpush1.msra.mxu0 %v517
        %2328 = vmatprep.subr.mxu0 0.0
        %2329 = vmatpush1.msra.mxu0 %v518
        %2330 = vmatprep.subr.mxu0 0.0
        %2331 = vmatpush1.msra.mxu0 %v519
        %2332 = vmatprep.subr.mxu0 0.0
        %2333 = vmatpush1.msra.mxu0 %v520
        %2334 = vmatprep.subr.mxu0 0.0
        %2335 = vmatpush1.msra.mxu0 %v521
        %2336 = vmatprep.subr.mxu0 0.0
        %2337 = vmatpush1.msra.mxu0 0.0
        %2338 = vmatprep.subr.mxu0 0.0
        %2339 = vmatpush1.msra.mxu0 0.0
        %2340 = vmatprep.subr.mxu0 0.0
        %2341 = vmatpush1.msra.mxu0 0.0
        %2342 = vmatprep.subr.mxu0 0.0
        %2343 = vmatpush1.msra.mxu0 0.0
        %2344 = vmatprep.subr.mxu0 0.0
        %2345 = vmatpush1.msra.mxu0 0.0
        %2346 = vmatprep.subr.mxu0 0.0
        %2347 = vmatpush1.msra.mxu0 0.0
        %2348 = vmatprep.subr.mxu0 0.0
        %2349 = vmatpush1.msra.mxu0 0.0
        %2350 = vmatprep.subr.mxu0 0.0
        %2351 = vmatpush1.msra.mxu0 0.0
        %2352 = vmatprep.subr.mxu0 0.0
        %2353 = vmatpush1.msra.mxu0 0.0
        %2354 = vmatprep.subr.mxu0 0.0
        %2355 = vmatpush1.msra.mxu0 0.0
        %2356 = vmatprep.subr.mxu0 0.0
        %2357 = vmatpush1.msra.mxu0 0.0
        %2358 = vmatprep.subr.mxu0 0.0
        %2359 = vmatpush1.msra.mxu0 0.0
        %2360 = vmatprep.subr.mxu0 0.0
        %2361 = vmatpush1.msra.mxu0 0.0
        %2362 = vmatprep.subr.mxu0 0.0
        %2363 = vmatpush1.msra.mxu0 0.0
        %2364 = vmatprep.subr.mxu0 0.0
        %2365 = vmatpush1.msra.mxu0 0.0
        %2366 = vmatprep.subr.mxu0 0.0
        %2367 = vmatpush1.msra.mxu0 0.0
        %2368 = vmatprep.mubr.f32.mxu0 0.0
        %2369 = vmatmul.mubr.f32.gmra.mrb[0].mxu0 %v2047
        %v2370 = vpop.f32.mrb[0].mxu0
        %v2371 = vadd.f32 0.0, %v2370
        %v2372 = vpop.f32.mrb[0].mxu0
        %2373 = vmatprep.mubr.f32.mxu0 0.0
        %2374 = vmatmul.mubr.f32.gmra.mrb[0].mxu0 %v2048
        %v2375 = vpop.f32.mrb[0].mxu0
        %v2376 = vadd.f32 0.0, %v2375
        %v2377 = vpop.f32.mrb[0].mxu0
        %2378 = vmatprep.mubr.f32.mxu0 0.0
        %2379 = vmatmul.mubr.f32.gmra.mrb[0].mxu0 %v2049
        %v2380 = vpop.f32.mrb[0].mxu0
        %v2381 = vadd.f32 0.0, %v2380
        %v2382 = vpop.f32.mrb[0].mxu0
        %2383 = vmatprep.mubr.f32.mxu0 0.0
        %2384 = vmatmul.mubr.f32.gmra.mrb[0].mxu0 %v2050
        %v2385 = vpop.f32.mrb[0].mxu0
        %v2386 = vadd.f32 0.0, %v2385
        %v2387 = vpop.f32.mrb[0].mxu0
        %2388 = vmatprep.mubr.f32.mxu0 0.0
        %2389 = vmatmul.mubr.f32.gmra.mrb[0].mxu0 %v2051
        %v2390 = vpop.f32.mrb[0].mxu0
        %v2391 = vadd.f32 0.0, %v2390
        %v2392 = vpop.f32.mrb[0].mxu0
        %2393 = vmatprep.mubr.f32.mxu0 0.0
        %2394 = vmatmul.mubr.f32.gmra.mrb[0].mxu0 %v2052
        %v2395 = vpop.f32.mrb[0].mxu0
        %v2396 = vadd.f32 0.0, %v2395
        %v2397 = vpop.f32.mrb[0].mxu0
        %2398 = vmatprep.mubr.f32.mxu0 0.0
        %2399 = vmatmul.mubr.f32.gmra.mrb[0].mxu0 %v2053
        %v2400 = vpop.f32.mrb[0].mxu0
        %v2401 = vadd.f32 0.0, %v2400
        %v2402 = vpop.f32.mrb[0].mxu0
        %2403 = vmatprep.mubr.f32.mxu0 0.0
        %2404 = vmatmul.mubr.f32.gmra.mrb[0].mxu0 %v2054
        %v2405 = vpop.f32.mrb[0].mxu0
        %v2406 = vadd.f32 0.0, %v2405
        %v2407 = vpop.f32.mrb[0].mxu0
        %2408 = vmatprep.mubr.f32.mxu0 0.0
        %2409 = vmatmul.mubr.f32.gmra.mrb[0].mxu0 %v2055
        %v2410 = vpop.f32.mrb[0].mxu0
        %v2411 = vadd.f32 0.0, %v2410
        %v2412 = vpop.f32.mrb[0].mxu0
        %2413 = vmatprep.mubr.f32.mxu0 0.0
        %2414 = vmatmul.mubr.f32.gmra.mrb[0].mxu0 %v2056
        %v2415 = vpop.f32.mrb[0].mxu0
        %v2416 = vadd.f32 0.0, %v2415
        %v2417 = vpop.f32.mrb[0].mxu0
        %2418 = vmatprep.mubr.f32.mxu0 0.0
        %2419 = vmatmul.mubr.f32.gmra.mrb[0].mxu0 %v2057
        %v2420 = vpop.f32.mrb[0].mxu0
        %v2421 = vadd.f32 0.0, %v2420
        %v2422 = vpop.f32.mrb[0].mxu0
        %2423 = vmatprep.mubr.f32.mxu0 0.0
        %2424 = vmatmul.mubr.f32.gmra.mrb[0].mxu0 %v2058
        %v2425 = vpop.f32.mrb[0].mxu0
        %v2426 = vadd.f32 0.0, %v2425
        %v2427 = vpop.f32.mrb[0].mxu0
        %2428 = vmatprep.mubr.f32.mxu0 0.0
        %2429 = vmatmul.mubr.f32.gmra.mrb[0].mxu0 %v2059
        %v2430 = vpop.f32.mrb[0].mxu0
        %v2431 = vadd.f32 0.0, %v2430
        %v2432 = vpop.f32.mrb[0].mxu0
        %2433 = vmatprep.mubr.f32.mxu0 0.0
        %2434 = vmatmul.mubr.f32.gmra.mrb[0].mxu0 %v2060
        %v2435 = vpop.f32.mrb[0].mxu0
        %v2436 = vadd.f32 0.0, %v2435
        %v2437 = vpop.f32.mrb[0].mxu0
        %2438 = vmatprep.mubr.f32.mxu0 0.0
        %2439 = vmatmul.mubr.f32.gmra.mrb[0].mxu0 %v2061
        %v2440 = vpop.f32.mrb[0].mxu0
        %v2441 = vadd.f32 0.0, %v2440
        %v2442 = vpop.f32.mrb[0].mxu0
        %2443 = vmatprep.mubr.f32.mxu0 0.0
        %2444 = vmatmul.mubr.f32.gmra.mrb[0].mxu0 %v2062
        %v2445 = vpop.f32.mrb[0].mxu0
        %v2446 = vadd.f32 0.0, %v2445
        %v2447 = vpop.f32.mrb[0].mxu0
        %2448 = vdwg.mxu0
        %2449 = vmatprep.subr.mxu0 0.0
        %2450 = vmatpush1.msra.mxu0 %v522
        %2451 = vmatprep.subr.mxu0 0.0
        %2452 = vmatpush1.msra.mxu0 %v523
        %2453 = vmatprep.subr.mxu0 0.0
        %2454 = vmatpush1.msra.mxu0 %v524
        %2455 = vmatprep.subr.mxu0 0.0
        %2456 = vmatpush1.msra.mxu0 %v525
        %2457 = vmatprep.subr.mxu0 0.0
        %2458 = vmatpush1.msra.mxu0 %v526
        %2459 = vmatprep.subr.mxu0 0.0
        %2460 = vmatpush1.msra.mxu0 %v527
        %2461 = vmatprep.subr.mxu0 0.0
        %2462 = vmatpush1.msra.mxu0 %v528
        %2463 = vmatprep.subr.mxu0 0.0
        %2464 = vmatpush1.msra.mxu0 %v529
        %2465 = vmatprep.subr.mxu0 0.0
        %2466 = vmatpush1.msra.mxu0 %v530
        %2467 = vmatprep.subr.mxu0 0.0
        %2468 = vmatpush1.msra.mxu0 %v531
        %2469 = vmatprep.subr.mxu0 0.0
        %2470 = vmatpush1.msra.mxu0 %v532
        %2471 = vmatprep.subr.mxu0 0.0
        %2472 = vmatpush1.msra.mxu0 %v533
        %2473 = vmatprep.subr.mxu0 0.0
        %2474 = vmatpush1.msra.mxu0 %v534
        %2475 = vmatprep.subr.mxu0 0.0
        %2476 = vmatpush1.msra.mxu0 %v535
        %2477 = vmatprep.subr.mxu0 0.0
        %2478 = vmatpush1.msra.mxu0 %v536
        %2479 = vmatprep.subr.mxu0 0.0
        %2480 = vmatpush1.msra.mxu0 %v537
        %2481 = vmatprep.subr.mxu0 0.0
        %2482 = vmatpush1.msra.mxu0 0.0
        %2483 = vmatprep.subr.mxu0 0.0
        %2484 = vmatpush1.msra.mxu0 0.0
        %2485 = vmatprep.subr.mxu0 0.0
        %2486 = vmatpush1.msra.mxu0 0.0
        %2487 = vmatprep.subr.mxu0 0.0
        %2488 = vmatpush1.msra.mxu0 0.0
        %2489 = vmatprep.subr.mxu0 0.0
        %2490 = vmatpush1.msra.mxu0 0.0
        %2491 = vmatprep.subr.mxu0 0.0
        %2492 = vmatpush1.msra.mxu0 0.0
        %2493 = vmatprep.subr.mxu0 0.0
        %2494 = vmatpush1.msra.mxu0 0.0
        %2495 = vmatprep.subr.mxu0 0.0
        %2496 = vmatpush1.msra.mxu0 0.0
        %2497 = vmatprep.subr.mxu0 0.0
        %2498 = vmatpush1.msra.mxu0 0.0
        %2499 = vmatprep.subr.mxu0 0.0
        %2500 = vmatpush1.msra.mxu0 0.0
        %2501 = vmatprep.subr.mxu0 0.0
        %2502 = vmatpush1.msra.mxu0 0.0
        %2503 = vmatprep.subr.mxu0 0.0
        %2504 = vmatpush1.msra.mxu0 0.0
        %2505 = vmatprep.subr.mxu0 0.0
        %2506 = vmatpush1.msra.mxu0 0.0
        %2507 = vmatprep.subr.mxu0 0.0
        %2508 = vmatpush1.msra.mxu0 0.0
        %2509 = vmatprep.subr.mxu0 0.0
        %2510 = vmatpush1.msra.mxu0 0.0
        %2511 = vmatprep.subr.mxu0 0.0
        %2512 = vmatpush1.msra.mxu0 0.0
        %2513 = vmatprep.mubr.f32.mxu0 0.0
        %2514 = vmatmul.mubr.f32.gmra.mrb[0].mxu0 %v2063
        %v2515 = vpop.f32.mrb[0].mxu0
        %v2516 = vadd.f32 0.0, %v2515
        %v2517 = vpop.f32.mrb[0].mxu0
        %2518 = vmatprep.mubr.f32.mxu0 0.0
        %2519 = vmatmul.mubr.f32.gmra.mrb[0].mxu0 %v2064
        %v2520 = vpop.f32.mrb[0].mxu0
        %v2521 = vadd.f32 0.0, %v2520
        %v2522 = vpop.f32.mrb[0].mxu0
        %2523 = vmatprep.mubr.f32.mxu0 0.0
        %2524 = vmatmul.mubr.f32.gmra.mrb[0].mxu0 %v2065
        %v2525 = vpop.f32.mrb[0].mxu0
        %v2526 = vadd.f32 0.0, %v2525
        %v2527 = vpop.f32.mrb[0].mxu0
        %2528 = vmatprep.mubr.f32.mxu0 0.0
        %2529 = vmatmul.mubr.f32.gmra.mrb[0].mxu0 %v2066
        %v2530 = vpop.f32.mrb[0].mxu0
        %v2531 = vadd.f32 0.0, %v2530
        %v2532 = vpop.f32.mrb[0].mxu0
        %2533 = vmatprep.mubr.f32.mxu0 0.0
        %2534 = vmatmul.mubr.f32.gmra.mrb[0].mxu0 %v2067
        %v2535 = vpop.f32.mrb[0].mxu0
        %v2536 = vadd.f32 0.0, %v2535
        %v2537 = vpop.f32.mrb[0].mxu0
        %2538 = vmatprep.mubr.f32.mxu0 0.0
        %2539 = vmatmul.mubr.f32.gmra.mrb[0].mxu0 %v2068
        %v2540 = vpop.f32.mrb[0].mxu0
        %v2541 = vadd.f32 0.0, %v2540
        %v2542 = vpop.f32.mrb[0].mxu0
        %2543 = vmatprep.mubr.f32.mxu0 0.0
        %2544 = vmatmul.mubr.f32.gmra.mrb[0].mxu0 %v2069
        %v2545 = vpop.f32.mrb[0].mxu0
        %v2546 = vadd.f32 0.0, %v2545
        %v2547 = vpop.f32.mrb[0].mxu0
        %2548 = vmatprep.mubr.f32.mxu0 0.0
        %2549 = vmatmul.mubr.f32.gmra.mrb[0].mxu0 %v2070
        %v2550 = vpop.f32.mrb[0].mxu0
        %v2551 = vadd.f32 0.0, %v2550
        %v2552 = vpop.f32.mrb[0].mxu0
        %2553 = vmatprep.mubr.f32.mxu0 0.0
        %2554 = vmatmul.mubr.f32.gmra.mrb[0].mxu0 %v2071
        %v2555 = vpop.f32.mrb[0].mxu0
        %v2556 = vadd.f32 0.0, %v2555
        %v2557 = vpop.f32.mrb[0].mxu0
        %2558 = vmatprep.mubr.f32.mxu0 0.0
        %2559 = vmatmul.mubr.f32.gmra.mrb[0].mxu0 %v2072
        %v2560 = vpop.f32.mrb[0].mxu0
        %v2561 = vadd.f32 0.0, %v2560
        %v2562 = vpop.f32.mrb[0].mxu0
        %2563 = vmatprep.mubr.f32.mxu0 0.0
        %2564 = vmatmul.mubr.f32.gmra.mrb[0].mxu0 %v2073
        %v2565 = vpop.f32.mrb[0].mxu0
        %v2566 = vadd.f32 0.0, %v2565
        %v2567 = vpop.f32.mrb[0].mxu0
        %2568 = vmatprep.mubr.f32.mxu0 0.0
        %2569 = vmatmul.mubr.f32.gmra.mrb[0].mxu0 %v2074
        %v2570 = vpop.f32.mrb[0].mxu0
        %v2571 = vadd.f32 0.0, %v2570
        %v2572 = vpop.f32.mrb[0].mxu0
        %2573 = vmatprep.mubr.f32.mxu0 0.0
        %2574 = vmatmul.mubr.f32.gmra.mrb[0].mxu0 %v2075
        %v2575 = vpop.f32.mrb[0].mxu0
        %v2576 = vadd.f32 0.0, %v2575
        %v2577 = vpop.f32.mrb[0].mxu0
        %2578 = vmatprep.mubr.f32.mxu0 0.0
        %2579 = vmatmul.mubr.f32.gmra.mrb[0].mxu0 %v2076
        %v2580 = vpop.f32.mrb[0].mxu0
        %v2581 = vadd.f32 0.0, %v2580
        %v2582 = vpop.f32.mrb[0].mxu0
        %2583 = vmatprep.mubr.f32.mxu0 0.0
        %2584 = vmatmul.mubr.f32.gmra.mrb[0].mxu0 %v2077
        %v2585 = vpop.f32.mrb[0].mxu0
        %v2586 = vadd.f32 0.0, %v2585
        %v2587 = vpop.f32.mrb[0].mxu0
        %2588 = vmatprep.mubr.f32.mxu0 0.0
        %2589 = vmatmul.mubr.f32.gmra.mrb[0].mxu0 %v2078
        %v2590 = vpop.f32.mrb[0].mxu0
        %v2591 = vadd.f32 0.0, %v2590
        %v2592 = vpop.f32.mrb[0].mxu0
        %2593 = vdwg.mxu0
        %2594 = vmatprep.subr.mxu0 0.0
        %2595 = vmatpush1.msra.mxu0 %v538
        %2596 = vmatprep.subr.mxu0 0.0
        %2597 = vmatpush1.msra.mxu0 %v539
        %2598 = vmatprep.subr.mxu0 0.0
        %2599 = vmatpush1.msra.mxu0 %v540
        %2600 = vmatprep.subr.mxu0 0.0
        %2601 = vmatpush1.msra.mxu0 %v541
        %2602 = vmatprep.subr.mxu0 0.0
        %2603 = vmatpush1.msra.mxu0 %v542
        %2604 = vmatprep.subr.mxu0 0.0
        %2605 = vmatpush1.msra.mxu0 %v543
        %2606 = vmatprep.subr.mxu0 0.0
        %2607 = vmatpush1.msra.mxu0 %v544
        %2608 = vmatprep.subr.mxu0 0.0
        %2609 = vmatpush1.msra.mxu0 %v545
        %2610 = vmatprep.subr.mxu0 0.0
        %2611 = vmatpush1.msra.mxu0 %v546
        %2612 = vmatprep.subr.mxu0 0.0
        %2613 = vmatpush1.msra.mxu0 %v547
        %2614 = vmatprep.subr.mxu0 0.0
        %2615 = vmatpush1.msra.mxu0 %v548
        %2616 = vmatprep.subr.mxu0 0.0
        %2617 = vmatpush1.msra.mxu0 %v549
        %2618 = vmatprep.subr.mxu0 0.0
        %2619 = vmatpush1.msra.mxu0 %v550
        %2620 = vmatprep.subr.mxu0 0.0
        %2621 = vmatpush1.msra.mxu0 %v551
        %2622 = vmatprep.subr.mxu0 0.0
        %2623 = vmatpush1.msra.mxu0 %v552
        %2624 = vmatprep.subr.mxu0 0.0
        %2625 = vmatpush1.msra.mxu0 %v553
        %2626 = vmatprep.subr.mxu0 0.0
        %2627 = vmatpush1.msra.mxu0 0.0
        %2628 = vmatprep.subr.mxu0 0.0
        %2629 = vmatpush1.msra.mxu0 0.0
        %2630 = vmatprep.subr.mxu0 0.0
        %2631 = vmatpush1.msra.mxu0 0.0
        %2632 = vmatprep.subr.mxu0 0.0
        %2633 = vmatpush1.msra.mxu0 0.0
        %2634 = vmatprep.subr.mxu0 0.0
        %2635 = vmatpush1.msra.mxu0 0.0
        %2636 = vmatprep.subr.mxu0 0.0
        %2637 = vmatpush1.msra.mxu0 0.0
        %2638 = vmatprep.subr.mxu0 0.0
        %2639 = vmatpush1.msra.mxu0 0.0
        %2640 = vmatprep.subr.mxu0 0.0
        %2641 = vmatpush1.msra.mxu0 0.0
        %2642 = vmatprep.subr.mxu0 0.0
        %2643 = vmatpush1.msra.mxu0 0.0
        %2644 = vmatprep.subr.mxu0 0.0
        %2645 = vmatpush1.msra.mxu0 0.0
        %2646 = vmatprep.subr.mxu0 0.0
        %2647 = vmatpush1.msra.mxu0 0.0
        %2648 = vmatprep.subr.mxu0 0.0
        %2649 = vmatpush1.msra.mxu0 0.0
        %2650 = vmatprep.subr.mxu0 0.0
        %2651 = vmatpush1.msra.mxu0 0.0
        %2652 = vmatprep.subr.mxu0 0.0
        %2653 = vmatpush1.msra.mxu0 0.0
        %2654 = vmatprep.subr.mxu0 0.0
        %2655 = vmatpush1.msra.mxu0 0.0
        %2656 = vmatprep.subr.mxu0 0.0
        %2657 = vmatpush1.msra.mxu0 0.0
        %2658 = vmatprep.mubr.f32.mxu0 0.0
        %2659 = vmatmul.mubr.f32.gmra.mrb[0].mxu0 %v2079
        %v2660 = vpop.f32.mrb[0].mxu0
        %v2661 = vadd.f32 0.0, %v2660
        %v2662 = vpop.f32.mrb[0].mxu0
        %2663 = vmatprep.mubr.f32.mxu0 0.0
        %2664 = vmatmul.mubr.f32.gmra.mrb[0].mxu0 %v2080
        %v2665 = vpop.f32.mrb[0].mxu0
        %v2666 = vadd.f32 0.0, %v2665
        %v2667 = vpop.f32.mrb[0].mxu0
        %2668 = vmatprep.mubr.f32.mxu0 0.0
        %2669 = vmatmul.mubr.f32.gmra.mrb[0].mxu0 %v2081
        %v2670 = vpop.f32.mrb[0].mxu0
        %v2671 = vadd.f32 0.0, %v2670
        %v2672 = vpop.f32.mrb[0].mxu0
        %2673 = vmatprep.mubr.f32.mxu0 0.0
        %2674 = vmatmul.mubr.f32.gmra.mrb[0].mxu0 %v2082
        %v2675 = vpop.f32.mrb[0].mxu0
        %v2676 = vadd.f32 0.0, %v2675
        %v2677 = vpop.f32.mrb[0].mxu0
        %2678 = vmatprep.mubr.f32.mxu0 0.0
        %2679 = vmatmul.mubr.f32.gmra.mrb[0].mxu0 %v2083
        %v2680 = vpop.f32.mrb[0].mxu0
        %v2681 = vadd.f32 0.0, %v2680
        %v2682 = vpop.f32.mrb[0].mxu0
        %2683 = vmatprep.mubr.f32.mxu0 0.0
        %2684 = vmatmul.mubr.f32.gmra.mrb[0].mxu0 %v2084
        %v2685 = vpop.f32.mrb[0].mxu0
        %v2686 = vadd.f32 0.0, %v2685
        %v2687 = vpop.f32.mrb[0].mxu0
        %2688 = vmatprep.mubr.f32.mxu0 0.0
        %2689 = vmatmul.mubr.f32.gmra.mrb[0].mxu0 %v2085
        %v2690 = vpop.f32.mrb[0].mxu0
        %v2691 = vadd.f32 0.0, %v2690
        %v2692 = vpop.f32.mrb[0].mxu0
        %2693 = vmatprep.mubr.f32.mxu0 0.0
        %2694 = vmatmul.mubr.f32.gmra.mrb[0].mxu0 %v2086
        %v2695 = vpop.f32.mrb[0].mxu0
        %v2696 = vadd.f32 0.0, %v2695
        %v2697 = vpop.f32.mrb[0].mxu0
        %2698 = vmatprep.mubr.f32.mxu0 0.0
        %2699 = vmatmul.mubr.f32.gmra.mrb[0].mxu0 %v2087
        %v2700 = vpop.f32.mrb[0].mxu0
        %v2701 = vadd.f32 0.0, %v2700
        %v2702 = vpop.f32.mrb[0].mxu0
        %2703 = vmatprep.mubr.f32.mxu0 0.0
        %2704 = vmatmul.mubr.f32.gmra.mrb[0].mxu0 %v2088
        %v2705 = vpop.f32.mrb[0].mxu0
        %v2706 = vadd.f32 0.0, %v2705
        %v2707 = vpop.f32.mrb[0].mxu0
        %2708 = vmatprep.mubr.f32.mxu0 0.0
        %2709 = vmatmul.mubr.f32.gmra.mrb[0].mxu0 %v2089
        %v2710 = vpop.f32.mrb[0].mxu0
        %v2711 = vadd.f32 0.0, %v2710
        %v2712 = vpop.f32.mrb[0].mxu0
        %2713 = vmatprep.mubr.f32.mxu0 0.0
        %2714 = vmatmul.mubr.f32.gmra.mrb[0].mxu0 %v2090
        %v2715 = vpop.f32.mrb[0].mxu0
        %v2716 = vadd.f32 0.0, %v2715
        %v2717 = vpop.f32.mrb[0].mxu0
        %2718 = vmatprep.mubr.f32.mxu0 0.0
        %2719 = vmatmul.mubr.f32.gmra.mrb[0].mxu0 %v2091
        %v2720 = vpop.f32.mrb[0].mxu0
        %v2721 = vadd.f32 0.0, %v2720
        %v2722 = vpop.f32.mrb[0].mxu0
        %2723 = vmatprep.mubr.f32.mxu0 0.0
        %2724 = vmatmul.mubr.f32.gmra.mrb[0].mxu0 %v2092
        %v2725 = vpop.f32.mrb[0].mxu0
        %v2726 = vadd.f32 0.0, %v2725
        %v2727 = vpop.f32.mrb[0].mxu0
        %2728 = vmatprep.mubr.f32.mxu0 0.0
        %2729 = vmatmul.mubr.f32.gmra.mrb[0].mxu0 %v2093
        %v2730 = vpop.f32.mrb[0].mxu0
        %v2731 = vadd.f32 0.0, %v2730
        %v2732 = vpop.f32.mrb[0].mxu0
        %2733 = vmatprep.mubr.f32.mxu0 0.0
        %2734 = vmatmul.mubr.f32.gmra.mrb[0].mxu0 %v2094
        %v2735 = vpop.f32.mrb[0].mxu0
        %v2736 = vadd.f32 0.0, %v2735
        %v2737 = vpop.f32.mrb[0].mxu0
        %2738 = vdwg.mxu0
        %2739 = vst.msk [vmem:[%s267] sm:$0xff] %vm554, %v2226
        %2740 = vst.msk [vmem:[%s267 + $0x8] sm:$0xff] %vm554, %v2231
        %2741 = vst.msk [vmem:[%s267 + $0x10] sm:$0xff] %vm554, %v2236
        %2742 = vst.msk [vmem:[%s267 + $0x18] sm:$0xff] %vm554, %v2241
        %2743 = vst.msk [vmem:[%s267 + $0x20] sm:$0xff] %vm554, %v2246
        %2744 = vst.msk [vmem:[%s267 + $0x28] sm:$0xff] %vm554, %v2251
        %2745 = vst.msk [vmem:[%s267 + $0x30] sm:$0xff] %vm554, %v2256
        %2746 = vst.msk [vmem:[%s267 + $0x38] sm:$0xff] %vm554, %v2261
        %2747 = vst.msk [vmem:[%s267 + $0x40] sm:$0xff] %vm554, %v2266
        %2748 = vst.msk [vmem:[%s267 + $0x48] sm:$0xff] %vm554, %v2271
        %2749 = vst.msk [vmem:[%s267 + $0x50] sm:$0xff] %vm554, %v2276
        %2750 = vst.msk [vmem:[%s267 + $0x58] sm:$0xff] %vm554, %v2281
        %2751 = vst.msk [vmem:[%s267 + $0x60] sm:$0xff] %vm554, %v2286
        %2752 = vst.msk [vmem:[%s267 + $0x68] sm:$0xff] %vm554, %v2291
        %2753 = vst.msk [vmem:[%s267 + $0x70] sm:$0xff] %vm554, %v2296
        %2754 = vst.msk [vmem:[%s267 + $0x78] sm:$0xff] %vm554, %v2301
        %2755 = vst.msk [vmem:[%s267 + $0x80] sm:$0xff] %vm554, %v2371
        %2756 = vst.msk [vmem:[%s267 + $0x88] sm:$0xff] %vm554, %v2376
        %2757 = vst.msk [vmem:[%s267 + $0x90] sm:$0xff] %vm554, %v2381
        %2758 = vst.msk [vmem:[%s267 + $0x98] sm:$0xff] %vm554, %v2386
        %2759 = vst.msk [vmem:[%s267 + $0xa0] sm:$0xff] %vm554, %v2391
        %2760 = vst.msk [vmem:[%s267 + $0xa8] sm:$0xff] %vm554, %v2396
        %2761 = vst.msk [vmem:[%s267 + $0xb0] sm:$0xff] %vm554, %v2401
        %2762 = vst.msk [vmem:[%s267 + $0xb8] sm:$0xff] %vm554, %v2406
        %2763 = vst.msk [vmem:[%s267 + $0xc0] sm:$0xff] %vm554, %v2411
        %2764 = vst.msk [vmem:[%s267 + $0xc8] sm:$0xff] %vm554, %v2416
        %2765 = vst.msk [vmem:[%s267 + $0xd0] sm:$0xff] %vm554, %v2421
        %2766 = vst.msk [vmem:[%s267 + $0xd8] sm:$0xff] %vm554, %v2426
        %2767 = vst.msk [vmem:[%s267 + $0xe0] sm:$0xff] %vm554, %v2431
        %2768 = vst.msk [vmem:[%s267 + $0xe8] sm:$0xff] %vm554, %v2436
        %2769 = vst.msk [vmem:[%s267 + $0xf0] sm:$0xff] %vm554, %v2441
        %2770 = vst.msk [vmem:[%s267 + $0xf8] sm:$0xff] %vm554, %v2446
        %2771 = vst.msk [vmem:[%s267 + $0x100] sm:$0xff] %vm554, %v2516
        %2772 = vst.msk [vmem:[%s267 + $0x108] sm:$0xff] %vm554, %v2521
        %2773 = vst.msk [vmem:[%s267 + $0x110] sm:$0xff] %vm554, %v2526
        %2774 = vst.msk [vmem:[%s267 + $0x118] sm:$0xff] %vm554, %v2531
        %2775 = vst.msk [vmem:[%s267 + $0x120] sm:$0xff] %vm554, %v2536
        %2776 = vst.msk [vmem:[%s267 + $0x128] sm:$0xff] %vm554, %v2541
        %2777 = vst.msk [vmem:[%s267 + $0x130] sm:$0xff] %vm554, %v2546
        %2778 = vst.msk [vmem:[%s267 + $0x138] sm:$0xff] %vm554, %v2551
        %2779 = vst.msk [vmem:[%s267 + $0x140] sm:$0xff] %vm554, %v2556
        %2780 = vst.msk [vmem:[%s267 + $0x148] sm:$0xff] %vm554, %v2561
        %2781 = vst.msk [vmem:[%s267 + $0x150] sm:$0xff] %vm554, %v2566
        %2782 = vst.msk [vmem:[%s267 + $0x158] sm:$0xff] %vm554, %v2571
        %2783 = vst.msk [vmem:[%s267 + $0x160] sm:$0xff] %vm554, %v2576
        %2784 = vst.msk [vmem:[%s267 + $0x168] sm:$0xff] %vm554, %v2581
        %2785 = vst.msk [vmem:[%s267 + $0x170] sm:$0xff] %vm554, %v2586
        %2786 = vst.msk [vmem:[%s267 + $0x178] sm:$0xff] %vm554, %v2591
        %2787 = vst.msk [vmem:[%s267 + $0x180] sm:$0xff] %vm554, %v2661
        %2788 = vst.msk [vmem:[%s267 + $0x188] sm:$0xff] %vm554, %v2666
        %2789 = vst.msk [vmem:[%s267 + $0x190] sm:$0xff] %vm554, %v2671
        %2790 = vst.msk [vmem:[%s267 + $0x198] sm:$0xff] %vm554, %v2676
        %2791 = vst.msk [vmem:[%s267 + $0x1a0] sm:$0xff] %vm554, %v2681
        %2792 = vst.msk [vmem:[%s267 + $0x1a8] sm:$0xff] %vm554, %v2686
        %2793 = vst.msk [vmem:[%s267 + $0x1b0] sm:$0xff] %vm554, %v2691
        %2794 = vst.msk [vmem:[%s267 + $0x1b8] sm:$0xff] %vm554, %v2696
        %2795 = vst.msk [vmem:[%s267 + $0x1c0] sm:$0xff] %vm554, %v2701
        %2796 = vst.msk [vmem:[%s267 + $0x1c8] sm:$0xff] %vm554, %v2706
        %2797 = vst.msk [vmem:[%s267 + $0x1d0] sm:$0xff] %vm554, %v2711
        %2798 = vst.msk [vmem:[%s267 + $0x1d8] sm:$0xff] %vm554, %v2716
        %2799 = vst.msk [vmem:[%s267 + $0x1e0] sm:$0xff] %vm554, %v2721
        %2800 = vst.msk [vmem:[%s267 + $0x1e8] sm:$0xff] %vm554, %v2726
        %2801 = vst.msk [vmem:[%s267 + $0x1f0] sm:$0xff] %vm554, %v2731
        %2802 = vst.msk [vmem:[%s267 + $0x1f8] sm:$0xff] %vm554, %v2736
        %s2803 = sand.u32 %s124, 1
        %s2804 = scalar_lea.sflag [#allocation3], %s2803
        %s2805 = sand.u32 %s124, 1
        %s2806 = smul.addr %s2805, 512
        %s2807 = scalar_lea.vmem [#allocation2], %s2806
        %s2808 = sand.u32 %s152, 1
        %s2809 = scalar_lea.sflag [#allocation5], %s2808
        %s2810 = sand.u32 %s152, 1
        %s2811 = smul.addr %s2810, 512
        %s2812 = scalar_lea.vmem [#allocation4], %s2811
        // Predicated region
        $region33: #{attention_extract_forward.3} parent=31 // pred_check
          %p2813 = pneg %p134
        $region34: #{attention_extract_forward.3} parent=31 // pred_check_branch
          %2815 = sbr.rel (%p2813) target = $region36
        $region35: #{attention_extract_forward.3} parent=31 // pred_region
          %s2816 = smul.u32 4, %s26
          %s2817 = smul.u32 16, %s27
          %s2819 = ssub.s32 8192, 8192
          %2820 = vsyncadd %s2804, %s2819
          %s2821 = smul.addr %s2816, 16
          %s2822 = sadd.s32 %s2817, %s2821
          %s2823 = smul.addr %s2822, 128
          %s2824 = scalar_lea.hbm %s3, %s2823
          %s2825 = sshll.u32 %s2807, 4
          %s2826 = int_to_ptr.vmem [resolvable:$true] %s2825
          %2831 = dma.vmem_to_hbm [thread:$0]  %s2826, 8192, %s2824, %s2804, 128, 128, 8
        $region36: #{attention_extract_forward.3} parent=31 // pred_fallthru
          _
        // Predicated region
        $region37: #{attention_extract_forward.3} parent=31 // pred_check
          %p2832 = pneg %p162
        $region38: #{attention_extract_forward.3} parent=31 // pred_check_branch
          %2834 = sbr.rel (%p2832) target = $region40
        $region39: #{attention_extract_forward.3} parent=31 // pred_region
          %s2835 = smul.u32 4, %s26
          %s2836 = smul.u32 16, %s27
          %s2838 = ssub.s32 8192, 8192
          %2839 = vsyncadd %s2809, %s2838
          %s2840 = smul.addr %s2835, 16
          %s2841 = sadd.s32 %s2836, %s2840
          %s2842 = smul.addr %s2841, 128
          %s2843 = scalar_lea.hbm %s4, %s2842
          %s2844 = sshll.u32 %s2812, 4
          %s2845 = int_to_ptr.vmem [resolvable:$true] %s2844
          %2850 = dma.vmem_to_hbm [thread:$0]  %s2845, 8192, %s2843, %s2809, 128, 128, 8
        $region40: #{attention_extract_forward.3} parent=31 // pred_fallthru
          _
      $region32: #{attention_extract_forward.3} parent=5 // pred_fallthru
        _
      %p2851 = scmp.le.s32.totalorder 2, %s17
      // Predicated region
      $region41: #{attention_extract_forward.3} parent=5 // pred_check
        %p2852 = pneg %p2851
      $region42: #{attention_extract_forward.3} parent=5 // pred_check_branch
        %2854 = sbr.rel (%p2852) target = $region44
      $region43: #{attention_extract_forward.3} parent=5 // pred_region
        %s2855 = ssub.s32 %s17, 2
        // Predicated region
        $region45: #{attention_extract_forward.3} parent=43 // pred_check
          %p2856 = pneg %p140
        $region46: #{attention_extract_forward.3} parent=43 // pred_check_branch
          %2858 = sbr.rel (%p2856) target = $region48
        $region47: #{attention_extract_forward.3} parent=43 // pred_region
          %s2859 = sand.u32 %s125, 1
          %s2860 = scalar_lea.sflag [#allocation3], %s2859
          %s2861 = sand.u32 %s125, 1
          %s2862 = smul.addr %s2861, 512
          %s2863 = scalar_lea.vmem [#allocation2], %s2862
          %2864 = dma.done %s2860, 8192
        $region48: #{attention_extract_forward.3} parent=43 // pred_fallthru
          _
        // Predicated region
        $region49: #{attention_extract_forward.3} parent=43 // pred_check
          %p2865 = pneg %p168
        $region50: #{attention_extract_forward.3} parent=43 // pred_check_branch
          %2867 = sbr.rel (%p2865) target = $region52
        $region51: #{attention_extract_forward.3} parent=43 // pred_region
          %s2868 = sand.u32 %s153, 1
          %s2869 = scalar_lea.sflag [#allocation5], %s2868
          %s2870 = sand.u32 %s153, 1
          %s2871 = smul.addr %s2870, 512
          %s2872 = scalar_lea.vmem [#allocation4], %s2871
          %2873 = dma.done %s2869, 8192
        $region52: #{attention_extract_forward.3} parent=43 // pred_fallthru
          _
      $region44: #{attention_extract_forward.3} parent=5 // pred_fallthru
        _
    $region6: #{attention_extract_forward.3} parent=1 // loop_footer
      %s21 = sadd.s32 1, %s17
    $region7: #{attention_extract_forward.3} parent=1 // loop_footer_branch
      %16 = sbr.rel target = $region3
    $region8: #{attention_extract_forward.3} parent=1 // loop_exit
      _
    %2874 = vsyncpa [#allocation3], 1
    %s2875 = scalar_lea.sflag [#allocation3], 1
    %2876 = vsyncpa %s2875, 1
    %2877 = vsyncpa [#allocation5], 1
    %s2878 = scalar_lea.sflag [#allocation5], 1
    %2879 = vsyncpa %s2878, 1

</llo_original>
